<compile_context>
chip_gen: v6e
topology: v6e:2x2x1
jax: 0.10.0
libtpu: 0.0.40
codegen_flags: <defaults>
</compile_context>

<pallas_src>
import numpy as np
import jax
import jax.numpy as jnp
from jax.experimental import pallas as pl
from jax.experimental.pallas import tpu as pltpu


# ----------------------------------------------------------------------------- helpers
def _compute_num_groups(c):
    # same algorithm as SimpleIPGLayer.__init__
    for i in range(min(32, c), 0, -1):
        if c % i == 0:
            return i
    return 1


def _bilinear_downup_matrix(n):
    """(n, n) linear operator == F.interpolate(scale=0.5, bilinear, align_corners=False)
    followed by F.interpolate(size=n, bilinear, align_corners=False). n must be even."""
    m = n // 2
    d = np.zeros((m, n), np.float32)          # downsample = 2x average pool
    for i in range(m):
        d[i, 2 * i] = 0.5
        d[i, 2 * i + 1] = 0.5
    u = np.zeros((n, m), np.float32)          # bilinear upsample, half-pixel centers
    for i in range(n):
        src = max((i + 0.5) * (m / n) - 0.5, 0.0)
        i0 = min(int(np.floor(src)), m - 1)
        i1 = min(i0 + 1, m - 1)
        w1 = src - i0
        u[i, i0] += 1.0 - w1
        u[i, i1] += w1
    return np.asarray(u @ d, np.float32)


def _band_table(a_axis, axis, H, W):
    """Per-diagonal coefficient rows (flattened to H*W lanes) so that the banded
    (n,n) operator `a_axis` applied along `axis` of a row-major (H,W) image equals
    sum_d coef_d * roll(x, by d along that axis)."""
    n = a_axis.shape[0]
    ii, jj = np.nonzero(a_axis)
    offs = sorted(set(int(j - i) for i, j in zip(ii, jj)))
    hh, ww = np.meshgrid(np.arange(H), np.arange(W), indexing="ij")
    idx = hh if axis == "h" else ww
    rows = []
    for d in offs:
        src = idx + d
        valid = (src >= 0) & (src < n)
        coef = np.zeros((H, W), np.float32)
        coef[valid] = a_axis[idx[valid], src[valid]]
        rows.append(coef.reshape(H * W))
    return offs, np.stack(rows, axis=0).astype(np.float32)


# ----------------------------------------------------------------------------- kernel
def _make_kernel(C, H, W, BP, G, offs_w, offs_h, min_conn, max_conn, threshold, power):
    HW = H * W
    BPC = BP * C
    cs = C // G
    NW = len(offs_w)
    conn_range = float(max_conn - min_conn)
    hp = jax.lax.Precision.HIGHEST
    f32 = jnp.float32

    def _roll(v, shift):
        # result[p] = v[p - shift]  (wraparound positions are always masked by a
        # zero coefficient / validity mask by the caller)
        s = shift % HW
        return v if s == 0 else pltpu.roll(v, shift=s, axis=1)

    def kernel(x_ref, dfc_ref, vmask_ref, bg_ref, wstk_ref, w1_ref, w2_ref, cc_ref,
               out_ref, win_ref):
        x = x_ref[...]                                         # (BPC, HW) lane-dense slab
        xsq = x * x
        dfc = dfc_ref[...]                                     # (NW+NH, HW) band coeffs
        vmask = vmask_ref[...]                                 # (25, HW) tap validity
        cc = cc_ref[...]                                       # (5*BPC, 1) packed columns

        # ---- DFDetector: separable bilinear down+up as banded roll+FMA (exact f32).
        t = jnp.zeros((BPC, HW), f32)
        for k, d in enumerate(offs_w):                         # along W: lane shift d
            t = t + dfc[k:k + 1, :] * _roll(x, -d)
        x_du = jnp.zeros((BPC, HW), f32)
        for k, e in enumerate(offs_h):                         # along H: lane shift e*W
            x_du = x_du + dfc[NW + k:NW + k + 1, :] * _roll(t, -e * W)

        # ---- per-batch channel sums, already broadcast to every packed channel row
        bmat = bg_ref[0:BPC, :]                                # same-batch selector
        gsel = bg_ref[BPC:2 * BPC, :]                          # same-(batch,group) selector
        df = jnp.dot(bmat, jnp.abs(x - x_du), precision=hp, preferred_element_type=f32)
        sq = jnp.dot(bmat, xsq, precision=hp, preferred_element_type=f32)

        # ---- DF thresholds / connection counts (per-batch rows, lane reductions)
        df_min = jnp.min(df, axis=1, keepdims=True)
        df_max = jnp.max(df, axis=1, keepdims=True)
        df_norm = (df - df_min) / (df_max - df_min + 1e-8)
        df_pow = df_norm
        for _ in range(power - 1):
            df_pow = df_pow * df_norm
        mask = (df_pow > threshold).astype(f32)
        conn_above = jnp.maximum(jnp.round(df_pow * conn_range), 0.0)
        connections = float(min_conn) + conn_above * mask
        detail_mask = (connections > 1.0).astype(f32)
        attention = jax.nn.sigmoid(df)

        # ---- F.normalize(x, p=2, dim=1): rsqrt on the EUP
        xn = x * jax.lax.rsqrt(jnp.maximum(sq, 1e-24))

        # ---- shared 3x3/5x5 windows: 25 rolled+masked slabs stored to an aligned
        #      (25*BPC, HW) scratch (full-8-sublane stores), then ONE MXU matmul
        #      against the stacked (2*BPC, 25*BPC) weight matrix.
        for tap in range(25):
            dy, dx = tap // 5 - 2, tap % 5 - 2
            w_t = _roll(xn, -(dy * W + dx)) * vmask[tap:tap + 1, :]
            win_ref[tap * BPC:(tap + 1) * BPC, :] = w_t
        conv = jnp.dot(wstk_ref[...], win_ref[...], precision=hp,
                       preferred_element_type=f32)             # (2*BPC, HW)
        acc5 = conv[0:BPC, :]                                  # detail_conv (5x5)
        acc3 = conv[BPC:2 * BPC, :]                            # conv (3x3)

        out = acc3 * (1.0 - detail_mask) + acc5 * detail_mask
        out = x * (1.0 - attention) + out * attention

        # ---- GroupNorm on the identity input: one-pass stats (E[x], E[x^2])
        inv_n = 1.0 / float(cs * HW)
        gs = jnp.dot(gsel, x, precision=hp, preferred_element_type=f32)
        gss = jnp.dot(gsel, xsq, precision=hp, preferred_element_type=f32)
        mean = jnp.sum(gs, axis=1, keepdims=True) * inv_n
        var = jnp.sum(gss, axis=1, keepdims=True) * inv_n - mean * mean
        gnw = cc[2 * BPC:3 * BPC, :]
        gnb = cc[3 * BPC:4 * BPC, :]
        gn = (x - mean) * jax.lax.rsqrt(var + 1e-5) * gnw + gnb

        enhanced = out + gn

        # ---- conv_ffn: 1x1 convs C->2C->C as two MXU matmuls (block-diag over BP)
        b1 = cc[0:2 * BPC, :]
        b2 = cc[4 * BPC:5 * BPC, :]
        h = jnp.dot(w1_ref[...], enhanced, precision=hp, preferred_element_type=f32) + b1
        h = jnp.maximum(h, 0.0)
        y = jnp.dot(w2_ref[...], h, precision=hp, preferred_element_type=f32) + b2
        out_ref[...] = enhanced + y

    return kernel


# ----------------------------------------------------------------------------- wrapper
def simple_ipg_forward(x, params, *, min_conn=1, max_conn=16, threshold=0.9, power=2):
    B, C, H, W = x.shape
    HW = H * W
    G = _compute_num_groups(C)
    cs = C // G
    # TODO(synk): odd H/W would need the generic (non-even) bilinear resize weights.
    assert H % 2 == 0 and W % 2 == 0, "even spatial sizes assumed for the down+up operator"

    # batch packing: fill the 8 f32 sublanes of a vreg (BP batches per grid step)
    BP = 1
    for cand in range(min(B, max(1, 8 // C)), 0, -1):
        if B % cand == 0:
            BP = cand
            break
    BPC = BP * C

    # separable bilinear down+up operators and their banded per-diagonal tables
    a_h = _bilinear_downup_matrix(H)
    a_w = _bilinear_downup_matrix(W)
    offs_w, cw = _band_table(a_w, "w", H, W)
    offs_h, ch = _band_table(a_h, "h", H, W)
    dfc = jnp.asarray(np.concatenate([cw, ch], axis=0))        # (NW+NH, HW)

    # tap validity masks (row & column) shared by the 3x3 and 5x5 windows
    hh = np.arange(HW) // W
    ww = np.arange(HW) % W
    vmask_np = np.zeros((25, HW), np.float32)
    for t in range(25):
        dy, dx = t // 5 - 2, t % 5 - 2
        vmask_np[t] = ((hh + dy >= 0) & (hh + dy < H) & (ww + dx >= 0) & (ww + dx < W))
    vmask = jnp.asarray(vmask_np)

    # stacked per-tap conv weights: rows [5x5 packed channels ; 3x3 packed channels],
    # block-diagonal across the BP packed batch elements
    eye_bp = np.eye(BP, dtype=np.float32)
    w5 = np.asarray(params["w5"], np.float32)
    w3 = np.asarray(params["w3"], np.float32)
    wstk_np = np.zeros((2 * BPC, 25 * BPC), np.float32)
    for t in range(25):
        ky, kx = divmod(t, 5)
        wstk_np[0:BPC, t * BPC:(t + 1) * BPC] = np.kron(eye_bp, w5[:, :, ky, kx])
        if 1 <= ky <= 3 and 1 <= kx <= 3:
            wstk_np[BPC:2 * BPC, t * BPC:(t + 1) * BPC] = np.kron(eye_bp, w3[:, :, ky - 1, kx - 1])
    wstk = jnp.asarray(wstk_np)

    # same-batch / same-(batch,group) channel selectors, stacked into ONE operand
    bmat = np.kron(eye_bp, np.ones((C, C), np.float32))
    gsel = np.kron(eye_bp, np.kron(np.eye(G, dtype=np.float32),
                                   np.ones((cs, cs), np.float32)))
    bg = jnp.asarray(np.concatenate([bmat, gsel], axis=0))     # (2*BPC, BPC)

    # block-diagonal FFN weights (batch packing) + packed column constants
    w1p = jnp.asarray(np.kron(eye_bp, np.asarray(params["ffn_w1"], np.float32)))
    w2p = jnp.asarray(np.kron(eye_bp, np.asarray(params["ffn_w2"], np.float32)))
    cc = jnp.asarray(np.concatenate([
        np.tile(np.asarray(params["ffn_b1"], np.float32), BP),  # rows [0, 2*BPC)
        np.tile(np.asarray(params["gn_w"], np.float32), BP),    # rows [2*BPC, 3*BPC)
        np.tile(np.asarray(params["gn_b"], np.float32), BP),    # rows [3*BPC, 4*BPC)
        np.tile(np.asarray(params["ffn_b2"], np.float32), BP),  # rows [4*BPC, 5*BPC)
    ])[:, None])                                                # (5*BPC, 1)

    kernel = _make_kernel(C, H, W, BP, G, offs_w, offs_h,
                          min_conn, max_conn, threshold, power)

    xp = x.reshape(B // BP, BPC, HW)                            # batch-pair packed slabs

    def cspec(a):
        return pl.BlockSpec(a.shape, lambda i, n=a.ndim: (0,) * n)

    outp = pl.pallas_call(
        kernel,
        out_shape=jax.ShapeDtypeStruct((B // BP, BPC, HW), jnp.float32),
        grid=(B // BP,),
        in_specs=[
            pl.BlockSpec((None, BPC, HW), lambda i: (i, 0, 0)),  # packed x slab
            cspec(dfc),                                          # down+up band coeffs
            cspec(vmask),                                        # tap validity masks
            cspec(bg),                                           # batch/group selectors
            cspec(wstk),                                         # stacked conv weights
            cspec(w1p),                                          # ffn w1 (block-diag)
            cspec(w2p),                                          # ffn w2 (block-diag)
            cspec(cc),                                           # packed column consts
        ],
        out_specs=pl.BlockSpec((None, BPC, HW), lambda i: (i, 0, 0)),
        scratch_shapes=[pltpu.VMEM((25 * BPC, HW), jnp.float32)],  # im2col window slab
        compiler_params=pltpu.CompilerParams(
            dimension_semantics=("parallel",),
            vmem_limit_bytes=32 * 1024 * 1024),                  # explicit budget (v7x-safe)
    )(xp, dfc, vmask, bg, wstk, w1p, w2p, cc)
    return outp.reshape(B, C, H, W)


# ----------------------------------------------------------------------------- pure-JAX reference
def simple_ipg_reference(x, params, a_h, a_w, *, min_conn=1, max_conn=16,
                         threshold=0.9, power=2):
    hp = jax.lax.Precision.HIGHEST
    B, C, H, W = x.shape
    num_groups = _compute_num_groups(C)

    x_du = jnp.einsum('ip,bcpq,jq->bcij', a_h, x, a_w, precision=hp)
    df = jnp.sum(jnp.abs(x - x_du), axis=1, keepdims=True)
    dmin = jnp.min(df.reshape(B, -1), axis=1).reshape(B, 1, 1, 1)
    dmax = jnp.max(df.reshape(B, -1), axis=1).reshape(B, 1, 1, 1)
    dfp = ((df - dmin) / (dmax - dmin + 1e-8)) ** power
    mask = (dfp > threshold).astype(jnp.float32)
    conn = float(min_conn) + jnp.maximum(jnp.round(dfp * (max_conn - min_conn)), 0.0) * mask
    detail_mask = (conn > 1.0).astype(jnp.float32)
    att = jax.nn.sigmoid(df)

    denom = jnp.maximum(jnp.sqrt(jnp.sum(x * x, axis=1, keepdims=True)), 1e-12)
    xn = x / denom

    def conv(inp, w, p):
        return jax.lax.conv_general_dilated(
            inp, w, (1, 1), ((p, p), (p, p)),
            dimension_numbers=('NCHW', 'OIHW', 'NCHW'), precision=hp)

    basic = conv(xn, params["w3"], 1)
    detail = conv(xn, params["w5"], 2)
    out = basic * (1 - detail_mask) + detail * detail_mask
    out = x * (1 - att) + out * att

    xg = x.reshape(B, num_groups, C // num_groups, H, W)
    mean = xg.mean(axis=(2, 3, 4), keepdims=True)
    var = xg.var(axis=(2, 3, 4), keepdims=True)
    gn = ((xg - mean) / jnp.sqrt(var + 1e-5)).reshape(B, C, H, W)
    gn = gn * params["gn_w"].reshape(1, C, 1, 1) + params["gn_b"].reshape(1, C, 1, 1)
    enhanced = out + gn

    h = jnp.einsum('kc,bchw->bkhw', params["ffn_w1"], enhanced, precision=hp)
    h = jnp.maximum(h + params["ffn_b1"].reshape(1, -1, 1, 1), 0.0)
    y = jnp.einsum('ck,bkhw->bchw', params["ffn_w2"], h, precision=hp)
    y = y + params["ffn_b2"].reshape(1, -1, 1, 1)
    return enhanced + y


# ----------------------------------------------------------------------------- main
if __name__ == "__main__":
    B, C, H, W = 2, 4, 16, 16
    key = jax.random.PRNGKey(0)
    ks = jax.random.split(key, 9)
    x = jax.random.normal(ks[0], (B, C, H, W), jnp.float32)
    params = {
        "w3": 0.2 * jax.random.normal(ks[1], (C, C, 3, 3), jnp.float32),      # conv (no bias)
        "w5": 0.1 * jax.random.normal(ks[2], (C, C, 5, 5), jnp.float32),      # detail_conv (no bias)
        "gn_w": 1.0 + 0.1 * jax.random.normal(ks[3], (C,), jnp.float32),      # GroupNorm affine
        "gn_b": 0.1 * jax.random.normal(ks[4], (C,), jnp.float32),
        "ffn_w1": 0.3 * jax.random.normal(ks[5], (2 * C, C), jnp.float32),    # 1x1 conv C->2C
        "ffn_b1": 0.1 * jax.random.normal(ks[6], (2 * C,), jnp.float32),
        "ffn_w2": 0.3 * jax.random.normal(ks[7], (C, 2 * C), jnp.float32),    # 1x1 conv 2C->C
        "ffn_b2": 0.1 * jax.random.normal(ks[8], (C,), jnp.float32),
    }

    out = jax.block_until_ready(simple_ipg_forward(x, params))
    assert out.shape == (B, C, H, W) and out.dtype == jnp.float32

    a_h = jnp.asarray(_bilinear_downup_matrix(H))
    a_w = jnp.asarray(_bilinear_downup_matrix(W))
    ref = jax.block_until_ready(simple_ipg_reference(x, params, a_h, a_w))
    max_diff = float(jnp.max(jnp.abs(out - ref)))
    # All kernel matmuls run at HIGHEST precision and the down+up detector is exact
    # f32 roll+FMA, so only fp-ordering noise remains -> tight tolerance.
    assert max_diff < 2e-3, f"kernel/reference mismatch: max|diff|={max_diff}"

    print("KERNEL_OK")
</pallas_src>

<mosaic_0001>
module attributes {stable_mosaic.version = 11 : i64} {
  func.func @kernel(%arg0: i32, %arg1: memref<1x8x256xf32, #tpu.memory_space<vmem>>, %arg2: memref<10x256xf32, #tpu.memory_space<vmem>>, %arg3: memref<25x256xf32, #tpu.memory_space<vmem>>, %arg4: memref<16x8xf32, #tpu.memory_space<vmem>>, %arg5: memref<16x200xf32, #tpu.memory_space<vmem>>, %arg6: memref<16x8xf32, #tpu.memory_space<vmem>>, %arg7: memref<8x16xf32, #tpu.memory_space<vmem>>, %arg8: memref<40x1xf32, #tpu.memory_space<vmem>>, %arg9: memref<1x8x256xf32, #tpu.memory_space<vmem>>, %arg10: memref<200x256xf32, #tpu.memory_space<vmem>>) attributes {dimension_semantics = [#tpu.dimension_semantics<parallel>], iteration_bounds = array<i64: 1>, scalar_prefetch = 0 : i64, scratch_operands = 1 : i64, tpu.core_type = #tpu.core_type<tc>, window_params = [{transform_indices = @transform_0, window_bounds = array<i64: 1, 8, 256>}, {pipeline_mode = #tpu.pipeline_mode<synchronous>, transform_indices = @transform_1, window_bounds = array<i64: 10, 256>}, {pipeline_mode = #tpu.pipeline_mode<synchronous>, transform_indices = @transform_2, window_bounds = array<i64: 25, 256>}, {pipeline_mode = #tpu.pipeline_mode<synchronous>, transform_indices = @transform_3, window_bounds = array<i64: 16, 8>}, {pipeline_mode = #tpu.pipeline_mode<synchronous>, transform_indices = @transform_4, window_bounds = array<i64: 16, 200>}, {pipeline_mode = #tpu.pipeline_mode<synchronous>, transform_indices = @transform_5, window_bounds = array<i64: 16, 8>}, {pipeline_mode = #tpu.pipeline_mode<synchronous>, transform_indices = @transform_6, window_bounds = array<i64: 8, 16>}, {pipeline_mode = #tpu.pipeline_mode<synchronous>, transform_indices = @transform_7, window_bounds = array<i64: 40, 1>}, {transform_indices = @transform_8, window_bounds = array<i64: 1, 8, 256>}]} {
    %c0 = arith.constant 0 : index
    %c0_0 = arith.constant 0 : index
    %c0_1 = arith.constant 0 : index
    %0 = vector.load %arg1[%c0, %c0_0, %c0_1] : memref<1x8x256xf32, #tpu.memory_space<vmem>>, vector<1x8x256xf32>
    %1 = vector.shape_cast %0 : vector<1x8x256xf32> to vector<8x256xf32>
    %2 = arith.mulf %1, %1 : vector<8x256xf32>
    %c0_2 = arith.constant 0 : index
    %c0_3 = arith.constant 0 : index
    %3 = vector.load %arg2[%c0_2, %c0_3] : memref<10x256xf32, #tpu.memory_space<vmem>>, vector<10x256xf32>
    %c0_4 = arith.constant 0 : index
    %c0_5 = arith.constant 0 : index
    %4 = vector.load %arg3[%c0_4, %c0_5] : memref<25x256xf32, #tpu.memory_space<vmem>>, vector<25x256xf32>
    %c0_6 = arith.constant 0 : index
    %c0_7 = arith.constant 0 : index
    %5 = vector.load %arg8[%c0_6, %c0_7] : memref<40x1xf32, #tpu.memory_space<vmem>>, vector<40x1xf32>
    %cst = arith.constant 0.000000e+00 : f32
    %6 = vector.broadcast %cst : f32 to vector<8x256xf32>
    %7 = vector.extract_strided_slice %3 {offsets = [0, 0], sizes = [1, 256], strides = [1, 1]} : vector<10x256xf32> to vector<1x256xf32>
    %c2_i32 = arith.constant 2 : i32
    %8 = tpu.dynamic_rotate %1 by %c2_i32 dim 1 : vector<8x256xf32>, i32 -> vector<8x256xf32>
    %9 = vector.broadcast %7 : vector<1x256xf32> to vector<8x256xf32>
    %10 = arith.mulf %9, %8 : vector<8x256xf32>
    %11 = arith.addf %6, %10 : vector<8x256xf32>
    %12 = vector.extract_strided_slice %3 {offsets = [1, 0], sizes = [1, 256], strides = [1, 1]} : vector<10x256xf32> to vector<1x256xf32>
    %c1_i32 = arith.constant 1 : i32
    %13 = tpu.dynamic_rotate %1 by %c1_i32 dim 1 : vector<8x256xf32>, i32 -> vector<8x256xf32>
    %14 = vector.broadcast %12 : vector<1x256xf32> to vector<8x256xf32>
    %15 = arith.mulf %14, %13 : vector<8x256xf32>
    %16 = arith.addf %11, %15 : vector<8x256xf32>
    %17 = vector.extract_strided_slice %3 {offsets = [2, 0], sizes = [1, 256], strides = [1, 1]} : vector<10x256xf32> to vector<1x256xf32>
    %18 = vector.broadcast %17 : vector<1x256xf32> to vector<8x256xf32>
    %19 = arith.mulf %18, %1 : vector<8x256xf32>
    %20 = arith.addf %16, %19 : vector<8x256xf32>
    %21 = vector.extract_strided_slice %3 {offsets = [3, 0], sizes = [1, 256], strides = [1, 1]} : vector<10x256xf32> to vector<1x256xf32>
    %c255_i32 = arith.constant 255 : i32
    %22 = tpu.dynamic_rotate %1 by %c255_i32 dim 1 : vector<8x256xf32>, i32 -> vector<8x256xf32>
    %23 = vector.broadcast %21 : vector<1x256xf32> to vector<8x256xf32>
    %24 = arith.mulf %23, %22 : vector<8x256xf32>
    %25 = arith.addf %20, %24 : vector<8x256xf32>
    %26 = vector.extract_strided_slice %3 {offsets = [4, 0], sizes = [1, 256], strides = [1, 1]} : vector<10x256xf32> to vector<1x256xf32>
    %c254_i32 = arith.constant 254 : i32
    %27 = tpu.dynamic_rotate %1 by %c254_i32 dim 1 : vector<8x256xf32>, i32 -> vector<8x256xf32>
    %28 = vector.broadcast %26 : vector<1x256xf32> to vector<8x256xf32>
    %29 = arith.mulf %28, %27 : vector<8x256xf32>
    %30 = arith.addf %25, %29 : vector<8x256xf32>
    %cst_8 = arith.constant 0.000000e+00 : f32
    %31 = vector.broadcast %cst_8 : f32 to vector<8x256xf32>
    %32 = vector.extract_strided_slice %3 {offsets = [5, 0], sizes = [1, 256], strides = [1, 1]} : vector<10x256xf32> to vector<1x256xf32>
    %c32_i32 = arith.constant 32 : i32
    %33 = tpu.dynamic_rotate %30 by %c32_i32 dim 1 : vector<8x256xf32>, i32 -> vector<8x256xf32>
    %34 = vector.broadcast %32 : vector<1x256xf32> to vector<8x256xf32>
    %35 = arith.mulf %34, %33 : vector<8x256xf32>
    %36 = arith.addf %31, %35 : vector<8x256xf32>
    %37 = vector.extract_strided_slice %3 {offsets = [6, 0], sizes = [1, 256], strides = [1, 1]} : vector<10x256xf32> to vector<1x256xf32>
    %c16_i32 = arith.constant 16 : i32
    %38 = tpu.dynamic_rotate %30 by %c16_i32 dim 1 : vector<8x256xf32>, i32 -> vector<8x256xf32>
    %39 = vector.broadcast %37 : vector<1x256xf32> to vector<8x256xf32>
    %40 = arith.mulf %39, %38 : vector<8x256xf32>
    %41 = arith.addf %36, %40 : vector<8x256xf32>
    %42 = vector.extract_strided_slice %3 {offsets = [7, 0], sizes = [1, 256], strides = [1, 1]} : vector<10x256xf32> to vector<1x256xf32>
    %43 = vector.broadcast %42 : vector<1x256xf32> to vector<8x256xf32>
    %44 = arith.mulf %43, %30 : vector<8x256xf32>
    %45 = arith.addf %41, %44 : vector<8x256xf32>
    %46 = vector.extract_strided_slice %3 {offsets = [8, 0], sizes = [1, 256], strides = [1, 1]} : vector<10x256xf32> to vector<1x256xf32>
    %c240_i32 = arith.constant 240 : i32
    %47 = tpu.dynamic_rotate %30 by %c240_i32 dim 1 : vector<8x256xf32>, i32 -> vector<8x256xf32>
    %48 = vector.broadcast %46 : vector<1x256xf32> to vector<8x256xf32>
    %49 = arith.mulf %48, %47 : vector<8x256xf32>
    %50 = arith.addf %45, %49 : vector<8x256xf32>
    %51 = vector.extract_strided_slice %3 {offsets = [9, 0], sizes = [1, 256], strides = [1, 1]} : vector<10x256xf32> to vector<1x256xf32>
    %c224_i32 = arith.constant 224 : i32
    %52 = tpu.dynamic_rotate %30 by %c224_i32 dim 1 : vector<8x256xf32>, i32 -> vector<8x256xf32>
    %53 = vector.broadcast %51 : vector<1x256xf32> to vector<8x256xf32>
    %54 = arith.mulf %53, %52 : vector<8x256xf32>
    %55 = arith.addf %50, %54 : vector<8x256xf32>
    %c0_9 = arith.constant 0 : index
    %c0_10 = arith.constant 0 : index
    %56 = vector.load %arg4[%c0_9, %c0_10] : memref<16x8xf32, #tpu.memory_space<vmem>>, vector<8x8xf32>
    %c8 = arith.constant 8 : index
    %c0_11 = arith.constant 0 : index
    %57 = vector.load %arg4[%c8, %c0_11] : memref<16x8xf32, #tpu.memory_space<vmem>>, vector<8x8xf32>
    %58 = arith.subf %1, %55 : vector<8x256xf32>
    %59 = math.absf %58 : vector<8x256xf32>
    %cst_12 = arith.constant dense<0.000000e+00> : vector<8x256xf32>
    %60 = tpu.matmul %56, %59, %cst_12 {dimension_numbers = #tpu.dot_dimension_numbers<[1], [0], [0], [1], [0, 0, 1, 1], [], []>, precision = #tpu.contract_precision<fp32>} : vector<8x8xf32>, vector<8x256xf32>, vector<8x256xf32> -> vector<8x256xf32>
    %cst_13 = arith.constant dense<0.000000e+00> : vector<8x256xf32>
    %61 = tpu.matmul %56, %2, %cst_13 {dimension_numbers = #tpu.dot_dimension_numbers<[1], [0], [0], [1], [0, 0, 1, 1], [], []>, precision = #tpu.contract_precision<fp32>} : vector<8x8xf32>, vector<8x256xf32>, vector<8x256xf32> -> vector<8x256xf32>
    %cst_14 = arith.constant dense<0x7F800000> : vector<8xf32>
    %62 = vector.multi_reduction <minimumf>, %60, %cst_14 [1] : vector<8x256xf32> to vector<8xf32>
    %63 = vector.shape_cast %62 : vector<8xf32> to vector<8x1xf32>
    %cst_15 = arith.constant dense<0xFF800000> : vector<8xf32>
    %64 = vector.multi_reduction <maximumf>, %60, %cst_15 [1] : vector<8x256xf32> to vector<8xf32>
    %65 = vector.shape_cast %64 : vector<8xf32> to vector<8x1xf32>
    %66 = vector.broadcast %63 : vector<8x1xf32> to vector<8x256xf32>
    %67 = arith.subf %60, %66 : vector<8x256xf32>
    %68 = arith.subf %65, %63 : vector<8x1xf32>
    %cst_16 = arith.constant 9.99999993E-9 : f32
    %69 = vector.broadcast %cst_16 : f32 to vector<8x1xf32>
    %70 = arith.addf %68, %69 : vector<8x1xf32>
    %71 = vector.broadcast %70 : vector<8x1xf32> to vector<8x256xf32>
    %72 = arith.divf %67, %71 : vector<8x256xf32>
    %73 = arith.mulf %72, %72 : vector<8x256xf32>
    %cst_17 = arith.constant 0.899999976 : f32
    %74 = vector.broadcast %cst_17 : f32 to vector<8x256xf32>
    %75 = arith.cmpf ogt, %73, %74 : vector<8x256xf32>
    %76 = arith.extui %75 : vector<8x256xi1> to vector<8x256xi32>
    %77 = arith.sitofp %76 : vector<8x256xi32> to vector<8x256xf32>
    %cst_18 = arith.constant 1.500000e+01 : f32
    %78 = vector.broadcast %cst_18 : f32 to vector<8x256xf32>
    %79 = arith.mulf %73, %78 : vector<8x256xf32>
    %80 = math.roundeven %79 : vector<8x256xf32>
    %cst_19 = arith.constant 0.000000e+00 : f32
    %81 = vector.broadcast %cst_19 : f32 to vector<8x256xf32>
    %82 = arith.maximumf %80, %81 : vector<8x256xf32>
    %83 = arith.mulf %82, %77 : vector<8x256xf32>
    %cst_20 = arith.constant 1.000000e+00 : f32
    %84 = vector.broadcast %cst_20 : f32 to vector<8x256xf32>
    %85 = arith.addf %84, %83 : vector<8x256xf32>
    %cst_21 = arith.constant 1.000000e+00 : f32
    %86 = vector.broadcast %cst_21 : f32 to vector<8x256xf32>
    %87 = arith.cmpf ogt, %85, %86 : vector<8x256xf32>
    %88 = arith.extui %87 : vector<8x256xi1> to vector<8x256xi32>
    %89 = arith.sitofp %88 : vector<8x256xi32> to vector<8x256xf32>
    %90 = arith.negf %60 : vector<8x256xf32>
    %91 = math.exp %90 : vector<8x256xf32>
    %cst_22 = arith.constant 1.000000e+00 : f32
    %92 = vector.broadcast %cst_22 : f32 to vector<8x256xf32>
    %93 = arith.addf %92, %91 : vector<8x256xf32>
    %94 = arith.divf %92, %93 : vector<8x256xf32>
    %cst_23 = arith.constant 1.000000e-24 : f32
    %95 = vector.broadcast %cst_23 : f32 to vector<8x256xf32>
    %96 = arith.maximumf %61, %95 : vector<8x256xf32>
    %97 = math.rsqrt %96 : vector<8x256xf32>
    %98 = arith.mulf %1, %97 : vector<8x256xf32>
    %c34_i32 = arith.constant 34 : i32
    %99 = tpu.dynamic_rotate %98 by %c34_i32 dim 1 : vector<8x256xf32>, i32 -> vector<8x256xf32>
    %100 = vector.extract_strided_slice %4 {offsets = [0, 0], sizes = [1, 256], strides = [1, 1]} : vector<25x256xf32> to vector<1x256xf32>
    %101 = vector.broadcast %100 : vector<1x256xf32> to vector<8x256xf32>
    %102 = arith.mulf %99, %101 : vector<8x256xf32>
    %c0_24 = arith.constant 0 : index
    %c0_25 = arith.constant 0 : index
    %103 = vector.load %arg10[%c0_24, %c0_25] : memref<200x256xf32, #tpu.memory_space<vmem>>, vector<8x256xf32>
    tpu.vector_store %arg10[%c0_24, %c0_25], %102 {strides = array<i32>} : memref<200x256xf32, #tpu.memory_space<vmem>>, vector<8x256xf32>,
    %c33_i32 = arith.constant 33 : i32
    %104 = tpu.dynamic_rotate %98 by %c33_i32 dim 1 : vector<8x256xf32>, i32 -> vector<8x256xf32>
    %105 = vector.extract_strided_slice %4 {offsets = [1, 0], sizes = [1, 256], strides = [1, 1]} : vector<25x256xf32> to vector<1x256xf32>
    %106 = vector.broadcast %105 : vector<1x256xf32> to vector<8x256xf32>
    %107 = arith.mulf %104, %106 : vector<8x256xf32>
    %c8_26 = arith.constant 8 : index
    %c0_27 = arith.constant 0 : index
    %108 = vector.load %arg10[%c8_26, %c0_27] : memref<200x256xf32, #tpu.memory_space<vmem>>, vector<8x256xf32>
    tpu.vector_store %arg10[%c8_26, %c0_27], %107 {strides = array<i32>} : memref<200x256xf32, #tpu.memory_space<vmem>>, vector<8x256xf32>,
    %c32_i32_28 = arith.constant 32 : i32
    %109 = tpu.dynamic_rotate %98 by %c32_i32_28 dim 1 : vector<8x256xf32>, i32 -> vector<8x256xf32>
    %110 = vector.extract_strided_slice %4 {offsets = [2, 0], sizes = [1, 256], strides = [1, 1]} : vector<25x256xf32> to vector<1x256xf32>
    %111 = vector.broadcast %110 : vector<1x256xf32> to vector<8x256xf32>
    %112 = arith.mulf %109, %111 : vector<8x256xf32>
    %c16 = arith.constant 16 : index
    %c0_29 = arith.constant 0 : index
    %113 = vector.load %arg10[%c16, %c0_29] : memref<200x256xf32, #tpu.memory_space<vmem>>, vector<8x256xf32>
    tpu.vector_store %arg10[%c16, %c0_29], %112 {strides = array<i32>} : memref<200x256xf32, #tpu.memory_space<vmem>>, vector<8x256xf32>,
    %c31_i32 = arith.constant 31 : i32
    %114 = tpu.dynamic_rotate %98 by %c31_i32 dim 1 : vector<8x256xf32>, i32 -> vector<8x256xf32>
    %115 = vector.extract_strided_slice %4 {offsets = [3, 0], sizes = [1, 256], strides = [1, 1]} : vector<25x256xf32> to vector<1x256xf32>
    %116 = vector.broadcast %115 : vector<1x256xf32> to vector<8x256xf32>
    %117 = arith.mulf %114, %116 : vector<8x256xf32>
    %c24 = arith.constant 24 : index
    %c0_30 = arith.constant 0 : index
    %118 = vector.load %arg10[%c24, %c0_30] : memref<200x256xf32, #tpu.memory_space<vmem>>, vector<8x256xf32>
    tpu.vector_store %arg10[%c24, %c0_30], %117 {strides = array<i32>} : memref<200x256xf32, #tpu.memory_space<vmem>>, vector<8x256xf32>,
    %c30_i32 = arith.constant 30 : i32
    %119 = tpu.dynamic_rotate %98 by %c30_i32 dim 1 : vector<8x256xf32>, i32 -> vector<8x256xf32>
    %120 = vector.extract_strided_slice %4 {offsets = [4, 0], sizes = [1, 256], strides = [1, 1]} : vector<25x256xf32> to vector<1x256xf32>
    %121 = vector.broadcast %120 : vector<1x256xf32> to vector<8x256xf32>
    %122 = arith.mulf %119, %121 : vector<8x256xf32>
    %c32 = arith.constant 32 : index
    %c0_31 = arith.constant 0 : index
    %123 = vector.load %arg10[%c32, %c0_31] : memref<200x256xf32, #tpu.memory_space<vmem>>, vector<8x256xf32>
    tpu.vector_store %arg10[%c32, %c0_31], %122 {strides = array<i32>} : memref<200x256xf32, #tpu.memory_space<vmem>>, vector<8x256xf32>,
    %c18_i32 = arith.constant 18 : i32
    %124 = tpu.dynamic_rotate %98 by %c18_i32 dim 1 : vector<8x256xf32>, i32 -> vector<8x256xf32>
    %125 = vector.extract_strided_slice %4 {offsets = [5, 0], sizes = [1, 256], strides = [1, 1]} : vector<25x256xf32> to vector<1x256xf32>
    %126 = vector.broadcast %125 : vector<1x256xf32> to vector<8x256xf32>
    %127 = arith.mulf %124, %126 : vector<8x256xf32>
    %c40 = arith.constant 40 : index
    %c0_32 = arith.constant 0 : index
    %128 = vector.load %arg10[%c40, %c0_32] : memref<200x256xf32, #tpu.memory_space<vmem>>, vector<8x256xf32>
    tpu.vector_store %arg10[%c40, %c0_32], %127 {strides = array<i32>} : memref<200x256xf32, #tpu.memory_space<vmem>>, vector<8x256xf32>,
    %c17_i32 = arith.constant 17 : i32
    %129 = tpu.dynamic_rotate %98 by %c17_i32 dim 1 : vector<8x256xf32>, i32 -> vector<8x256xf32>
    %130 = vector.extract_strided_slice %4 {offsets = [6, 0], sizes = [1, 256], strides = [1, 1]} : vector<25x256xf32> to vector<1x256xf32>
    %131 = vector.broadcast %130 : vector<1x256xf32> to vector<8x256xf32>
    %132 = arith.mulf %129, %131 : vector<8x256xf32>
    %c48 = arith.constant 48 : index
    %c0_33 = arith.constant 0 : index
    %133 = vector.load %arg10[%c48, %c0_33] : memref<200x256xf32, #tpu.memory_space<vmem>>, vector<8x256xf32>
    tpu.vector_store %arg10[%c48, %c0_33], %132 {strides = array<i32>} : memref<200x256xf32, #tpu.memory_space<vmem>>, vector<8x256xf32>,
    %c16_i32_34 = arith.constant 16 : i32
    %134 = tpu.dynamic_rotate %98 by %c16_i32_34 dim 1 : vector<8x256xf32>, i32 -> vector<8x256xf32>
    %135 = vector.extract_strided_slice %4 {offsets = [7, 0], sizes = [1, 256], strides = [1, 1]} : vector<25x256xf32> to vector<1x256xf32>
    %136 = vector.broadcast %135 : vector<1x256xf32> to vector<8x256xf32>
    %137 = arith.mulf %134, %136 : vector<8x256xf32>
    %c56 = arith.constant 56 : index
    %c0_35 = arith.constant 0 : index
    %138 = vector.load %arg10[%c56, %c0_35] : memref<200x256xf32, #tpu.memory_space<vmem>>, vector<8x256xf32>
    tpu.vector_store %arg10[%c56, %c0_35], %137 {strides = array<i32>} : memref<200x256xf32, #tpu.memory_space<vmem>>, vector<8x256xf32>,
    %c15_i32 = arith.constant 15 : i32
    %139 = tpu.dynamic_rotate %98 by %c15_i32 dim 1 : vector<8x256xf32>, i32 -> vector<8x256xf32>
    %140 = vector.extract_strided_slice %4 {offsets = [8, 0], sizes = [1, 256], strides = [1, 1]} : vector<25x256xf32> to vector<1x256xf32>
    %141 = vector.broadcast %140 : vector<1x256xf32> to vector<8x256xf32>
    %142 = arith.mulf %139, %141 : vector<8x256xf32>
    %c64 = arith.constant 64 : index
    %c0_36 = arith.constant 0 : index
    %143 = vector.load %arg10[%c64, %c0_36] : memref<200x256xf32, #tpu.memory_space<vmem>>, vector<8x256xf32>
    tpu.vector_store %arg10[%c64, %c0_36], %142 {strides = array<i32>} : memref<200x256xf32, #tpu.memory_space<vmem>>, vector<8x256xf32>,
    %c14_i32 = arith.constant 14 : i32
    %144 = tpu.dynamic_rotate %98 by %c14_i32 dim 1 : vector<8x256xf32>, i32 -> vector<8x256xf32>
    %145 = vector.extract_strided_slice %4 {offsets = [9, 0], sizes = [1, 256], strides = [1, 1]} : vector<25x256xf32> to vector<1x256xf32>
    %146 = vector.broadcast %145 : vector<1x256xf32> to vector<8x256xf32>
    %147 = arith.mulf %144, %146 : vector<8x256xf32>
    %c72 = arith.constant 72 : index
    %c0_37 = arith.constant 0 : index
    %148 = vector.load %arg10[%c72, %c0_37] : memref<200x256xf32, #tpu.memory_space<vmem>>, vector<8x256xf32>
    tpu.vector_store %arg10[%c72, %c0_37], %147 {strides = array<i32>} : memref<200x256xf32, #tpu.memory_space<vmem>>, vector<8x256xf32>,
    %c2_i32_38 = arith.constant 2 : i32
    %149 = tpu.dynamic_rotate %98 by %c2_i32_38 dim 1 : vector<8x256xf32>, i32 -> vector<8x256xf32>
    %150 = vector.extract_strided_slice %4 {offsets = [10, 0], sizes = [1, 256], strides = [1, 1]} : vector<25x256xf32> to vector<1x256xf32>
    %151 = vector.broadcast %150 : vector<1x256xf32> to vector<8x256xf32>
    %152 = arith.mulf %149, %151 : vector<8x256xf32>
    %c80 = arith.constant 80 : index
    %c0_39 = arith.constant 0 : index
    %153 = vector.load %arg10[%c80, %c0_39] : memref<200x256xf32, #tpu.memory_space<vmem>>, vector<8x256xf32>
    tpu.vector_store %arg10[%c80, %c0_39], %152 {strides = array<i32>} : memref<200x256xf32, #tpu.memory_space<vmem>>, vector<8x256xf32>,
    %c1_i32_40 = arith.constant 1 : i32
    %154 = tpu.dynamic_rotate %98 by %c1_i32_40 dim 1 : vector<8x256xf32>, i32 -> vector<8x256xf32>
    %155 = vector.extract_strided_slice %4 {offsets = [11, 0], sizes = [1, 256], strides = [1, 1]} : vector<25x256xf32> to vector<1x256xf32>
    %156 = vector.broadcast %155 : vector<1x256xf32> to vector<8x256xf32>
    %157 = arith.mulf %154, %156 : vector<8x256xf32>
    %c88 = arith.constant 88 : index
    %c0_41 = arith.constant 0 : index
    %158 = vector.load %arg10[%c88, %c0_41] : memref<200x256xf32, #tpu.memory_space<vmem>>, vector<8x256xf32>
    tpu.vector_store %arg10[%c88, %c0_41], %157 {strides = array<i32>} : memref<200x256xf32, #tpu.memory_space<vmem>>, vector<8x256xf32>,
    %159 = vector.extract_strided_slice %4 {offsets = [12, 0], sizes = [1, 256], strides = [1, 1]} : vector<25x256xf32> to vector<1x256xf32>
    %160 = vector.broadcast %159 : vector<1x256xf32> to vector<8x256xf32>
    %161 = arith.mulf %98, %160 : vector<8x256xf32>
    %c96 = arith.constant 96 : index
    %c0_42 = arith.constant 0 : index
    %162 = vector.load %arg10[%c96, %c0_42] : memref<200x256xf32, #tpu.memory_space<vmem>>, vector<8x256xf32>
    tpu.vector_store %arg10[%c96, %c0_42], %161 {strides = array<i32>} : memref<200x256xf32, #tpu.memory_space<vmem>>, vector<8x256xf32>,
    %c255_i32_43 = arith.constant 255 : i32
    %163 = tpu.dynamic_rotate %98 by %c255_i32_43 dim 1 : vector<8x256xf32>, i32 -> vector<8x256xf32>
    %164 = vector.extract_strided_slice %4 {offsets = [13, 0], sizes = [1, 256], strides = [1, 1]} : vector<25x256xf32> to vector<1x256xf32>
    %165 = vector.broadcast %164 : vector<1x256xf32> to vector<8x256xf32>
    %166 = arith.mulf %163, %165 : vector<8x256xf32>
    %c104 = arith.constant 104 : index
    %c0_44 = arith.constant 0 : index
    %167 = vector.load %arg10[%c104, %c0_44] : memref<200x256xf32, #tpu.memory_space<vmem>>, vector<8x256xf32>
    tpu.vector_store %arg10[%c104, %c0_44], %166 {strides = array<i32>} : memref<200x256xf32, #tpu.memory_space<vmem>>, vector<8x256xf32>,
    %c254_i32_45 = arith.constant 254 : i32
    %168 = tpu.dynamic_rotate %98 by %c254_i32_45 dim 1 : vector<8x256xf32>, i32 -> vector<8x256xf32>
    %169 = vector.extract_strided_slice %4 {offsets = [14, 0], sizes = [1, 256], strides = [1, 1]} : vector<25x256xf32> to vector<1x256xf32>
    %170 = vector.broadcast %169 : vector<1x256xf32> to vector<8x256xf32>
    %171 = arith.mulf %168, %170 : vector<8x256xf32>
    %c112 = arith.constant 112 : index
    %c0_46 = arith.constant 0 : index
    %172 = vector.load %arg10[%c112, %c0_46] : memref<200x256xf32, #tpu.memory_space<vmem>>, vector<8x256xf32>
    tpu.vector_store %arg10[%c112, %c0_46], %171 {strides = array<i32>} : memref<200x256xf32, #tpu.memory_space<vmem>>, vector<8x256xf32>,
    %c242_i32 = arith.constant 242 : i32
    %173 = tpu.dynamic_rotate %98 by %c242_i32 dim 1 : vector<8x256xf32>, i32 -> vector<8x256xf32>
    %174 = vector.extract_strided_slice %4 {offsets = [15, 0], sizes = [1, 256], strides = [1, 1]} : vector<25x256xf32> to vector<1x256xf32>
    %175 = vector.broadcast %174 : vector<1x256xf32> to vector<8x256xf32>
    %176 = arith.mulf %173, %175 : vector<8x256xf32>
    %c120 = arith.constant 120 : index
    %c0_47 = arith.constant 0 : index
    %177 = vector.load %arg10[%c120, %c0_47] : memref<200x256xf32, #tpu.memory_space<vmem>>, vector<8x256xf32>
    tpu.vector_store %arg10[%c120, %c0_47], %176 {strides = array<i32>} : memref<200x256xf32, #tpu.memory_space<vmem>>, vector<8x256xf32>,
    %c241_i32 = arith.constant 241 : i32
    %178 = tpu.dynamic_rotate %98 by %c241_i32 dim 1 : vector<8x256xf32>, i32 -> vector<8x256xf32>
    %179 = vector.extract_strided_slice %4 {offsets = [16, 0], sizes = [1, 256], strides = [1, 1]} : vector<25x256xf32> to vector<1x256xf32>
    %180 = vector.broadcast %179 : vector<1x256xf32> to vector<8x256xf32>
    %181 = arith.mulf %178, %180 : vector<8x256xf32>
    %c128 = arith.constant 128 : index
    %c0_48 = arith.constant 0 : index
    %182 = vector.load %arg10[%c128, %c0_48] : memref<200x256xf32, #tpu.memory_space<vmem>>, vector<8x256xf32>
    tpu.vector_store %arg10[%c128, %c0_48], %181 {strides = array<i32>} : memref<200x256xf32, #tpu.memory_space<vmem>>, vector<8x256xf32>,
    %c240_i32_49 = arith.constant 240 : i32
    %183 = tpu.dynamic_rotate %98 by %c240_i32_49 dim 1 : vector<8x256xf32>, i32 -> vector<8x256xf32>
    %184 = vector.extract_strided_slice %4 {offsets = [17, 0], sizes = [1, 256], strides = [1, 1]} : vector<25x256xf32> to vector<1x256xf32>
    %185 = vector.broadcast %184 : vector<1x256xf32> to vector<8x256xf32>
    %186 = arith.mulf %183, %185 : vector<8x256xf32>
    %c136 = arith.constant 136 : index
    %c0_50 = arith.constant 0 : index
    %187 = vector.load %arg10[%c136, %c0_50] : memref<200x256xf32, #tpu.memory_space<vmem>>, vector<8x256xf32>
    tpu.vector_store %arg10[%c136, %c0_50], %186 {strides = array<i32>} : memref<200x256xf32, #tpu.memory_space<vmem>>, vector<8x256xf32>,
    %c239_i32 = arith.constant 239 : i32
    %188 = tpu.dynamic_rotate %98 by %c239_i32 dim 1 : vector<8x256xf32>, i32 -> vector<8x256xf32>
    %189 = vector.extract_strided_slice %4 {offsets = [18, 0], sizes = [1, 256], strides = [1, 1]} : vector<25x256xf32> to vector<1x256xf32>
    %190 = vector.broadcast %189 : vector<1x256xf32> to vector<8x256xf32>
    %191 = arith.mulf %188, %190 : vector<8x256xf32>
    %c144 = arith.constant 144 : index
    %c0_51 = arith.constant 0 : index
    %192 = vector.load %arg10[%c144, %c0_51] : memref<200x256xf32, #tpu.memory_space<vmem>>, vector<8x256xf32>
    tpu.vector_store %arg10[%c144, %c0_51], %191 {strides = array<i32>} : memref<200x256xf32, #tpu.memory_space<vmem>>, vector<8x256xf32>,
    %c238_i32 = arith.constant 238 : i32
    %193 = tpu.dynamic_rotate %98 by %c238_i32 dim 1 : vector<8x256xf32>, i32 -> vector<8x256xf32>
    %194 = vector.extract_strided_slice %4 {offsets = [19, 0], sizes = [1, 256], strides = [1, 1]} : vector<25x256xf32> to vector<1x256xf32>
    %195 = vector.broadcast %194 : vector<1x256xf32> to vector<8x256xf32>
    %196 = arith.mulf %193, %195 : vector<8x256xf32>
    %c152 = arith.constant 152 : index
    %c0_52 = arith.constant 0 : index
    %197 = vector.load %arg10[%c152, %c0_52] : memref<200x256xf32, #tpu.memory_space<vmem>>, vector<8x256xf32>
    tpu.vector_store %arg10[%c152, %c0_52], %196 {strides = array<i32>} : memref<200x256xf32, #tpu.memory_space<vmem>>, vector<8x256xf32>,
    %c226_i32 = arith.constant 226 : i32
    %198 = tpu.dynamic_rotate %98 by %c226_i32 dim 1 : vector<8x256xf32>, i32 -> vector<8x256xf32>
    %199 = vector.extract_strided_slice %4 {offsets = [20, 0], sizes = [1, 256], strides = [1, 1]} : vector<25x256xf32> to vector<1x256xf32>
    %200 = vector.broadcast %199 : vector<1x256xf32> to vector<8x256xf32>
    %201 = arith.mulf %198, %200 : vector<8x256xf32>
    %c160 = arith.constant 160 : index
    %c0_53 = arith.constant 0 : index
    %202 = vector.load %arg10[%c160, %c0_53] : memref<200x256xf32, #tpu.memory_space<vmem>>, vector<8x256xf32>
    tpu.vector_store %arg10[%c160, %c0_53], %201 {strides = array<i32>} : memref<200x256xf32, #tpu.memory_space<vmem>>, vector<8x256xf32>,
    %c225_i32 = arith.constant 225 : i32
    %203 = tpu.dynamic_rotate %98 by %c225_i32 dim 1 : vector<8x256xf32>, i32 -> vector<8x256xf32>
    %204 = vector.extract_strided_slice %4 {offsets = [21, 0], sizes = [1, 256], strides = [1, 1]} : vector<25x256xf32> to vector<1x256xf32>
    %205 = vector.broadcast %204 : vector<1x256xf32> to vector<8x256xf32>
    %206 = arith.mulf %203, %205 : vector<8x256xf32>
    %c168 = arith.constant 168 : index
    %c0_54 = arith.constant 0 : index
    %207 = vector.load %arg10[%c168, %c0_54] : memref<200x256xf32, #tpu.memory_space<vmem>>, vector<8x256xf32>
    tpu.vector_store %arg10[%c168, %c0_54], %206 {strides = array<i32>} : memref<200x256xf32, #tpu.memory_space<vmem>>, vector<8x256xf32>,
    %c224_i32_55 = arith.constant 224 : i32
    %208 = tpu.dynamic_rotate %98 by %c224_i32_55 dim 1 : vector<8x256xf32>, i32 -> vector<8x256xf32>
    %209 = vector.extract_strided_slice %4 {offsets = [22, 0], sizes = [1, 256], strides = [1, 1]} : vector<25x256xf32> to vector<1x256xf32>
    %210 = vector.broadcast %209 : vector<1x256xf32> to vector<8x256xf32>
    %211 = arith.mulf %208, %210 : vector<8x256xf32>
    %c176 = arith.constant 176 : index
    %c0_56 = arith.constant 0 : index
    %212 = vector.load %arg10[%c176, %c0_56] : memref<200x256xf32, #tpu.memory_space<vmem>>, vector<8x256xf32>
    tpu.vector_store %arg10[%c176, %c0_56], %211 {strides = array<i32>} : memref<200x256xf32, #tpu.memory_space<vmem>>, vector<8x256xf32>,
    %c223_i32 = arith.constant 223 : i32
    %213 = tpu.dynamic_rotate %98 by %c223_i32 dim 1 : vector<8x256xf32>, i32 -> vector<8x256xf32>
    %214 = vector.extract_strided_slice %4 {offsets = [23, 0], sizes = [1, 256], strides = [1, 1]} : vector<25x256xf32> to vector<1x256xf32>
    %215 = vector.broadcast %214 : vector<1x256xf32> to vector<8x256xf32>
    %216 = arith.mulf %213, %215 : vector<8x256xf32>
    %c184 = arith.constant 184 : index
    %c0_57 = arith.constant 0 : index
    %217 = vector.load %arg10[%c184, %c0_57] : memref<200x256xf32, #tpu.memory_space<vmem>>, vector<8x256xf32>
    tpu.vector_store %arg10[%c184, %c0_57], %216 {strides = array<i32>} : memref<200x256xf32, #tpu.memory_space<vmem>>, vector<8x256xf32>,
    %c222_i32 = arith.constant 222 : i32
    %218 = tpu.dynamic_rotate %98 by %c222_i32 dim 1 : vector<8x256xf32>, i32 -> vector<8x256xf32>
    %219 = vector.extract_strided_slice %4 {offsets = [24, 0], sizes = [1, 256], strides = [1, 1]} : vector<25x256xf32> to vector<1x256xf32>
    %220 = vector.broadcast %219 : vector<1x256xf32> to vector<8x256xf32>
    %221 = arith.mulf %218, %220 : vector<8x256xf32>
    %c192 = arith.constant 192 : index
    %c0_58 = arith.constant 0 : index
    %222 = vector.load %arg10[%c192, %c0_58] : memref<200x256xf32, #tpu.memory_space<vmem>>, vector<8x256xf32>
    tpu.vector_store %arg10[%c192, %c0_58], %221 {strides = array<i32>} : memref<200x256xf32, #tpu.memory_space<vmem>>, vector<8x256xf32>,
    %c0_59 = arith.constant 0 : index
    %c0_60 = arith.constant 0 : index
    %223 = vector.load %arg5[%c0_59, %c0_60] : memref<16x200xf32, #tpu.memory_space<vmem>>, vector<16x200xf32>
    %c0_61 = arith.constant 0 : index
    %c0_62 = arith.constant 0 : index
    %224 = vector.load %arg10[%c0_61, %c0_62] : memref<200x256xf32, #tpu.memory_space<vmem>>, vector<200x256xf32>
    %cst_63 = arith.constant dense<0.000000e+00> : vector<16x256xf32>
    %225 = tpu.matmul %223, %224, %cst_63 {dimension_numbers = #tpu.dot_dimension_numbers<[1], [0], [0], [1], [0, 0, 1, 1], [], []>, precision = #tpu.contract_precision<fp32>} : vector<16x200xf32>, vector<200x256xf32>, vector<16x256xf32> -> vector<16x256xf32>
    %226 = vector.extract_strided_slice %225 {offsets = [0, 0], sizes = [8, 256], strides = [1, 1]} : vector<16x256xf32> to vector<8x256xf32>
    %227 = vector.extract_strided_slice %225 {offsets = [8, 0], sizes = [8, 256], strides = [1, 1]} : vector<16x256xf32> to vector<8x256xf32>
    %cst_64 = arith.constant 1.000000e+00 : f32
    %228 = vector.broadcast %cst_64 : f32 to vector<8x256xf32>
    %229 = arith.subf %228, %89 : vector<8x256xf32>
    %230 = arith.mulf %227, %229 : vector<8x256xf32>
    %231 = arith.mulf %226, %89 : vector<8x256xf32>
    %232 = arith.addf %230, %231 : vector<8x256xf32>
    %cst_65 = arith.constant 1.000000e+00 : f32
    %233 = vector.broadcast %cst_65 : f32 to vector<8x256xf32>
    %234 = arith.subf %233, %94 : vector<8x256xf32>
    %235 = arith.mulf %1, %234 : vector<8x256xf32>
    %236 = arith.mulf %232, %94 : vector<8x256xf32>
    %237 = arith.addf %235, %236 : vector<8x256xf32>
    %cst_66 = arith.constant dense<0.000000e+00> : vector<8x256xf32>
    %238 = tpu.matmul %57, %1, %cst_66 {dimension_numbers = #tpu.dot_dimension_numbers<[1], [0], [0], [1], [0, 0, 1, 1], [], []>, precision = #tpu.contract_precision<fp32>} : vector<8x8xf32>, vector<8x256xf32>, vector<8x256xf32> -> vector<8x256xf32>
    %cst_67 = arith.constant dense<0.000000e+00> : vector<8x256xf32>
    %239 = tpu.matmul %57, %2, %cst_67 {dimension_numbers = #tpu.dot_dimension_numbers<[1], [0], [0], [1], [0, 0, 1, 1], [], []>, precision = #tpu.contract_precision<fp32>} : vector<8x8xf32>, vector<8x256xf32>, vector<8x256xf32> -> vector<8x256xf32>
    %cst_68 = arith.constant dense<0.000000e+00> : vector<8xf32>
    %240 = vector.multi_reduction <add>, %238, %cst_68 [1] : vector<8x256xf32> to vector<8xf32>
    %241 = vector.shape_cast %240 : vector<8xf32> to vector<8x1xf32>
    %cst_69 = arith.constant 3.906250e-03 : f32
    %242 = vector.broadcast %cst_69 : f32 to vector<8x1xf32>
    %243 = arith.mulf %241, %242 : vector<8x1xf32>
    %cst_70 = arith.constant dense<0.000000e+00> : vector<8xf32>
    %244 = vector.multi_reduction <add>, %239, %cst_70 [1] : vector<8x256xf32> to vector<8xf32>
    %245 = vector.shape_cast %244 : vector<8xf32> to vector<8x1xf32>
    %cst_71 = arith.constant 3.906250e-03 : f32
    %246 = vector.broadcast %cst_71 : f32 to vector<8x1xf32>
    %247 = arith.mulf %245, %246 : vector<8x1xf32>
    %248 = arith.mulf %243, %243 : vector<8x1xf32>
    %249 = arith.subf %247, %248 : vector<8x1xf32>
    %250 = vector.extract_strided_slice %5 {offsets = [16, 0], sizes = [8, 1], strides = [1, 1]} : vector<40x1xf32> to vector<8x1xf32>
    %251 = vector.extract_strided_slice %5 {offsets = [24, 0], sizes = [8, 1], strides = [1, 1]} : vector<40x1xf32> to vector<8x1xf32>
    %252 = vector.broadcast %243 : vector<8x1xf32> to vector<8x256xf32>
    %253 = arith.subf %1, %252 : vector<8x256xf32>
    %cst_72 = arith.constant 9.99999974E-6 : f32
    %254 = vector.broadcast %cst_72 : f32 to vector<8x1xf32>
    %255 = arith.addf %249, %254 : vector<8x1xf32>
    %256 = math.rsqrt %255 : vector<8x1xf32>
    %257 = vector.broadcast %256 : vector<8x1xf32> to vector<8x256xf32>
    %258 = arith.mulf %253, %257 : vector<8x256xf32>
    %259 = vector.broadcast %250 : vector<8x1xf32> to vector<8x256xf32>
    %260 = arith.mulf %258, %259 : vector<8x256xf32>
    %261 = vector.broadcast %251 : vector<8x1xf32> to vector<8x256xf32>
    %262 = arith.addf %260, %261 : vector<8x256xf32>
    %263 = arith.addf %237, %262 : vector<8x256xf32>
    %264 = vector.extract_strided_slice %5 {offsets = [0, 0], sizes = [16, 1], strides = [1, 1]} : vector<40x1xf32> to vector<16x1xf32>
    %265 = vector.extract_strided_slice %5 {offsets = [32, 0], sizes = [8, 1], strides = [1, 1]} : vector<40x1xf32> to vector<8x1xf32>
    %c0_73 = arith.constant 0 : index
    %c0_74 = arith.constant 0 : index
    %266 = vector.load %arg6[%c0_73, %c0_74] : memref<16x8xf32, #tpu.memory_space<vmem>>, vector<16x8xf32>
    %cst_75 = arith.constant dense<0.000000e+00> : vector<16x256xf32>
    %267 = tpu.matmul %266, %263, %cst_75 {dimension_numbers = #tpu.dot_dimension_numbers<[1], [0], [0], [1], [0, 0, 1, 1], [], []>, precision = #tpu.contract_precision<fp32>} : vector<16x8xf32>, vector<8x256xf32>, vector<16x256xf32> -> vector<16x256xf32>
    %268 = vector.broadcast %264 : vector<16x1xf32> to vector<16x256xf32>
    %269 = arith.addf %267, %268 : vector<16x256xf32>
    %cst_76 = arith.constant 0.000000e+00 : f32
    %270 = vector.broadcast %cst_76 : f32 to vector<16x256xf32>
    %271 = arith.maximumf %269, %270 : vector<16x256xf32>
    %c0_77 = arith.constant 0 : index
    %c0_78 = arith.constant 0 : index
    %272 = vector.load %arg7[%c0_77, %c0_78] : memref<8x16xf32, #tpu.memory_space<vmem>>, vector<8x16xf32>
    %cst_79 = arith.constant dense<0.000000e+00> : vector<8x256xf32>
    %273 = tpu.matmul %272, %271, %cst_79 {dimension_numbers = #tpu.dot_dimension_numbers<[1], [0], [0], [1], [0, 0, 1, 1], [], []>, precision = #tpu.contract_precision<fp32>} : vector<8x16xf32>, vector<16x256xf32>, vector<8x256xf32> -> vector<8x256xf32>
    %274 = vector.broadcast %265 : vector<8x1xf32> to vector<8x256xf32>
    %275 = arith.addf %273, %274 : vector<8x256xf32>
    %276 = arith.addf %263, %275 : vector<8x256xf32>
    %c0_80 = arith.constant 0 : index
    %c0_81 = arith.constant 0 : index
    %c0_82 = arith.constant 0 : index
    %277 = vector.load %arg9[%c0_80, %c0_81, %c0_82] : memref<1x8x256xf32, #tpu.memory_space<vmem>>, vector<1x8x256xf32>
    %278 = vector.shape_cast %277 : vector<1x8x256xf32> to vector<8x256xf32>
    %279 = vector.shape_cast %276 : vector<8x256xf32> to vector<1x8x256xf32>
    tpu.vector_store %arg9[%c0_80, %c0_81, %c0_82], %279 {strides = array<i32>} : memref<1x8x256xf32, #tpu.memory_space<vmem>>, vector<1x8x256xf32>,
    return
  }
  func.func @transform_0(%arg0: i32) -> (i32, i32, i32) {
    %c0_i32 = arith.constant 0 : i32
    %c0_i32_0 = arith.constant 0 : i32
    %c0_i32_1 = arith.constant 0 : i32
    return %arg0, %c0_i32, %c0_i32_0 : i32, i32, i32
  }
  func.func @transform_1(%arg0: i32) -> (i32, i32) {
    %c0_i32 = arith.constant 0 : i32
    %c0_i32_0 = arith.constant 0 : i32
    %c0_i32_1 = arith.constant 0 : i32
    return %c0_i32, %c0_i32_0 : i32, i32
  }
  func.func @transform_2(%arg0: i32) -> (i32, i32) {
    %c0_i32 = arith.constant 0 : i32
    %c0_i32_0 = arith.constant 0 : i32
    %c0_i32_1 = arith.constant 0 : i32
    return %c0_i32, %c0_i32_0 : i32, i32
  }
  func.func @transform_3(%arg0: i32) -> (i32, i32) {
    %c0_i32 = arith.constant 0 : i32
    %c0_i32_0 = arith.constant 0 : i32
    %c0_i32_1 = arith.constant 0 : i32
    return %c0_i32, %c0_i32_0 : i32, i32
  }
  func.func @transform_4(%arg0: i32) -> (i32, i32) {
    %c0_i32 = arith.constant 0 : i32
    %c0_i32_0 = arith.constant 0 : i32
    %c0_i32_1 = arith.constant 0 : i32
    return %c0_i32, %c0_i32_0 : i32, i32
  }
  func.func @transform_5(%arg0: i32) -> (i32, i32) {
    %c0_i32 = arith.constant 0 : i32
    %c0_i32_0 = arith.constant 0 : i32
    %c0_i32_1 = arith.constant 0 : i32
    return %c0_i32, %c0_i32_0 : i32, i32
  }
  func.func @transform_6(%arg0: i32) -> (i32, i32) {
    %c0_i32 = arith.constant 0 : i32
    %c0_i32_0 = arith.constant 0 : i32
    %c0_i32_1 = arith.constant 0 : i32
    return %c0_i32, %c0_i32_0 : i32, i32
  }
  func.func @transform_7(%arg0: i32) -> (i32, i32) {
    %c0_i32 = arith.constant 0 : i32
    %c0_i32_0 = arith.constant 0 : i32
    %c0_i32_1 = arith.constant 0 : i32
    return %c0_i32, %c0_i32_0 : i32, i32
  }
  func.func @transform_8(%arg0: i32) -> (i32, i32, i32) {
    %c0_i32 = arith.constant 0 : i32
    %c0_i32_0 = arith.constant 0 : i32
    %c0_i32_1 = arith.constant 0 : i32
    return %arg0, %c0_i32, %c0_i32_0 : i32, i32, i32
  }
}

</mosaic_0001>

<llo_original>
// kernel: tpu_custom_call.1
$region0: #{tpu_custom_call.1}
  #allocation0 [shape = 'u32[]', space=smem, size = 0x4, offset = 0x4, fixed_abs, tag = 'smem constant byte address 0x4 - core index']
  #allocation1 [shape = 'u32[144,128]{1,0:T(1,128)}', space=vmem, size = 0x12000, scoped, tag = 'internal scratch']
  #allocation2 [shape = 'f32[200,256]{1,0:T(8,128)}', space=vmem, size = 0x32000, scoped, tag = 'scratch operand']
  %s0 = inlined_call_operand.hbm [shape: f32[1,8,256], index: 0, kind: input, shape index: {}]
  %s1 = inlined_call_operand.hbm [shape: f32[10,256], index: 1, kind: input, shape index: {}]
  %s2 = inlined_call_operand.vmem [shape: f32[25,256], index: 2, kind: input, shape index: {}]
  %s3 = inlined_call_operand.vmem [shape: f32[16,8], index: 3, kind: input, shape index: {}]
  %s4 = inlined_call_operand.vmem [shape: f32[16,200], index: 4, kind: input, shape index: {}]
  %s5 = inlined_call_operand.vmem [shape: f32[16,8], index: 5, kind: input, shape index: {}]
  %s6 = inlined_call_operand.hbm [shape: f32[8,16], index: 6, kind: input, shape index: {}]
  %s7 = inlined_call_operand.vmem [shape: f32[40,1], index: 7, kind: input, shape index: {}]
  %s8 = inlined_call_operand.hbm [shape: f32[1,8,256], index: 8, kind: output, shape index: {}]
  %s9 = sld [smem:[#allocation0]]
  $region54: #{tpu_custom_call.1} parent=0
    _
  %s11 = ssub.s32 1, %s9
  %s12 = scalar_select 0, %s11, %s9
  $region1: #{tpu_custom_call.1} parent=0
    #allocation3 [shape = 'u8[8192]{0}', space=vmem, size = 0x2000, scoped, tag = 'input window, operand 0, single buffered']
    #allocation4 [shape = 's32[1]{0}', space=sflag, size = 0x4, scoped, tag = 'scoped memory for tpu_custom_call.1']
    #allocation5 [shape = 's32[1]{0}', space=sflag, size = 0x4, scoped, tag = 'scoped memory for tpu_custom_call.1']
    #allocation6 [shape = 'u8[16384]{0}', space=vmem, size = 0x4000, scoped, tag = 'input window, operand 1, single buffered']
    #allocation7 [shape = 's32[1]{0}', space=sflag, size = 0x4, scoped, tag = 'scoped memory for tpu_custom_call.1']
    #allocation8 [shape = 'u8[4096]{0}', space=vmem, size = 0x1000, scoped, tag = 'input window, operand 6, single buffered']
    #allocation9 [shape = 'u8[8192]{0}', space=vmem, size = 0x2000, scoped, tag = 'output window, operand 0, single buffered']
    %13 = vsyncpa [#allocation4], 0
    %14 = vsyncpa [#allocation7], 0
    %15 = vsyncpa [#allocation5], 0
    // Predicated region
    $region2: #{tpu_custom_call.1} parent=1 // pred_check
      _
    $region3: #{tpu_custom_call.1} parent=1 // pred_check_branch
      %17 = sbr.rel (0) target = $region5
    $region4: #{tpu_custom_call.1} parent=1 // pred_region
      %s19 = ssub.s32 256, 256
      %20 = vsyncadd [#allocation4], %s19
      %s22 = sshll.u32 [#allocation3], 4
      %s23 = int_to_ptr.vmem [resolvable:$true] %s22
      %25 = dma.hbm_to_vmem [thread:$0]  %s0, 256, %s23, [#allocation4]
    $region5: #{tpu_custom_call.1} parent=1 // pred_fallthru
      _
    // Predicated region
    $region6: #{tpu_custom_call.1} parent=1 // pred_check
      _
    $region7: #{tpu_custom_call.1} parent=1 // pred_check_branch
      %27 = sbr.rel (0) target = $region9
    $region8: #{tpu_custom_call.1} parent=1 // pred_region
      %s29 = ssub.s32 512, 512
      %30 = vsyncadd [#allocation7], %s29
      %s31 = sshll.u32 [#allocation6], 4
      %s32 = int_to_ptr.vmem [resolvable:$true] %s31
      %37 = dma.hbm_to_vmem [thread:$0]  %s1, 512, %s32, [#allocation7], 256, 256, 16
    $region9: #{tpu_custom_call.1} parent=1 // pred_fallthru
      _
    // Predicated region
    $region10: #{tpu_custom_call.1} parent=1 // pred_check
      _
    $region11: #{tpu_custom_call.1} parent=1 // pred_check_branch
      %39 = sbr.rel (0) target = $region13
    $region12: #{tpu_custom_call.1} parent=1 // pred_region
      _
    $region13: #{tpu_custom_call.1} parent=1 // pred_fallthru
      _
    // Predicated region
    $region14: #{tpu_custom_call.1} parent=1 // pred_check
      _
    $region15: #{tpu_custom_call.1} parent=1 // pred_check_branch
      %41 = sbr.rel (0) target = $region17
    $region16: #{tpu_custom_call.1} parent=1 // pred_region
      _
    $region17: #{tpu_custom_call.1} parent=1 // pred_fallthru
      _
    // Predicated region
    $region18: #{tpu_custom_call.1} parent=1 // pred_check
      _
    $region19: #{tpu_custom_call.1} parent=1 // pred_check_branch
      %43 = sbr.rel (0) target = $region21
    $region20: #{tpu_custom_call.1} parent=1 // pred_region
      _
    $region21: #{tpu_custom_call.1} parent=1 // pred_fallthru
      _
    // Predicated region
    $region22: #{tpu_custom_call.1} parent=1 // pred_check
      _
    $region23: #{tpu_custom_call.1} parent=1 // pred_check_branch
      %45 = sbr.rel (0) target = $region25
    $region24: #{tpu_custom_call.1} parent=1 // pred_region
      _
    $region25: #{tpu_custom_call.1} parent=1 // pred_fallthru
      _
    // Predicated region
    $region26: #{tpu_custom_call.1} parent=1 // pred_check
      _
    $region27: #{tpu_custom_call.1} parent=1 // pred_check_branch
      %47 = sbr.rel (0) target = $region29
    $region28: #{tpu_custom_call.1} parent=1 // pred_region
      %s49 = ssub.s32 128, 128
      %50 = vsyncadd [#allocation7], %s49
      %s52 = sshll.u32 [#allocation8], 4
      %s53 = int_to_ptr.vmem [resolvable:$true] %s52
      %55 = dma.hbm_to_vmem [thread:$0]  %s6, 128, %s53, [#allocation7]
    $region29: #{tpu_custom_call.1} parent=1 // pred_fallthru
      _
    // Predicated region
    $region30: #{tpu_custom_call.1} parent=1 // pred_check
      _
    $region31: #{tpu_custom_call.1} parent=1 // pred_check_branch
      %57 = sbr.rel (0) target = $region33
    $region32: #{tpu_custom_call.1} parent=1 // pred_region
      _
    $region33: #{tpu_custom_call.1} parent=1 // pred_fallthru
      _
    // Predicated region
    $region34: #{tpu_custom_call.1} parent=1 // pred_check
      _
    $region35: #{tpu_custom_call.1} parent=1 // pred_check_branch
      %59 = sbr.rel (0) target = $region37
    $region36: #{tpu_custom_call.1} parent=1 // pred_region
      %60 = dma.done [#allocation4], 256
    $region37: #{tpu_custom_call.1} parent=1 // pred_fallthru
      _
    // Predicated region
    $region38: #{tpu_custom_call.1} parent=1 // pred_check
      _
    $region39: #{tpu_custom_call.1} parent=1 // pred_check_branch
      %62 = sbr.rel (0) target = $region41
    $region40: #{tpu_custom_call.1} parent=1 // pred_region
      %63 = dma.done [#allocation7], 512
    $region41: #{tpu_custom_call.1} parent=1 // pred_fallthru
      _
    // Predicated region
    $region42: #{tpu_custom_call.1} parent=1 // pred_check
      _
    $region43: #{tpu_custom_call.1} parent=1 // pred_check_branch
      %65 = sbr.rel (0) target = $region45
    $region44: #{tpu_custom_call.1} parent=1 // pred_region
      %66 = dma.done [#allocation7], 128
    $region45: #{tpu_custom_call.1} parent=1 // pred_fallthru
      _
    %v67 = vld [vmem:[#allocation3] sm:$0xff]
    %v68 = vld [vmem:[#allocation3 + $0x8] sm:$0xff]
    %v69 = vmul.f32 %v67, %v67
    %v70 = vmul.f32 %v68, %v68
    %v71 = vld [vmem:[#allocation6] sm:$0xff]
    %v72 = vld [vmem:[#allocation6 + $0x8] sm:$0xff]
    %v73 = vld [vmem:[#allocation6 + $0x10] sm:$0x3]
    %v74 = vld [vmem:[#allocation6 + $0x18] sm:$0x3]
    %v75 = vld [vmem:[%s2] sm:$0xff]
    %v76 = vld [vmem:[%s2 + $0x8] sm:$0xff]
    %v77 = vld [vmem:[%s2 + $0x10] sm:$0xff]
    %v78 = vld [vmem:[%s2 + $0x18] sm:$0xff]
    %v79 = vld [vmem:[%s2 + $0x20] sm:$0xff]
    %v80 = vld [vmem:[%s2 + $0x28] sm:$0xff]
    %v81 = vld [vmem:[%s2 + $0x30] sm:$0x1]
    %v82 = vld [vmem:[%s2 + $0x38] sm:$0x1]
    %v83 = vld [vmem:[%s7] sm:$0xff]
    %v84 = vld [vmem:[%s7 + $0x8] sm:$0xff]
    %v85 = vld [vmem:[%s7 + $0x10] sm:$0xff]
    %v86 = vld [vmem:[%s7 + $0x18] sm:$0xff]
    %v87 = vld [vmem:[%s7 + $0x20] sm:$0xff]
    %88 = vrot.lane.b32.xlu0 %v67, 2
    %v89 = vpop.permute.xlu0 %88
    %90 = vrot.lane.b32.xlu0 %v68, 2
    %v91 = vpop.permute.xlu0 %90
    %v92 = vlaneseq
    %v93 = vand.u32 %v92, 127
    %vm94 = vcmp.lt.s32.totalorder %v93, 2
    %v95 = vsel %vm94, %v89, %v91
    %v96 = vsel %vm94, %v91, %v89
    %v97 = vlaneseq
    %v98 = vshrl.u32 %v97, 7
    %v99 = vsub.s32 0, %v98
    %v100 = vrot.slane %v71, %v99
    %v101 = vlaneseq
    %v102 = vshrl.u32 %v101, 7
    %v103 = vsub.s32 0, %v102
    %v104 = vrot.slane %v72, %v103
    %v105 = vmul.f32 %v100, %v96
    %v106 = vmul.f32 %v104, %v95
    %v107 = vadd.f32 %v105, 0.0
    %v108 = vadd.f32 %v106, 0.0
    %109 = vrot.lane.b32.xlu0 %v67, 1
    %v110 = vpop.permute.xlu0 %109
    %111 = vrot.lane.b32.xlu0 %v68, 1
    %v112 = vpop.permute.xlu0 %111
    %vm113 = vcmp.lt.s32.totalorder %v93, 1
    %v114 = vsel %vm113, %v110, %v112
    %v115 = vsel %vm113, %v112, %v110
    %v116 = vlaneseq
    %v117 = vshrl.u32 %v116, 7
    %v118 = vsub.s32 1, %v117
    %v119 = vrot.slane %v71, %v118
    %v120 = vlaneseq
    %v121 = vshrl.u32 %v120, 7
    %v122 = vsub.s32 1, %v121
    %v123 = vrot.slane %v72, %v122
    %v124 = vmul.f32 %v119, %v115
    %v125 = vmul.f32 %v123, %v114
    %v126 = vadd.f32 %v107, %v124
    %v127 = vadd.f32 %v108, %v125
    %v128 = vlaneseq
    %v129 = vshrl.u32 %v128, 7
    %v130 = vsub.s32 2, %v129
    %v131 = vrot.slane %v71, %v130
    %v132 = vlaneseq
    %v133 = vshrl.u32 %v132, 7
    %v134 = vsub.s32 2, %v133
    %v135 = vrot.slane %v72, %v134
    %v136 = vmul.f32 %v131, %v67
    %v137 = vmul.f32 %v135, %v68
    %v138 = vadd.f32 %v126, %v136
    %v139 = vadd.f32 %v127, %v137
    %140 = vrot.lane.b32.xlu0 %v67, 127
    %v141 = vpop.permute.xlu0 %140
    %142 = vrot.lane.b32.xlu0 %v68, 127
    %v143 = vpop.permute.xlu0 %142
    %vm144 = vcmp.lt.s32.totalorder %v93, 127
    %v145 = vsel %vm144, %v141, %v143
    %v146 = vsel %vm144, %v143, %v141
    %v147 = vlaneseq
    %v148 = vshrl.u32 %v147, 7
    %v149 = vsub.s32 3, %v148
    %v150 = vrot.slane %v71, %v149
    %v151 = vlaneseq
    %v152 = vshrl.u32 %v151, 7
    %v153 = vsub.s32 3, %v152
    %v154 = vrot.slane %v72, %v153
    %v155 = vmul.f32 %v150, %v145
    %v156 = vmul.f32 %v154, %v146
    %v157 = vadd.f32 %v138, %v155
    %v158 = vadd.f32 %v139, %v156
    %159 = vrot.lane.b32.xlu0 %v67, 126
    %v160 = vpop.permute.xlu0 %159
    %161 = vrot.lane.b32.xlu0 %v68, 126
    %v162 = vpop.permute.xlu0 %161
    %vm163 = vcmp.lt.s32.totalorder %v93, 126
    %v164 = vsel %vm163, %v160, %v162
    %v165 = vsel %vm163, %v162, %v160
    %v166 = vlaneseq
    %v167 = vshrl.u32 %v166, 7
    %v168 = vsub.s32 4, %v167
    %v169 = vrot.slane %v71, %v168
    %v170 = vlaneseq
    %v171 = vshrl.u32 %v170, 7
    %v172 = vsub.s32 4, %v171
    %v173 = vrot.slane %v72, %v172
    %v174 = vmul.f32 %v169, %v164
    %v175 = vmul.f32 %v173, %v165
    %v176 = vadd.f32 %v157, %v174
    %v177 = vadd.f32 %v158, %v175
    %178 = vrot.lane.b32.xlu0 %v176, 32
    %v179 = vpop.permute.xlu0 %178
    %180 = vrot.lane.b32.xlu0 %v177, 32
    %v181 = vpop.permute.xlu0 %180
    %vm182 = vcmp.lt.s32.totalorder %v93, 32
    %v183 = vsel %vm182, %v179, %v181
    %v184 = vsel %vm182, %v181, %v179
    %v185 = vlaneseq
    %v186 = vshrl.u32 %v185, 7
    %v187 = vsub.s32 5, %v186
    %v188 = vrot.slane %v71, %v187
    %v189 = vlaneseq
    %v190 = vshrl.u32 %v189, 7
    %v191 = vsub.s32 5, %v190
    %v192 = vrot.slane %v72, %v191
    %v193 = vmul.f32 %v188, %v184
    %v194 = vmul.f32 %v192, %v183
    %v195 = vadd.f32 %v193, 0.0
    %v196 = vadd.f32 %v194, 0.0
    %197 = vrot.lane.b32.xlu0 %v176, 16
    %v198 = vpop.permute.xlu0 %197
    %199 = vrot.lane.b32.xlu0 %v177, 16
    %v200 = vpop.permute.xlu0 %199
    %vm201 = vcmp.lt.s32.totalorder %v93, 16
    %v202 = vsel %vm201, %v198, %v200
    %v203 = vsel %vm201, %v200, %v198
    %v204 = vlaneseq
    %v205 = vshrl.u32 %v204, 7
    %v206 = vsub.s32 6, %v205
    %v207 = vrot.slane %v71, %v206
    %v208 = vlaneseq
    %v209 = vshrl.u32 %v208, 7
    %v210 = vsub.s32 6, %v209
    %v211 = vrot.slane %v72, %v210
    %v212 = vmul.f32 %v207, %v203
    %v213 = vmul.f32 %v211, %v202
    %v214 = vadd.f32 %v195, %v212
    %v215 = vadd.f32 %v196, %v213
    %v216 = vlaneseq
    %v217 = vshrl.u32 %v216, 7
    %v218 = vsub.s32 7, %v217
    %v219 = vrot.slane %v71, %v218
    %v220 = vlaneseq
    %v221 = vshrl.u32 %v220, 7
    %v222 = vsub.s32 7, %v221
    %v223 = vrot.slane %v72, %v222
    %v224 = vmul.f32 %v219, %v176
    %v225 = vmul.f32 %v223, %v177
    %v226 = vadd.f32 %v214, %v224
    %v227 = vadd.f32 %v215, %v225
    %228 = vrot.lane.b32.xlu0 %v176, 112
    %v229 = vpop.permute.xlu0 %228
    %230 = vrot.lane.b32.xlu0 %v177, 112
    %v231 = vpop.permute.xlu0 %230
    %vm232 = vcmp.lt.s32.totalorder %v93, 112
    %v233 = vsel %vm232, %v229, %v231
    %v234 = vsel %vm232, %v231, %v229
    %v235 = vlaneseq
    %v236 = vshrl.u32 %v235, 7
    %v237 = vsub.s32 0, %v236
    %v238 = vrot.slane %v73, %v237
    %v239 = vlaneseq
    %v240 = vshrl.u32 %v239, 7
    %v241 = vsub.s32 0, %v240
    %v242 = vrot.slane %v74, %v241
    %v243 = vmul.f32 %v238, %v233
    %v244 = vmul.f32 %v242, %v234
    %v245 = vadd.f32 %v226, %v243
    %v246 = vadd.f32 %v227, %v244
    %247 = vrot.lane.b32.xlu0 %v176, 96
    %v248 = vpop.permute.xlu0 %247
    %249 = vrot.lane.b32.xlu0 %v177, 96
    %v250 = vpop.permute.xlu0 %249
    %vm251 = vcmp.lt.s32.totalorder %v93, 96
    %v252 = vsel %vm251, %v248, %v250
    %v253 = vsel %vm251, %v250, %v248
    %v254 = vlaneseq
    %v255 = vshrl.u32 %v254, 7
    %v256 = vsub.s32 1, %v255
    %v257 = vrot.slane %v73, %v256
    %v258 = vlaneseq
    %v259 = vshrl.u32 %v258, 7
    %v260 = vsub.s32 1, %v259
    %v261 = vrot.slane %v74, %v260
    %v262 = vmul.f32 %v257, %v252
    %v263 = vmul.f32 %v261, %v253
    %v264 = vadd.f32 %v245, %v262
    %v265 = vadd.f32 %v246, %v263
    %v266 = vld [vmem:[%s3] sm:$0xff]
    %v267 = vld [vmem:[%s3 + $0x8] sm:$0xff]
    %v268 = vsub.f32 %v67, %v264
    %v269 = vsub.f32 %v68, %v265
    %v270 = vand.u32 2147483647, %v268
    %v271 = vand.u32 2147483647, %v269
    %vm272 = vcmask 64512
    %v274 = vsel %vm272, %v266, 0
    %276 = vmatprep.subr.mxu0 0.0
    %277 = vmatpush1.msra.mxu0 0.0
    %278 = vmatprep.subr.mxu0 0.0
    %279 = vmatpush1.msra.mxu0 0.0
    %280 = vmatprep.subr.mxu0 0.0
    %281 = vmatpush1.msra.mxu0 0.0
    %282 = vmatprep.subr.mxu0 0.0
    %283 = vmatpush1.msra.mxu0 0.0
    %284 = vmatprep.subr.mxu0 0.0
    %285 = vmatpush1.msra.mxu0 0.0
    %286 = vmatprep.subr.mxu0 0.0
    %287 = vmatpush1.msra.mxu0 0.0
    %288 = vmatprep.subr.mxu0 0.0
    %289 = vmatpush1.msra.mxu0 0.0
    %290 = vmatprep.subr.mxu0 0.0
    %291 = vmatpush1.msra.mxu0 0.0
    %292 = vmatprep.subr.mxu0 0.0
    %293 = vmatpush1.msra.mxu0 0.0
    %294 = vmatprep.subr.mxu0 0.0
    %295 = vmatpush1.msra.mxu0 0.0
    %296 = vmatprep.subr.mxu0 0.0
    %297 = vmatpush1.msra.mxu0 0.0
    %298 = vmatprep.subr.mxu0 0.0
    %299 = vmatpush1.msra.mxu0 0.0
    %300 = vmatprep.subr.mxu0 0.0
    %301 = vmatpush1.msra.mxu0 0.0
    %302 = vmatprep.subr.mxu0 0.0
    %303 = vmatpush1.msra.mxu0 0.0
    %304 = vmatprep.subr.mxu0 0.0
    %305 = vmatpush1.msra.mxu0 0.0
    %v306 = vand.u32 %v271, 4294901760
    %307 = vmatprep.subr.mxu0 %v306
    %v308 = vand.u32 %v270, 4294901760
    %309 = vmatpush1.msra.mxu0 %v308
    %310 = vmatprep.subr.mxu0 0.0
    %311 = vmatpush2.msra.mxu0 0.0
    %312 = vmatprep.subr.mxu0 0.0
    %313 = vmatpush2.msra.mxu0 0.0
    %314 = vmatprep.subr.mxu0 0.0
    %315 = vmatpush2.msra.mxu0 0.0
    %316 = vmatprep.subr.mxu0 0.0
    %317 = vmatpush2.msra.mxu0 0.0
    %318 = vmatprep.subr.mxu0 0.0
    %319 = vmatpush2.msra.mxu0 0.0
    %320 = vmatprep.subr.mxu0 0.0
    %321 = vmatpush2.msra.mxu0 0.0
    %322 = vmatprep.subr.mxu0 0.0
    %323 = vmatpush2.msra.mxu0 0.0
    %324 = vmatprep.subr.mxu0 0.0
    %325 = vmatpush2.msra.mxu0 0.0
    %326 = vmatprep.subr.mxu0 0.0
    %327 = vmatpush2.msra.mxu0 0.0
    %328 = vmatprep.subr.mxu0 0.0
    %329 = vmatpush2.msra.mxu0 0.0
    %330 = vmatprep.subr.mxu0 0.0
    %331 = vmatpush2.msra.mxu0 0.0
    %332 = vmatprep.subr.mxu0 0.0
    %333 = vmatpush2.msra.mxu0 0.0
    %334 = vmatprep.subr.mxu0 0.0
    %335 = vmatpush2.msra.mxu0 0.0
    %336 = vmatprep.subr.mxu0 0.0
    %337 = vmatpush2.msra.mxu0 0.0
    %338 = vmatprep.subr.mxu0 0.0
    %339 = vmatpush2.msra.mxu0 0.0
    %340 = vmatprep.subr.mxu0 0.0
    %341 = vmatpush2.msra.mxu0 0.0
    %342 = vmatprep.mubr.f32.mxu0 0.0
    %v343 = vand.u32 %v274, 4294901760
    %v344 = vsub.f32 %v274, %v343
    %v345 = vand.u32 %v344, 4294901760
    %v346 = vsub.f32 %v344, %v345
    %v347 = vand.u32 %v346, 4294901760
    %348 = vmatmul.mubr.f32.gmra.mxu0 %v347
    %v349 = vpop.f32.mrf.mxu0
    %v350 = vadd.f32 0.0, %v349
    %v351 = vpop.f32.mrf.mxu0
    %v352 = vadd.f32 0.0, %v351
    %353 = vdwg.mxu0
    %354 = vmatprep.subr.mxu0 0.0
    %355 = vmatpush1.msra.mxu0 0.0
    %356 = vmatprep.subr.mxu0 0.0
    %357 = vmatpush1.msra.mxu0 0.0
    %358 = vmatprep.subr.mxu0 0.0
    %359 = vmatpush1.msra.mxu0 0.0
    %360 = vmatprep.subr.mxu0 0.0
    %361 = vmatpush1.msra.mxu0 0.0
    %362 = vmatprep.subr.mxu0 0.0
    %363 = vmatpush1.msra.mxu0 0.0
    %364 = vmatprep.subr.mxu0 0.0
    %365 = vmatpush1.msra.mxu0 0.0
    %366 = vmatprep.subr.mxu0 0.0
    %367 = vmatpush1.msra.mxu0 0.0
    %368 = vmatprep.subr.mxu0 0.0
    %369 = vmatpush1.msra.mxu0 0.0
    %370 = vmatprep.subr.mxu0 0.0
    %371 = vmatpush1.msra.mxu0 0.0
    %372 = vmatprep.subr.mxu0 0.0
    %373 = vmatpush1.msra.mxu0 0.0
    %374 = vmatprep.subr.mxu0 0.0
    %375 = vmatpush1.msra.mxu0 0.0
    %376 = vmatprep.subr.mxu0 0.0
    %377 = vmatpush1.msra.mxu0 0.0
    %378 = vmatprep.subr.mxu0 0.0
    %379 = vmatpush1.msra.mxu0 0.0
    %380 = vmatprep.subr.mxu0 0.0
    %381 = vmatpush1.msra.mxu0 0.0
    %382 = vmatprep.subr.mxu0 0.0
    %383 = vmatpush1.msra.mxu0 0.0
    %v384 = vand.u32 %v271, 4294901760
    %v385 = vsub.f32 %v271, %v384
    %v386 = vand.u32 %v385, 4294901760
    %v387 = vsub.f32 %v385, %v386
    %v388 = vand.u32 %v387, 4294901760
    %389 = vmatprep.subr.mxu0 %v388
    %v390 = vand.u32 %v270, 4294901760
    %v391 = vsub.f32 %v270, %v390
    %v392 = vand.u32 %v391, 4294901760
    %v393 = vsub.f32 %v391, %v392
    %v394 = vand.u32 %v393, 4294901760
    %395 = vmatpush1.msra.mxu0 %v394
    %396 = vmatprep.subr.mxu0 0.0
    %397 = vmatpush2.msra.mxu0 0.0
    %398 = vmatprep.subr.mxu0 0.0
    %399 = vmatpush2.msra.mxu0 0.0
    %400 = vmatprep.subr.mxu0 0.0
    %401 = vmatpush2.msra.mxu0 0.0
    %402 = vmatprep.subr.mxu0 0.0
    %403 = vmatpush2.msra.mxu0 0.0
    %404 = vmatprep.subr.mxu0 0.0
    %405 = vmatpush2.msra.mxu0 0.0
    %406 = vmatprep.subr.mxu0 0.0
    %407 = vmatpush2.msra.mxu0 0.0
    %408 = vmatprep.subr.mxu0 0.0
    %409 = vmatpush2.msra.mxu0 0.0
    %410 = vmatprep.subr.mxu0 0.0
    %411 = vmatpush2.msra.mxu0 0.0
    %412 = vmatprep.subr.mxu0 0.0
    %413 = vmatpush2.msra.mxu0 0.0
    %414 = vmatprep.subr.mxu0 0.0
    %415 = vmatpush2.msra.mxu0 0.0
    %416 = vmatprep.subr.mxu0 0.0
    %417 = vmatpush2.msra.mxu0 0.0
    %418 = vmatprep.subr.mxu0 0.0
    %419 = vmatpush2.msra.mxu0 0.0
    %420 = vmatprep.subr.mxu0 0.0
    %421 = vmatpush2.msra.mxu0 0.0
    %422 = vmatprep.subr.mxu0 0.0
    %423 = vmatpush2.msra.mxu0 0.0
    %424 = vmatprep.subr.mxu0 0.0
    %425 = vmatpush2.msra.mxu0 0.0
    %426 = vmatprep.subr.mxu0 0.0
    %427 = vmatpush2.msra.mxu0 0.0
    %428 = vmatprep.mubr.f32.mxu0 0.0
    %v429 = vand.u32 %v274, 4294901760
    %430 = vmatmul.mubr.f32.gmra.mxu0 %v429
    %v431 = vpop.f32.mrf.mxu0
    %v432 = vadd.f32 %v350, %v431
    %v433 = vpop.f32.mrf.mxu0
    %v434 = vadd.f32 %v352, %v433
    %435 = vdwg.mxu0
    %436 = vmatprep.subr.mxu0 0.0
    %437 = vmatpush1.msra.mxu0 0.0
    %438 = vmatprep.subr.mxu0 0.0
    %439 = vmatpush1.msra.mxu0 0.0
    %440 = vmatprep.subr.mxu0 0.0
    %441 = vmatpush1.msra.mxu0 0.0
    %442 = vmatprep.subr.mxu0 0.0
    %443 = vmatpush1.msra.mxu0 0.0
    %444 = vmatprep.subr.mxu0 0.0
    %445 = vmatpush1.msra.mxu0 0.0
    %446 = vmatprep.subr.mxu0 0.0
    %447 = vmatpush1.msra.mxu0 0.0
    %448 = vmatprep.subr.mxu0 0.0
    %449 = vmatpush1.msra.mxu0 0.0
    %450 = vmatprep.subr.mxu0 0.0
    %451 = vmatpush1.msra.mxu0 0.0
    %452 = vmatprep.subr.mxu0 0.0
    %453 = vmatpush1.msra.mxu0 0.0
    %454 = vmatprep.subr.mxu0 0.0
    %455 = vmatpush1.msra.mxu0 0.0
    %456 = vmatprep.subr.mxu0 0.0
    %457 = vmatpush1.msra.mxu0 0.0
    %458 = vmatprep.subr.mxu0 0.0
    %459 = vmatpush1.msra.mxu0 0.0
    %460 = vmatprep.subr.mxu0 0.0
    %461 = vmatpush1.msra.mxu0 0.0
    %462 = vmatprep.subr.mxu0 0.0
    %463 = vmatpush1.msra.mxu0 0.0
    %464 = vmatprep.subr.mxu0 0.0
    %465 = vmatpush1.msra.mxu0 0.0
    %v466 = vand.u32 %v271, 4294901760
    %v467 = vsub.f32 %v271, %v466
    %468 = vmatprep.subr.mxu0 %v467
    %v469 = vand.u32 %v270, 4294901760
    %v470 = vsub.f32 %v270, %v469
    %471 = vmatpush1.msra.mxu0 %v470
    %472 = vmatprep.subr.mxu0 0.0
    %473 = vmatpush2.msra.mxu0 0.0
    %474 = vmatprep.subr.mxu0 0.0
    %475 = vmatpush2.msra.mxu0 0.0
    %476 = vmatprep.subr.mxu0 0.0
    %477 = vmatpush2.msra.mxu0 0.0
    %478 = vmatprep.subr.mxu0 0.0
    %479 = vmatpush2.msra.mxu0 0.0
    %480 = vmatprep.subr.mxu0 0.0
    %481 = vmatpush2.msra.mxu0 0.0
    %482 = vmatprep.subr.mxu0 0.0
    %483 = vmatpush2.msra.mxu0 0.0
    %484 = vmatprep.subr.mxu0 0.0
    %485 = vmatpush2.msra.mxu0 0.0
    %486 = vmatprep.subr.mxu0 0.0
    %487 = vmatpush2.msra.mxu0 0.0
    %488 = vmatprep.subr.mxu0 0.0
    %489 = vmatpush2.msra.mxu0 0.0
    %490 = vmatprep.subr.mxu0 0.0
    %491 = vmatpush2.msra.mxu0 0.0
    %492 = vmatprep.subr.mxu0 0.0
    %493 = vmatpush2.msra.mxu0 0.0
    %494 = vmatprep.subr.mxu0 0.0
    %495 = vmatpush2.msra.mxu0 0.0
    %496 = vmatprep.subr.mxu0 0.0
    %497 = vmatpush2.msra.mxu0 0.0
    %498 = vmatprep.subr.mxu0 0.0
    %499 = vmatpush2.msra.mxu0 0.0
    %500 = vmatprep.subr.mxu0 0.0
    %501 = vmatpush2.msra.mxu0 0.0
    %502 = vmatprep.subr.mxu0 0.0
    %503 = vmatpush2.msra.mxu0 0.0
    %504 = vmatprep.mubr.f32.mxu0 0.0
    %v505 = vand.u32 %v274, 4294901760
    %v506 = vsub.f32 %v274, %v505
    %507 = vmatmul.mubr.f32.gmra.mxu0 %v506
    %v508 = vpop.f32.mrf.mxu0
    %v509 = vadd.f32 %v432, %v508
    %v510 = vpop.f32.mrf.mxu0
    %v511 = vadd.f32 %v434, %v510
    %512 = vdwg.mxu0
    %513 = vmatprep.subr.mxu0 0.0
    %514 = vmatpush1.msra.mxu0 0.0
    %515 = vmatprep.subr.mxu0 0.0
    %516 = vmatpush1.msra.mxu0 0.0
    %517 = vmatprep.subr.mxu0 0.0
    %518 = vmatpush1.msra.mxu0 0.0
    %519 = vmatprep.subr.mxu0 0.0
    %520 = vmatpush1.msra.mxu0 0.0
    %521 = vmatprep.subr.mxu0 0.0
    %522 = vmatpush1.msra.mxu0 0.0
    %523 = vmatprep.subr.mxu0 0.0
    %524 = vmatpush1.msra.mxu0 0.0
    %525 = vmatprep.subr.mxu0 0.0
    %526 = vmatpush1.msra.mxu0 0.0
    %527 = vmatprep.subr.mxu0 0.0
    %528 = vmatpush1.msra.mxu0 0.0
    %529 = vmatprep.subr.mxu0 0.0
    %530 = vmatpush1.msra.mxu0 0.0
    %531 = vmatprep.subr.mxu0 0.0
    %532 = vmatpush1.msra.mxu0 0.0
    %533 = vmatprep.subr.mxu0 0.0
    %534 = vmatpush1.msra.mxu0 0.0
    %535 = vmatprep.subr.mxu0 0.0
    %536 = vmatpush1.msra.mxu0 0.0
    %537 = vmatprep.subr.mxu0 0.0
    %538 = vmatpush1.msra.mxu0 0.0
    %539 = vmatprep.subr.mxu0 0.0
    %540 = vmatpush1.msra.mxu0 0.0
    %541 = vmatprep.subr.mxu0 0.0
    %542 = vmatpush1.msra.mxu0 0.0
    %v543 = vand.u32 %v271, 4294901760
    %544 = vmatprep.subr.mxu0 %v543
    %v545 = vand.u32 %v270, 4294901760
    %546 = vmatpush1.msra.mxu0 %v545
    %547 = vmatprep.subr.mxu0 0.0
    %548 = vmatpush2.msra.mxu0 0.0
    %549 = vmatprep.subr.mxu0 0.0
    %550 = vmatpush2.msra.mxu0 0.0
    %551 = vmatprep.subr.mxu0 0.0
    %552 = vmatpush2.msra.mxu0 0.0
    %553 = vmatprep.subr.mxu0 0.0
    %554 = vmatpush2.msra.mxu0 0.0
    %555 = vmatprep.subr.mxu0 0.0
    %556 = vmatpush2.msra.mxu0 0.0
    %557 = vmatprep.subr.mxu0 0.0
    %558 = vmatpush2.msra.mxu0 0.0
    %559 = vmatprep.subr.mxu0 0.0
    %560 = vmatpush2.msra.mxu0 0.0
    %561 = vmatprep.subr.mxu0 0.0
    %562 = vmatpush2.msra.mxu0 0.0
    %563 = vmatprep.subr.mxu0 0.0
    %564 = vmatpush2.msra.mxu0 0.0
    %565 = vmatprep.subr.mxu0 0.0
    %566 = vmatpush2.msra.mxu0 0.0
    %567 = vmatprep.subr.mxu0 0.0
    %568 = vmatpush2.msra.mxu0 0.0
    %569 = vmatprep.subr.mxu0 0.0
    %570 = vmatpush2.msra.mxu0 0.0
    %571 = vmatprep.subr.mxu0 0.0
    %572 = vmatpush2.msra.mxu0 0.0
    %573 = vmatprep.subr.mxu0 0.0
    %574 = vmatpush2.msra.mxu0 0.0
    %575 = vmatprep.subr.mxu0 0.0
    %576 = vmatpush2.msra.mxu0 0.0
    %577 = vmatprep.subr.mxu0 0.0
    %578 = vmatpush2.msra.mxu0 0.0
    %579 = vmatprep.mubr.f32.mxu0 0.0
    %v580 = vand.u32 %v274, 4294901760
    %v581 = vsub.f32 %v274, %v580
    %v582 = vand.u32 %v581, 4294901760
    %583 = vmatmul.mubr.f32.gmra.mxu0 %v582
    %v584 = vpop.f32.mrf.mxu0
    %v585 = vadd.f32 %v509, %v584
    %v586 = vpop.f32.mrf.mxu0
    %v587 = vadd.f32 %v511, %v586
    %588 = vdwg.mxu0
    %589 = vmatprep.subr.mxu0 0.0
    %590 = vmatpush1.msra.mxu0 0.0
    %591 = vmatprep.subr.mxu0 0.0
    %592 = vmatpush1.msra.mxu0 0.0
    %593 = vmatprep.subr.mxu0 0.0
    %594 = vmatpush1.msra.mxu0 0.0
    %595 = vmatprep.subr.mxu0 0.0
    %596 = vmatpush1.msra.mxu0 0.0
    %597 = vmatprep.subr.mxu0 0.0
    %598 = vmatpush1.msra.mxu0 0.0
    %599 = vmatprep.subr.mxu0 0.0
    %600 = vmatpush1.msra.mxu0 0.0
    %601 = vmatprep.subr.mxu0 0.0
    %602 = vmatpush1.msra.mxu0 0.0
    %603 = vmatprep.subr.mxu0 0.0
    %604 = vmatpush1.msra.mxu0 0.0
    %605 = vmatprep.subr.mxu0 0.0
    %606 = vmatpush1.msra.mxu0 0.0
    %607 = vmatprep.subr.mxu0 0.0
    %608 = vmatpush1.msra.mxu0 0.0
    %609 = vmatprep.subr.mxu0 0.0
    %610 = vmatpush1.msra.mxu0 0.0
    %611 = vmatprep.subr.mxu0 0.0
    %612 = vmatpush1.msra.mxu0 0.0
    %613 = vmatprep.subr.mxu0 0.0
    %614 = vmatpush1.msra.mxu0 0.0
    %615 = vmatprep.subr.mxu0 0.0
    %616 = vmatpush1.msra.mxu0 0.0
    %617 = vmatprep.subr.mxu0 0.0
    %618 = vmatpush1.msra.mxu0 0.0
    %v619 = vand.u32 %v271, 4294901760
    %v620 = vsub.f32 %v271, %v619
    %v621 = vand.u32 %v620, 4294901760
    %622 = vmatprep.subr.mxu0 %v621
    %v623 = vand.u32 %v270, 4294901760
    %v624 = vsub.f32 %v270, %v623
    %v625 = vand.u32 %v624, 4294901760
    %626 = vmatpush1.msra.mxu0 %v625
    %627 = vmatprep.subr.mxu0 0.0
    %628 = vmatpush2.msra.mxu0 0.0
    %629 = vmatprep.subr.mxu0 0.0
    %630 = vmatpush2.msra.mxu0 0.0
    %631 = vmatprep.subr.mxu0 0.0
    %632 = vmatpush2.msra.mxu0 0.0
    %633 = vmatprep.subr.mxu0 0.0
    %634 = vmatpush2.msra.mxu0 0.0
    %635 = vmatprep.subr.mxu0 0.0
    %636 = vmatpush2.msra.mxu0 0.0
    %637 = vmatprep.subr.mxu0 0.0
    %638 = vmatpush2.msra.mxu0 0.0
    %639 = vmatprep.subr.mxu0 0.0
    %640 = vmatpush2.msra.mxu0 0.0
    %641 = vmatprep.subr.mxu0 0.0
    %642 = vmatpush2.msra.mxu0 0.0
    %643 = vmatprep.subr.mxu0 0.0
    %644 = vmatpush2.msra.mxu0 0.0
    %645 = vmatprep.subr.mxu0 0.0
    %646 = vmatpush2.msra.mxu0 0.0
    %647 = vmatprep.subr.mxu0 0.0
    %648 = vmatpush2.msra.mxu0 0.0
    %649 = vmatprep.subr.mxu0 0.0
    %650 = vmatpush2.msra.mxu0 0.0
    %651 = vmatprep.subr.mxu0 0.0
    %652 = vmatpush2.msra.mxu0 0.0
    %653 = vmatprep.subr.mxu0 0.0
    %654 = vmatpush2.msra.mxu0 0.0
    %655 = vmatprep.subr.mxu0 0.0
    %656 = vmatpush2.msra.mxu0 0.0
    %657 = vmatprep.subr.mxu0 0.0
    %658 = vmatpush2.msra.mxu0 0.0
    %659 = vmatprep.mubr.f32.mxu0 0.0
    %v660 = vand.u32 %v274, 4294901760
    %661 = vmatmul.mubr.f32.gmra.mxu0 %v660
    %v662 = vpop.f32.mrf.mxu0
    %v663 = vadd.f32 %v585, %v662
    %v664 = vpop.f32.mrf.mxu0
    %v665 = vadd.f32 %v587, %v664
    %666 = vdwg.mxu0
    %667 = vmatprep.subr.mxu0 0.0
    %668 = vmatpush1.msra.mxu0 0.0
    %669 = vmatprep.subr.mxu0 0.0
    %670 = vmatpush1.msra.mxu0 0.0
    %671 = vmatprep.subr.mxu0 0.0
    %672 = vmatpush1.msra.mxu0 0.0
    %673 = vmatprep.subr.mxu0 0.0
    %674 = vmatpush1.msra.mxu0 0.0
    %675 = vmatprep.subr.mxu0 0.0
    %676 = vmatpush1.msra.mxu0 0.0
    %677 = vmatprep.subr.mxu0 0.0
    %678 = vmatpush1.msra.mxu0 0.0
    %679 = vmatprep.subr.mxu0 0.0
    %680 = vmatpush1.msra.mxu0 0.0
    %681 = vmatprep.subr.mxu0 0.0
    %682 = vmatpush1.msra.mxu0 0.0
    %683 = vmatprep.subr.mxu0 0.0
    %684 = vmatpush1.msra.mxu0 0.0
    %685 = vmatprep.subr.mxu0 0.0
    %686 = vmatpush1.msra.mxu0 0.0
    %687 = vmatprep.subr.mxu0 0.0
    %688 = vmatpush1.msra.mxu0 0.0
    %689 = vmatprep.subr.mxu0 0.0
    %690 = vmatpush1.msra.mxu0 0.0
    %691 = vmatprep.subr.mxu0 0.0
    %692 = vmatpush1.msra.mxu0 0.0
    %693 = vmatprep.subr.mxu0 0.0
    %694 = vmatpush1.msra.mxu0 0.0
    %695 = vmatprep.subr.mxu0 0.0
    %696 = vmatpush1.msra.mxu0 0.0
    %v697 = vand.u32 %v271, 4294901760
    %698 = vmatprep.subr.mxu0 %v697
    %v699 = vand.u32 %v270, 4294901760
    %700 = vmatpush1.msra.mxu0 %v699
    %701 = vmatprep.subr.mxu0 0.0
    %702 = vmatpush2.msra.mxu0 0.0
    %703 = vmatprep.subr.mxu0 0.0
    %704 = vmatpush2.msra.mxu0 0.0
    %705 = vmatprep.subr.mxu0 0.0
    %706 = vmatpush2.msra.mxu0 0.0
    %707 = vmatprep.subr.mxu0 0.0
    %708 = vmatpush2.msra.mxu0 0.0
    %709 = vmatprep.subr.mxu0 0.0
    %710 = vmatpush2.msra.mxu0 0.0
    %711 = vmatprep.subr.mxu0 0.0
    %712 = vmatpush2.msra.mxu0 0.0
    %713 = vmatprep.subr.mxu0 0.0
    %714 = vmatpush2.msra.mxu0 0.0
    %715 = vmatprep.subr.mxu0 0.0
    %716 = vmatpush2.msra.mxu0 0.0
    %717 = vmatprep.subr.mxu0 0.0
    %718 = vmatpush2.msra.mxu0 0.0
    %719 = vmatprep.subr.mxu0 0.0
    %720 = vmatpush2.msra.mxu0 0.0
    %721 = vmatprep.subr.mxu0 0.0
    %722 = vmatpush2.msra.mxu0 0.0
    %723 = vmatprep.subr.mxu0 0.0
    %724 = vmatpush2.msra.mxu0 0.0
    %725 = vmatprep.subr.mxu0 0.0
    %726 = vmatpush2.msra.mxu0 0.0
    %727 = vmatprep.subr.mxu0 0.0
    %728 = vmatpush2.msra.mxu0 0.0
    %729 = vmatprep.subr.mxu0 0.0
    %730 = vmatpush2.msra.mxu0 0.0
    %731 = vmatprep.subr.mxu0 0.0
    %732 = vmatpush2.msra.mxu0 0.0
    %733 = vmatprep.mubr.f32.mxu0 0.0
    %v734 = vand.u32 %v274, 4294901760
    %735 = vmatmul.mubr.f32.gmra.mxu0 %v734
    %v736 = vpop.f32.mrf.mxu0
    %v737 = vadd.f32 %v663, %v736
    %v738 = vpop.f32.mrf.mxu0
    %v739 = vadd.f32 %v665, %v738
    %740 = vdwg.mxu0
    %741 = vmatprep.subr.mxu0 0.0
    %742 = vmatpush1.msra.mxu0 0.0
    %743 = vmatprep.subr.mxu0 0.0
    %744 = vmatpush1.msra.mxu0 0.0
    %745 = vmatprep.subr.mxu0 0.0
    %746 = vmatpush1.msra.mxu0 0.0
    %747 = vmatprep.subr.mxu0 0.0
    %748 = vmatpush1.msra.mxu0 0.0
    %749 = vmatprep.subr.mxu0 0.0
    %750 = vmatpush1.msra.mxu0 0.0
    %751 = vmatprep.subr.mxu0 0.0
    %752 = vmatpush1.msra.mxu0 0.0
    %753 = vmatprep.subr.mxu0 0.0
    %754 = vmatpush1.msra.mxu0 0.0
    %755 = vmatprep.subr.mxu0 0.0
    %756 = vmatpush1.msra.mxu0 0.0
    %757 = vmatprep.subr.mxu0 0.0
    %758 = vmatpush1.msra.mxu0 0.0
    %759 = vmatprep.subr.mxu0 0.0
    %760 = vmatpush1.msra.mxu0 0.0
    %761 = vmatprep.subr.mxu0 0.0
    %762 = vmatpush1.msra.mxu0 0.0
    %763 = vmatprep.subr.mxu0 0.0
    %764 = vmatpush1.msra.mxu0 0.0
    %765 = vmatprep.subr.mxu0 0.0
    %766 = vmatpush1.msra.mxu0 0.0
    %767 = vmatprep.subr.mxu0 0.0
    %768 = vmatpush1.msra.mxu0 0.0
    %769 = vmatprep.subr.mxu0 0.0
    %770 = vmatpush1.msra.mxu0 0.0
    %v771 = vand.u32 %v70, 4294901760
    %772 = vmatprep.subr.mxu0 %v771
    %v773 = vand.u32 %v69, 4294901760
    %774 = vmatpush1.msra.mxu0 %v773
    %775 = vmatprep.subr.mxu0 0.0
    %776 = vmatpush2.msra.mxu0 0.0
    %777 = vmatprep.subr.mxu0 0.0
    %778 = vmatpush2.msra.mxu0 0.0
    %779 = vmatprep.subr.mxu0 0.0
    %780 = vmatpush2.msra.mxu0 0.0
    %781 = vmatprep.subr.mxu0 0.0
    %782 = vmatpush2.msra.mxu0 0.0
    %783 = vmatprep.subr.mxu0 0.0
    %784 = vmatpush2.msra.mxu0 0.0
    %785 = vmatprep.subr.mxu0 0.0
    %786 = vmatpush2.msra.mxu0 0.0
    %787 = vmatprep.subr.mxu0 0.0
    %788 = vmatpush2.msra.mxu0 0.0
    %789 = vmatprep.subr.mxu0 0.0
    %790 = vmatpush2.msra.mxu0 0.0
    %791 = vmatprep.subr.mxu0 0.0
    %792 = vmatpush2.msra.mxu0 0.0
    %793 = vmatprep.subr.mxu0 0.0
    %794 = vmatpush2.msra.mxu0 0.0
    %795 = vmatprep.subr.mxu0 0.0
    %796 = vmatpush2.msra.mxu0 0.0
    %797 = vmatprep.subr.mxu0 0.0
    %798 = vmatpush2.msra.mxu0 0.0
    %799 = vmatprep.subr.mxu0 0.0
    %800 = vmatpush2.msra.mxu0 0.0
    %801 = vmatprep.subr.mxu0 0.0
    %802 = vmatpush2.msra.mxu0 0.0
    %803 = vmatprep.subr.mxu0 0.0
    %804 = vmatpush2.msra.mxu0 0.0
    %805 = vmatprep.subr.mxu0 0.0
    %806 = vmatpush2.msra.mxu0 0.0
    %807 = vmatprep.mubr.f32.mxu0 0.0
    %v808 = vand.u32 %v274, 4294901760
    %v809 = vsub.f32 %v274, %v808
    %v810 = vand.u32 %v809, 4294901760
    %v811 = vsub.f32 %v809, %v810
    %v812 = vand.u32 %v811, 4294901760
    %813 = vmatmul.mubr.f32.gmra.mxu0 %v812
    %v814 = vpop.f32.mrf.mxu0
    %v815 = vadd.f32 0.0, %v814
    %v816 = vpop.f32.mrf.mxu0
    %v817 = vadd.f32 0.0, %v816
    %818 = vdwg.mxu0
    %819 = vmatprep.subr.mxu0 0.0
    %820 = vmatpush1.msra.mxu0 0.0
    %821 = vmatprep.subr.mxu0 0.0
    %822 = vmatpush1.msra.mxu0 0.0
    %823 = vmatprep.subr.mxu0 0.0
    %824 = vmatpush1.msra.mxu0 0.0
    %825 = vmatprep.subr.mxu0 0.0
    %826 = vmatpush1.msra.mxu0 0.0
    %827 = vmatprep.subr.mxu0 0.0
    %828 = vmatpush1.msra.mxu0 0.0
    %829 = vmatprep.subr.mxu0 0.0
    %830 = vmatpush1.msra.mxu0 0.0
    %831 = vmatprep.subr.mxu0 0.0
    %832 = vmatpush1.msra.mxu0 0.0
    %833 = vmatprep.subr.mxu0 0.0
    %834 = vmatpush1.msra.mxu0 0.0
    %835 = vmatprep.subr.mxu0 0.0
    %836 = vmatpush1.msra.mxu0 0.0
    %837 = vmatprep.subr.mxu0 0.0
    %838 = vmatpush1.msra.mxu0 0.0
    %839 = vmatprep.subr.mxu0 0.0
    %840 = vmatpush1.msra.mxu0 0.0
    %841 = vmatprep.subr.mxu0 0.0
    %842 = vmatpush1.msra.mxu0 0.0
    %843 = vmatprep.subr.mxu0 0.0
    %844 = vmatpush1.msra.mxu0 0.0
    %845 = vmatprep.subr.mxu0 0.0
    %846 = vmatpush1.msra.mxu0 0.0
    %847 = vmatprep.subr.mxu0 0.0
    %848 = vmatpush1.msra.mxu0 0.0
    %v849 = vand.u32 %v70, 4294901760
    %v850 = vsub.f32 %v70, %v849
    %v851 = vand.u32 %v850, 4294901760
    %v852 = vsub.f32 %v850, %v851
    %v853 = vand.u32 %v852, 4294901760
    %854 = vmatprep.subr.mxu0 %v853
    %v855 = vand.u32 %v69, 4294901760
    %v856 = vsub.f32 %v69, %v855
    %v857 = vand.u32 %v856, 4294901760
    %v858 = vsub.f32 %v856, %v857
    %v859 = vand.u32 %v858, 4294901760
    %860 = vmatpush1.msra.mxu0 %v859
    %861 = vmatprep.subr.mxu0 0.0
    %862 = vmatpush2.msra.mxu0 0.0
    %863 = vmatprep.subr.mxu0 0.0
    %864 = vmatpush2.msra.mxu0 0.0
    %865 = vmatprep.subr.mxu0 0.0
    %866 = vmatpush2.msra.mxu0 0.0
    %867 = vmatprep.subr.mxu0 0.0
    %868 = vmatpush2.msra.mxu0 0.0
    %869 = vmatprep.subr.mxu0 0.0
    %870 = vmatpush2.msra.mxu0 0.0
    %871 = vmatprep.subr.mxu0 0.0
    %872 = vmatpush2.msra.mxu0 0.0
    %873 = vmatprep.subr.mxu0 0.0
    %874 = vmatpush2.msra.mxu0 0.0
    %875 = vmatprep.subr.mxu0 0.0
    %876 = vmatpush2.msra.mxu0 0.0
    %877 = vmatprep.subr.mxu0 0.0
    %878 = vmatpush2.msra.mxu0 0.0
    %879 = vmatprep.subr.mxu0 0.0
    %880 = vmatpush2.msra.mxu0 0.0
    %881 = vmatprep.subr.mxu0 0.0
    %882 = vmatpush2.msra.mxu0 0.0
    %883 = vmatprep.subr.mxu0 0.0
    %884 = vmatpush2.msra.mxu0 0.0
    %885 = vmatprep.subr.mxu0 0.0
    %886 = vmatpush2.msra.mxu0 0.0
    %887 = vmatprep.subr.mxu0 0.0
    %888 = vmatpush2.msra.mxu0 0.0
    %889 = vmatprep.subr.mxu0 0.0
    %890 = vmatpush2.msra.mxu0 0.0
    %891 = vmatprep.subr.mxu0 0.0
    %892 = vmatpush2.msra.mxu0 0.0
    %893 = vmatprep.mubr.f32.mxu0 0.0
    %v894 = vand.u32 %v274, 4294901760
    %895 = vmatmul.mubr.f32.gmra.mxu0 %v894
    %v896 = vpop.f32.mrf.mxu0
    %v897 = vadd.f32 %v815, %v896
    %v898 = vpop.f32.mrf.mxu0
    %v899 = vadd.f32 %v817, %v898
    %900 = vdwg.mxu0
    %901 = vmatprep.subr.mxu0 0.0
    %902 = vmatpush1.msra.mxu0 0.0
    %903 = vmatprep.subr.mxu0 0.0
    %904 = vmatpush1.msra.mxu0 0.0
    %905 = vmatprep.subr.mxu0 0.0
    %906 = vmatpush1.msra.mxu0 0.0
    %907 = vmatprep.subr.mxu0 0.0
    %908 = vmatpush1.msra.mxu0 0.0
    %909 = vmatprep.subr.mxu0 0.0
    %910 = vmatpush1.msra.mxu0 0.0
    %911 = vmatprep.subr.mxu0 0.0
    %912 = vmatpush1.msra.mxu0 0.0
    %913 = vmatprep.subr.mxu0 0.0
    %914 = vmatpush1.msra.mxu0 0.0
    %915 = vmatprep.subr.mxu0 0.0
    %916 = vmatpush1.msra.mxu0 0.0
    %917 = vmatprep.subr.mxu0 0.0
    %918 = vmatpush1.msra.mxu0 0.0
    %919 = vmatprep.subr.mxu0 0.0
    %920 = vmatpush1.msra.mxu0 0.0
    %921 = vmatprep.subr.mxu0 0.0
    %922 = vmatpush1.msra.mxu0 0.0
    %923 = vmatprep.subr.mxu0 0.0
    %924 = vmatpush1.msra.mxu0 0.0
    %925 = vmatprep.subr.mxu0 0.0
    %926 = vmatpush1.msra.mxu0 0.0
    %927 = vmatprep.subr.mxu0 0.0
    %928 = vmatpush1.msra.mxu0 0.0
    %929 = vmatprep.subr.mxu0 0.0
    %930 = vmatpush1.msra.mxu0 0.0
    %v931 = vand.u32 %v70, 4294901760
    %v932 = vsub.f32 %v70, %v931
    %933 = vmatprep.subr.mxu0 %v932
    %v934 = vand.u32 %v69, 4294901760
    %v935 = vsub.f32 %v69, %v934
    %936 = vmatpush1.msra.mxu0 %v935
    %937 = vmatprep.subr.mxu0 0.0
    %938 = vmatpush2.msra.mxu0 0.0
    %939 = vmatprep.subr.mxu0 0.0
    %940 = vmatpush2.msra.mxu0 0.0
    %941 = vmatprep.subr.mxu0 0.0
    %942 = vmatpush2.msra.mxu0 0.0
    %943 = vmatprep.subr.mxu0 0.0
    %944 = vmatpush2.msra.mxu0 0.0
    %945 = vmatprep.subr.mxu0 0.0
    %946 = vmatpush2.msra.mxu0 0.0
    %947 = vmatprep.subr.mxu0 0.0
    %948 = vmatpush2.msra.mxu0 0.0
    %949 = vmatprep.subr.mxu0 0.0
    %950 = vmatpush2.msra.mxu0 0.0
    %951 = vmatprep.subr.mxu0 0.0
    %952 = vmatpush2.msra.mxu0 0.0
    %953 = vmatprep.subr.mxu0 0.0
    %954 = vmatpush2.msra.mxu0 0.0
    %955 = vmatprep.subr.mxu0 0.0
    %956 = vmatpush2.msra.mxu0 0.0
    %957 = vmatprep.subr.mxu0 0.0
    %958 = vmatpush2.msra.mxu0 0.0
    %959 = vmatprep.subr.mxu0 0.0
    %960 = vmatpush2.msra.mxu0 0.0
    %961 = vmatprep.subr.mxu0 0.0
    %962 = vmatpush2.msra.mxu0 0.0
    %963 = vmatprep.subr.mxu0 0.0
    %964 = vmatpush2.msra.mxu0 0.0
    %965 = vmatprep.subr.mxu0 0.0
    %966 = vmatpush2.msra.mxu0 0.0
    %967 = vmatprep.subr.mxu0 0.0
    %968 = vmatpush2.msra.mxu0 0.0
    %969 = vmatprep.mubr.f32.mxu0 0.0
    %v970 = vand.u32 %v274, 4294901760
    %v971 = vsub.f32 %v274, %v970
    %972 = vmatmul.mubr.f32.gmra.mxu0 %v971
    %v973 = vpop.f32.mrf.mxu0
    %v974 = vadd.f32 %v897, %v973
    %v975 = vpop.f32.mrf.mxu0
    %v976 = vadd.f32 %v899, %v975
    %977 = vdwg.mxu0
    %978 = vmatprep.subr.mxu0 0.0
    %979 = vmatpush1.msra.mxu0 0.0
    %980 = vmatprep.subr.mxu0 0.0
    %981 = vmatpush1.msra.mxu0 0.0
    %982 = vmatprep.subr.mxu0 0.0
    %983 = vmatpush1.msra.mxu0 0.0
    %984 = vmatprep.subr.mxu0 0.0
    %985 = vmatpush1.msra.mxu0 0.0
    %986 = vmatprep.subr.mxu0 0.0
    %987 = vmatpush1.msra.mxu0 0.0
    %988 = vmatprep.subr.mxu0 0.0
    %989 = vmatpush1.msra.mxu0 0.0
    %990 = vmatprep.subr.mxu0 0.0
    %991 = vmatpush1.msra.mxu0 0.0
    %992 = vmatprep.subr.mxu0 0.0
    %993 = vmatpush1.msra.mxu0 0.0
    %994 = vmatprep.subr.mxu0 0.0
    %995 = vmatpush1.msra.mxu0 0.0
    %996 = vmatprep.subr.mxu0 0.0
    %997 = vmatpush1.msra.mxu0 0.0
    %998 = vmatprep.subr.mxu0 0.0
    %999 = vmatpush1.msra.mxu0 0.0
    %1000 = vmatprep.subr.mxu0 0.0
    %1001 = vmatpush1.msra.mxu0 0.0
    %1002 = vmatprep.subr.mxu0 0.0
    %1003 = vmatpush1.msra.mxu0 0.0
    %1004 = vmatprep.subr.mxu0 0.0
    %1005 = vmatpush1.msra.mxu0 0.0
    %1006 = vmatprep.subr.mxu0 0.0
    %1007 = vmatpush1.msra.mxu0 0.0
    %v1008 = vand.u32 %v70, 4294901760
    %1009 = vmatprep.subr.mxu0 %v1008
    %v1010 = vand.u32 %v69, 4294901760
    %1011 = vmatpush1.msra.mxu0 %v1010
    %1012 = vmatprep.subr.mxu0 0.0
    %1013 = vmatpush2.msra.mxu0 0.0
    %1014 = vmatprep.subr.mxu0 0.0
    %1015 = vmatpush2.msra.mxu0 0.0
    %1016 = vmatprep.subr.mxu0 0.0
    %1017 = vmatpush2.msra.mxu0 0.0
    %1018 = vmatprep.subr.mxu0 0.0
    %1019 = vmatpush2.msra.mxu0 0.0
    %1020 = vmatprep.subr.mxu0 0.0
    %1021 = vmatpush2.msra.mxu0 0.0
    %1022 = vmatprep.subr.mxu0 0.0
    %1023 = vmatpush2.msra.mxu0 0.0
    %1024 = vmatprep.subr.mxu0 0.0
    %1025 = vmatpush2.msra.mxu0 0.0
    %1026 = vmatprep.subr.mxu0 0.0
    %1027 = vmatpush2.msra.mxu0 0.0
    %1028 = vmatprep.subr.mxu0 0.0
    %1029 = vmatpush2.msra.mxu0 0.0
    %1030 = vmatprep.subr.mxu0 0.0
    %1031 = vmatpush2.msra.mxu0 0.0
    %1032 = vmatprep.subr.mxu0 0.0
    %1033 = vmatpush2.msra.mxu0 0.0
    %1034 = vmatprep.subr.mxu0 0.0
    %1035 = vmatpush2.msra.mxu0 0.0
    %1036 = vmatprep.subr.mxu0 0.0
    %1037 = vmatpush2.msra.mxu0 0.0
    %1038 = vmatprep.subr.mxu0 0.0
    %1039 = vmatpush2.msra.mxu0 0.0
    %1040 = vmatprep.subr.mxu0 0.0
    %1041 = vmatpush2.msra.mxu0 0.0
    %1042 = vmatprep.subr.mxu0 0.0
    %1043 = vmatpush2.msra.mxu0 0.0
    %1044 = vmatprep.mubr.f32.mxu0 0.0
    %v1045 = vand.u32 %v274, 4294901760
    %v1046 = vsub.f32 %v274, %v1045
    %v1047 = vand.u32 %v1046, 4294901760
    %1048 = vmatmul.mubr.f32.gmra.mxu0 %v1047
    %v1049 = vpop.f32.mrf.mxu0
    %v1050 = vadd.f32 %v974, %v1049
    %v1051 = vpop.f32.mrf.mxu0
    %v1052 = vadd.f32 %v976, %v1051
    %1053 = vdwg.mxu0
    %1054 = vmatprep.subr.mxu0 0.0
    %1055 = vmatpush1.msra.mxu0 0.0
    %1056 = vmatprep.subr.mxu0 0.0
    %1057 = vmatpush1.msra.mxu0 0.0
    %1058 = vmatprep.subr.mxu0 0.0
    %1059 = vmatpush1.msra.mxu0 0.0
    %1060 = vmatprep.subr.mxu0 0.0
    %1061 = vmatpush1.msra.mxu0 0.0
    %1062 = vmatprep.subr.mxu0 0.0
    %1063 = vmatpush1.msra.mxu0 0.0
    %1064 = vmatprep.subr.mxu0 0.0
    %1065 = vmatpush1.msra.mxu0 0.0
    %1066 = vmatprep.subr.mxu0 0.0
    %1067 = vmatpush1.msra.mxu0 0.0
    %1068 = vmatprep.subr.mxu0 0.0
    %1069 = vmatpush1.msra.mxu0 0.0
    %1070 = vmatprep.subr.mxu0 0.0
    %1071 = vmatpush1.msra.mxu0 0.0
    %1072 = vmatprep.subr.mxu0 0.0
    %1073 = vmatpush1.msra.mxu0 0.0
    %1074 = vmatprep.subr.mxu0 0.0
    %1075 = vmatpush1.msra.mxu0 0.0
    %1076 = vmatprep.subr.mxu0 0.0
    %1077 = vmatpush1.msra.mxu0 0.0
    %1078 = vmatprep.subr.mxu0 0.0
    %1079 = vmatpush1.msra.mxu0 0.0
    %1080 = vmatprep.subr.mxu0 0.0
    %1081 = vmatpush1.msra.mxu0 0.0
    %1082 = vmatprep.subr.mxu0 0.0
    %1083 = vmatpush1.msra.mxu0 0.0
    %v1084 = vand.u32 %v70, 4294901760
    %v1085 = vsub.f32 %v70, %v1084
    %v1086 = vand.u32 %v1085, 4294901760
    %1087 = vmatprep.subr.mxu0 %v1086
    %v1088 = vand.u32 %v69, 4294901760
    %v1089 = vsub.f32 %v69, %v1088
    %v1090 = vand.u32 %v1089, 4294901760
    %1091 = vmatpush1.msra.mxu0 %v1090
    %1092 = vmatprep.subr.mxu0 0.0
    %1093 = vmatpush2.msra.mxu0 0.0
    %1094 = vmatprep.subr.mxu0 0.0
    %1095 = vmatpush2.msra.mxu0 0.0
    %1096 = vmatprep.subr.mxu0 0.0
    %1097 = vmatpush2.msra.mxu0 0.0
    %1098 = vmatprep.subr.mxu0 0.0
    %1099 = vmatpush2.msra.mxu0 0.0
    %1100 = vmatprep.subr.mxu0 0.0
    %1101 = vmatpush2.msra.mxu0 0.0
    %1102 = vmatprep.subr.mxu0 0.0
    %1103 = vmatpush2.msra.mxu0 0.0
    %1104 = vmatprep.subr.mxu0 0.0
    %1105 = vmatpush2.msra.mxu0 0.0
    %1106 = vmatprep.subr.mxu0 0.0
    %1107 = vmatpush2.msra.mxu0 0.0
    %1108 = vmatprep.subr.mxu0 0.0
    %1109 = vmatpush2.msra.mxu0 0.0
    %1110 = vmatprep.subr.mxu0 0.0
    %1111 = vmatpush2.msra.mxu0 0.0
    %1112 = vmatprep.subr.mxu0 0.0
    %1113 = vmatpush2.msra.mxu0 0.0
    %1114 = vmatprep.subr.mxu0 0.0
    %1115 = vmatpush2.msra.mxu0 0.0
    %1116 = vmatprep.subr.mxu0 0.0
    %1117 = vmatpush2.msra.mxu0 0.0
    %1118 = vmatprep.subr.mxu0 0.0
    %1119 = vmatpush2.msra.mxu0 0.0
    %1120 = vmatprep.subr.mxu0 0.0
    %1121 = vmatpush2.msra.mxu0 0.0
    %1122 = vmatprep.subr.mxu0 0.0
    %1123 = vmatpush2.msra.mxu0 0.0
    %1124 = vmatprep.mubr.f32.mxu0 0.0
    %v1125 = vand.u32 %v274, 4294901760
    %1126 = vmatmul.mubr.f32.gmra.mxu0 %v1125
    %v1127 = vpop.f32.mrf.mxu0
    %v1128 = vadd.f32 %v1050, %v1127
    %v1129 = vpop.f32.mrf.mxu0
    %v1130 = vadd.f32 %v1052, %v1129
    %1131 = vdwg.mxu0
    %1132 = vmatprep.subr.mxu0 0.0
    %1133 = vmatpush1.msra.mxu0 0.0
    %1134 = vmatprep.subr.mxu0 0.0
    %1135 = vmatpush1.msra.mxu0 0.0
    %1136 = vmatprep.subr.mxu0 0.0
    %1137 = vmatpush1.msra.mxu0 0.0
    %1138 = vmatprep.subr.mxu0 0.0
    %1139 = vmatpush1.msra.mxu0 0.0
    %1140 = vmatprep.subr.mxu0 0.0
    %1141 = vmatpush1.msra.mxu0 0.0
    %1142 = vmatprep.subr.mxu0 0.0
    %1143 = vmatpush1.msra.mxu0 0.0
    %1144 = vmatprep.subr.mxu0 0.0
    %1145 = vmatpush1.msra.mxu0 0.0
    %1146 = vmatprep.subr.mxu0 0.0
    %1147 = vmatpush1.msra.mxu0 0.0
    %1148 = vmatprep.subr.mxu0 0.0
    %1149 = vmatpush1.msra.mxu0 0.0
    %1150 = vmatprep.subr.mxu0 0.0
    %1151 = vmatpush1.msra.mxu0 0.0
    %1152 = vmatprep.subr.mxu0 0.0
    %1153 = vmatpush1.msra.mxu0 0.0
    %1154 = vmatprep.subr.mxu0 0.0
    %1155 = vmatpush1.msra.mxu0 0.0
    %1156 = vmatprep.subr.mxu0 0.0
    %1157 = vmatpush1.msra.mxu0 0.0
    %1158 = vmatprep.subr.mxu0 0.0
    %1159 = vmatpush1.msra.mxu0 0.0
    %1160 = vmatprep.subr.mxu0 0.0
    %1161 = vmatpush1.msra.mxu0 0.0
    %v1162 = vand.u32 %v70, 4294901760
    %1163 = vmatprep.subr.mxu0 %v1162
    %v1164 = vand.u32 %v69, 4294901760
    %1165 = vmatpush1.msra.mxu0 %v1164
    %1166 = vmatprep.subr.mxu0 0.0
    %1167 = vmatpush2.msra.mxu0 0.0
    %1168 = vmatprep.subr.mxu0 0.0
    %1169 = vmatpush2.msra.mxu0 0.0
    %1170 = vmatprep.subr.mxu0 0.0
    %1171 = vmatpush2.msra.mxu0 0.0
    %1172 = vmatprep.subr.mxu0 0.0
    %1173 = vmatpush2.msra.mxu0 0.0
    %1174 = vmatprep.subr.mxu0 0.0
    %1175 = vmatpush2.msra.mxu0 0.0
    %1176 = vmatprep.subr.mxu0 0.0
    %1177 = vmatpush2.msra.mxu0 0.0
    %1178 = vmatprep.subr.mxu0 0.0
    %1179 = vmatpush2.msra.mxu0 0.0
    %1180 = vmatprep.subr.mxu0 0.0
    %1181 = vmatpush2.msra.mxu0 0.0
    %1182 = vmatprep.subr.mxu0 0.0
    %1183 = vmatpush2.msra.mxu0 0.0
    %1184 = vmatprep.subr.mxu0 0.0
    %1185 = vmatpush2.msra.mxu0 0.0
    %1186 = vmatprep.subr.mxu0 0.0
    %1187 = vmatpush2.msra.mxu0 0.0
    %1188 = vmatprep.subr.mxu0 0.0
    %1189 = vmatpush2.msra.mxu0 0.0
    %1190 = vmatprep.subr.mxu0 0.0
    %1191 = vmatpush2.msra.mxu0 0.0
    %1192 = vmatprep.subr.mxu0 0.0
    %1193 = vmatpush2.msra.mxu0 0.0
    %1194 = vmatprep.subr.mxu0 0.0
    %1195 = vmatpush2.msra.mxu0 0.0
    %1196 = vmatprep.subr.mxu0 0.0
    %1197 = vmatpush2.msra.mxu0 0.0
    %1198 = vmatprep.mubr.f32.mxu0 0.0
    %v1199 = vand.u32 %v274, 4294901760
    %1200 = vmatmul.mubr.f32.gmra.mxu0 %v1199
    %v1201 = vpop.f32.mrf.mxu0
    %v1202 = vadd.f32 %v1128, %v1201
    %v1203 = vpop.f32.mrf.mxu0
    %v1204 = vadd.f32 %v1130, %v1203
    %1205 = vdwg.mxu0
    %v1206 = vmin.f32 %v737, %v739
    %1207 = vmin.xlane.f32.xlu0 %v1206
    %v1208 = vpop.xlane.xlu0 %1207
    %v1209 = vmax.f32 %v737, %v739
    %1210 = vmax.xlane.f32.xlu0 %v1209
    %v1211 = vpop.xlane.xlu0 %1210
    %v1212 = vsub.f32 %v737, %v1208
    %v1213 = vsub.f32 %v739, %v1208
    %v1214 = vsub.f32 %v1211, %v1208
    %v1215 = vadd.f32 %v1214, 1e-08
    %v1216 = vrcp.pop %v1215
    %v1217 = vmul.f32 %v1212, %v1216
    %v1218 = vmul.f32 %v1213, %v1216
    %v1219 = vmul.f32 %v1217, %v1217
    %v1220 = vmul.f32 %v1218, %v1218
    %vm1221 = vcmp.gt.f32.partialorder %v1219, 0.9
    %vm1222 = vcmp.gt.f32.partialorder %v1220, 0.9
    %v1223 = vsel %vm1221, 1, 0
    %v1224 = vsel %vm1222, 1, 0
    %v1225 = vcvt.s32.f32 %v1223
    %v1226 = vcvt.s32.f32 %v1224
    %v1227 = vmul.f32 %v1219, 15.0
    %v1228 = vmul.f32 %v1220, 15.0
    %v1229 = vround.ne.pseudo %v1227
    %v1230 = vround.ne.pseudo %v1228
    %v1231 = vmax.f32 %v1229, 0.0
    %v1232 = vmax.f32 %v1230, 0.0
    %v1233 = vmul.f32 %v1231, %v1225
    %v1234 = vmul.f32 %v1232, %v1226
    %v1235 = vadd.f32 %v1233, 1.0
    %v1236 = vadd.f32 %v1234, 1.0
    %vm1237 = vcmp.gt.f32.partialorder %v1235, 1.0
    %vm1238 = vcmp.gt.f32.partialorder %v1236, 1.0
    %v1239 = vsel %vm1237, 1, 0
    %v1240 = vsel %vm1238, 1, 0
    %v1241 = vcvt.s32.f32 %v1239
    %v1242 = vcvt.s32.f32 %v1240
    %v1243 = vxor.u32 %v737, 2147483648
    %v1244 = vxor.u32 %v739, 2147483648
    %v1245 = vmul.f32 %v1243, 1.442695
    %v1246 = vpow.pop %v1245
    %v1247 = vmul.f32 %v1244, 1.442695
    %v1248 = vpow.pop %v1247
    %v1249 = vadd.f32 %v1246, 1.0
    %v1250 = vadd.f32 %v1248, 1.0
    %v1251 = vrcp.pop %v1249
    %v1252 = vmul.f32 1.0, %v1251
    %v1253 = vrcp.pop %v1250
    %v1254 = vmul.f32 1.0, %v1253
    %v1255 = vmax.f32 %v1202, 1e-24
    %v1256 = vmax.f32 %v1204, 1e-24
    %v1257 = vrsqrt.pop %v1255
    %v1258 = vrsqrt.pop %v1256
    %v1259 = vmul.f32 %v67, %v1257
    %v1260 = vmul.f32 %v68, %v1258
    %1261 = vrot.lane.b32.xlu0 %v1259, 34
    %v1262 = vpop.permute.xlu0 %1261
    %1263 = vrot.lane.b32.xlu0 %v1260, 34
    %v1264 = vpop.permute.xlu0 %1263
    %vm1265 = vcmp.lt.s32.totalorder %v93, 34
    %v1266 = vsel %vm1265, %v1262, %v1264
    %v1267 = vsel %vm1265, %v1264, %v1262
    %v1268 = vlaneseq
    %v1269 = vshrl.u32 %v1268, 7
    %v1270 = vsub.s32 0, %v1269
    %v1271 = vrot.slane %v75, %v1270
    %v1272 = vlaneseq
    %v1273 = vshrl.u32 %v1272, 7
    %v1274 = vsub.s32 0, %v1273
    %v1275 = vrot.slane %v76, %v1274
    %v1276 = vmul.f32 %v1267, %v1271
    %v1277 = vmul.f32 %v1266, %v1275
    %1278 = vst [vmem:[#allocation2] sm:$0xff] %v1276
    %1279 = vst [vmem:[#allocation2 + $0x8] sm:$0xff] %v1277
    %1280 = vrot.lane.b32.xlu0 %v1259, 33
    %v1281 = vpop.permute.xlu0 %1280
    %1282 = vrot.lane.b32.xlu0 %v1260, 33
    %v1283 = vpop.permute.xlu0 %1282
    %vm1284 = vcmp.lt.s32.totalorder %v93, 33
    %v1285 = vsel %vm1284, %v1281, %v1283
    %v1286 = vsel %vm1284, %v1283, %v1281
    %v1287 = vlaneseq
    %v1288 = vshrl.u32 %v1287, 7
    %v1289 = vsub.s32 1, %v1288
    %v1290 = vrot.slane %v75, %v1289
    %v1291 = vlaneseq
    %v1292 = vshrl.u32 %v1291, 7
    %v1293 = vsub.s32 1, %v1292
    %v1294 = vrot.slane %v76, %v1293
    %v1295 = vmul.f32 %v1286, %v1290
    %v1296 = vmul.f32 %v1285, %v1294
    %1297 = vst [vmem:[#allocation2 + $0x10] sm:$0xff] %v1295
    %1298 = vst [vmem:[#allocation2 + $0x18] sm:$0xff] %v1296
    %1299 = vrot.lane.b32.xlu0 %v1259, 32
    %v1300 = vpop.permute.xlu0 %1299
    %1301 = vrot.lane.b32.xlu0 %v1260, 32
    %v1302 = vpop.permute.xlu0 %1301
    %v1303 = vsel %vm182, %v1300, %v1302
    %v1304 = vsel %vm182, %v1302, %v1300
    %v1305 = vlaneseq
    %v1306 = vshrl.u32 %v1305, 7
    %v1307 = vsub.s32 2, %v1306
    %v1308 = vrot.slane %v75, %v1307
    %v1309 = vlaneseq
    %v1310 = vshrl.u32 %v1309, 7
    %v1311 = vsub.s32 2, %v1310
    %v1312 = vrot.slane %v76, %v1311
    %v1313 = vmul.f32 %v1304, %v1308
    %v1314 = vmul.f32 %v1303, %v1312
    %1315 = vst [vmem:[#allocation2 + $0x20] sm:$0xff] %v1313
    %1316 = vst [vmem:[#allocation2 + $0x28] sm:$0xff] %v1314
    %1317 = vrot.lane.b32.xlu0 %v1259, 31
    %v1318 = vpop.permute.xlu0 %1317
    %1319 = vrot.lane.b32.xlu0 %v1260, 31
    %v1320 = vpop.permute.xlu0 %1319
    %vm1321 = vcmp.lt.s32.totalorder %v93, 31
    %v1322 = vsel %vm1321, %v1318, %v1320
    %v1323 = vsel %vm1321, %v1320, %v1318
    %v1324 = vlaneseq
    %v1325 = vshrl.u32 %v1324, 7
    %v1326 = vsub.s32 3, %v1325
    %v1327 = vrot.slane %v75, %v1326
    %v1328 = vlaneseq
    %v1329 = vshrl.u32 %v1328, 7
    %v1330 = vsub.s32 3, %v1329
    %v1331 = vrot.slane %v76, %v1330
    %v1332 = vmul.f32 %v1323, %v1327
    %v1333 = vmul.f32 %v1322, %v1331
    %1334 = vst [vmem:[#allocation2 + $0x30] sm:$0xff] %v1332
    %1335 = vst [vmem:[#allocation2 + $0x38] sm:$0xff] %v1333
    %1336 = vrot.lane.b32.xlu0 %v1259, 30
    %v1337 = vpop.permute.xlu0 %1336
    %1338 = vrot.lane.b32.xlu0 %v1260, 30
    %v1339 = vpop.permute.xlu0 %1338
    %vm1340 = vcmp.lt.s32.totalorder %v93, 30
    %v1341 = vsel %vm1340, %v1337, %v1339
    %v1342 = vsel %vm1340, %v1339, %v1337
    %v1343 = vlaneseq
    %v1344 = vshrl.u32 %v1343, 7
    %v1345 = vsub.s32 4, %v1344
    %v1346 = vrot.slane %v75, %v1345
    %v1347 = vlaneseq
    %v1348 = vshrl.u32 %v1347, 7
    %v1349 = vsub.s32 4, %v1348
    %v1350 = vrot.slane %v76, %v1349
    %v1351 = vmul.f32 %v1342, %v1346
    %v1352 = vmul.f32 %v1341, %v1350
    %1353 = vst [vmem:[#allocation2 + $0x40] sm:$0xff] %v1351
    %1354 = vst [vmem:[#allocation2 + $0x48] sm:$0xff] %v1352
    %1355 = vrot.lane.b32.xlu0 %v1259, 18
    %v1356 = vpop.permute.xlu0 %1355
    %1357 = vrot.lane.b32.xlu0 %v1260, 18
    %v1358 = vpop.permute.xlu0 %1357
    %vm1359 = vcmp.lt.s32.totalorder %v93, 18
    %v1360 = vsel %vm1359, %v1356, %v1358
    %v1361 = vsel %vm1359, %v1358, %v1356
    %v1362 = vlaneseq
    %v1363 = vshrl.u32 %v1362, 7
    %v1364 = vsub.s32 5, %v1363
    %v1365 = vrot.slane %v75, %v1364
    %v1366 = vlaneseq
    %v1367 = vshrl.u32 %v1366, 7
    %v1368 = vsub.s32 5, %v1367
    %v1369 = vrot.slane %v76, %v1368
    %v1370 = vmul.f32 %v1361, %v1365
    %v1371 = vmul.f32 %v1360, %v1369
    %1372 = vst [vmem:[#allocation2 + $0x50] sm:$0xff] %v1370
    %1373 = vst [vmem:[#allocation2 + $0x58] sm:$0xff] %v1371
    %1374 = vrot.lane.b32.xlu0 %v1259, 17
    %v1375 = vpop.permute.xlu0 %1374
    %1376 = vrot.lane.b32.xlu0 %v1260, 17
    %v1377 = vpop.permute.xlu0 %1376
    %vm1378 = vcmp.lt.s32.totalorder %v93, 17
    %v1379 = vsel %vm1378, %v1375, %v1377
    %v1380 = vsel %vm1378, %v1377, %v1375
    %v1381 = vlaneseq
    %v1382 = vshrl.u32 %v1381, 7
    %v1383 = vsub.s32 6, %v1382
    %v1384 = vrot.slane %v75, %v1383
    %v1385 = vlaneseq
    %v1386 = vshrl.u32 %v1385, 7
    %v1387 = vsub.s32 6, %v1386
    %v1388 = vrot.slane %v76, %v1387
    %v1389 = vmul.f32 %v1380, %v1384
    %v1390 = vmul.f32 %v1379, %v1388
    %1391 = vst [vmem:[#allocation2 + $0x60] sm:$0xff] %v1389
    %1392 = vst [vmem:[#allocation2 + $0x68] sm:$0xff] %v1390
    %1393 = vrot.lane.b32.xlu0 %v1259, 16
    %v1394 = vpop.permute.xlu0 %1393
    %1395 = vrot.lane.b32.xlu0 %v1260, 16
    %v1396 = vpop.permute.xlu0 %1395
    %v1397 = vsel %vm201, %v1394, %v1396
    %v1398 = vsel %vm201, %v1396, %v1394
    %v1399 = vlaneseq
    %v1400 = vshrl.u32 %v1399, 7
    %v1401 = vsub.s32 7, %v1400
    %v1402 = vrot.slane %v75, %v1401
    %v1403 = vlaneseq
    %v1404 = vshrl.u32 %v1403, 7
    %v1405 = vsub.s32 7, %v1404
    %v1406 = vrot.slane %v76, %v1405
    %v1407 = vmul.f32 %v1398, %v1402
    %v1408 = vmul.f32 %v1397, %v1406
    %1409 = vst [vmem:[#allocation2 + $0x70] sm:$0xff] %v1407
    %1410 = vst [vmem:[#allocation2 + $0x78] sm:$0xff] %v1408
    %1411 = vrot.lane.b32.xlu0 %v1259, 15
    %v1412 = vpop.permute.xlu0 %1411
    %1413 = vrot.lane.b32.xlu0 %v1260, 15
    %v1414 = vpop.permute.xlu0 %1413
    %vm1415 = vcmp.lt.s32.totalorder %v93, 15
    %v1416 = vsel %vm1415, %v1412, %v1414
    %v1417 = vsel %vm1415, %v1414, %v1412
    %v1418 = vlaneseq
    %v1419 = vshrl.u32 %v1418, 7
    %v1420 = vsub.s32 0, %v1419
    %v1421 = vrot.slane %v77, %v1420
    %v1422 = vlaneseq
    %v1423 = vshrl.u32 %v1422, 7
    %v1424 = vsub.s32 0, %v1423
    %v1425 = vrot.slane %v78, %v1424
    %v1426 = vmul.f32 %v1417, %v1421
    %v1427 = vmul.f32 %v1416, %v1425
    %1428 = vst [vmem:[#allocation2 + $0x80] sm:$0xff] %v1426
    %1429 = vst [vmem:[#allocation2 + $0x88] sm:$0xff] %v1427
    %1430 = vrot.lane.b32.xlu0 %v1259, 14
    %v1431 = vpop.permute.xlu0 %1430
    %1432 = vrot.lane.b32.xlu0 %v1260, 14
    %v1433 = vpop.permute.xlu0 %1432
    %vm1434 = vcmp.lt.s32.totalorder %v93, 14
    %v1435 = vsel %vm1434, %v1431, %v1433
    %v1436 = vsel %vm1434, %v1433, %v1431
    %v1437 = vlaneseq
    %v1438 = vshrl.u32 %v1437, 7
    %v1439 = vsub.s32 1, %v1438
    %v1440 = vrot.slane %v77, %v1439
    %v1441 = vlaneseq
    %v1442 = vshrl.u32 %v1441, 7
    %v1443 = vsub.s32 1, %v1442
    %v1444 = vrot.slane %v78, %v1443
    %v1445 = vmul.f32 %v1436, %v1440
    %v1446 = vmul.f32 %v1435, %v1444
    %1447 = vst [vmem:[#allocation2 + $0x90] sm:$0xff] %v1445
    %1448 = vst [vmem:[#allocation2 + $0x98] sm:$0xff] %v1446
    %1449 = vrot.lane.b32.xlu0 %v1259, 2
    %v1450 = vpop.permute.xlu0 %1449
    %1451 = vrot.lane.b32.xlu0 %v1260, 2
    %v1452 = vpop.permute.xlu0 %1451
    %v1453 = vsel %vm94, %v1450, %v1452
    %v1454 = vsel %vm94, %v1452, %v1450
    %v1455 = vlaneseq
    %v1456 = vshrl.u32 %v1455, 7
    %v1457 = vsub.s32 2, %v1456
    %v1458 = vrot.slane %v77, %v1457
    %v1459 = vlaneseq
    %v1460 = vshrl.u32 %v1459, 7
    %v1461 = vsub.s32 2, %v1460
    %v1462 = vrot.slane %v78, %v1461
    %v1463 = vmul.f32 %v1454, %v1458
    %v1464 = vmul.f32 %v1453, %v1462
    %1465 = vst [vmem:[#allocation2 + $0xa0] sm:$0xff] %v1463
    %1466 = vst [vmem:[#allocation2 + $0xa8] sm:$0xff] %v1464
    %1467 = vrot.lane.b32.xlu0 %v1259, 1
    %v1468 = vpop.permute.xlu0 %1467
    %1469 = vrot.lane.b32.xlu0 %v1260, 1
    %v1470 = vpop.permute.xlu0 %1469
    %v1471 = vsel %vm113, %v1468, %v1470
    %v1472 = vsel %vm113, %v1470, %v1468
    %v1473 = vlaneseq
    %v1474 = vshrl.u32 %v1473, 7
    %v1475 = vsub.s32 3, %v1474
    %v1476 = vrot.slane %v77, %v1475
    %v1477 = vlaneseq
    %v1478 = vshrl.u32 %v1477, 7
    %v1479 = vsub.s32 3, %v1478
    %v1480 = vrot.slane %v78, %v1479
    %v1481 = vmul.f32 %v1472, %v1476
    %v1482 = vmul.f32 %v1471, %v1480
    %1483 = vst [vmem:[#allocation2 + $0xb0] sm:$0xff] %v1481
    %1484 = vst [vmem:[#allocation2 + $0xb8] sm:$0xff] %v1482
    %v1485 = vlaneseq
    %v1486 = vshrl.u32 %v1485, 7
    %v1487 = vsub.s32 4, %v1486
    %v1488 = vrot.slane %v77, %v1487
    %v1489 = vlaneseq
    %v1490 = vshrl.u32 %v1489, 7
    %v1491 = vsub.s32 4, %v1490
    %v1492 = vrot.slane %v78, %v1491
    %v1493 = vmul.f32 %v1259, %v1488
    %v1494 = vmul.f32 %v1260, %v1492
    %1495 = vst [vmem:[#allocation2 + $0xc0] sm:$0xff] %v1493
    %1496 = vst [vmem:[#allocation2 + $0xc8] sm:$0xff] %v1494
    %1497 = vrot.lane.b32.xlu0 %v1259, 127
    %v1498 = vpop.permute.xlu0 %1497
    %1499 = vrot.lane.b32.xlu0 %v1260, 127
    %v1500 = vpop.permute.xlu0 %1499
    %v1501 = vsel %vm144, %v1498, %v1500
    %v1502 = vsel %vm144, %v1500, %v1498
    %v1503 = vlaneseq
    %v1504 = vshrl.u32 %v1503, 7
    %v1505 = vsub.s32 5, %v1504
    %v1506 = vrot.slane %v77, %v1505
    %v1507 = vlaneseq
    %v1508 = vshrl.u32 %v1507, 7
    %v1509 = vsub.s32 5, %v1508
    %v1510 = vrot.slane %v78, %v1509
    %v1511 = vmul.f32 %v1501, %v1506
    %v1512 = vmul.f32 %v1502, %v1510
    %1513 = vst [vmem:[#allocation2 + $0xd0] sm:$0xff] %v1511
    %1514 = vst [vmem:[#allocation2 + $0xd8] sm:$0xff] %v1512
    %1515 = vrot.lane.b32.xlu0 %v1259, 126
    %v1516 = vpop.permute.xlu0 %1515
    %1517 = vrot.lane.b32.xlu0 %v1260, 126
    %v1518 = vpop.permute.xlu0 %1517
    %v1519 = vsel %vm163, %v1516, %v1518
    %v1520 = vsel %vm163, %v1518, %v1516
    %v1521 = vlaneseq
    %v1522 = vshrl.u32 %v1521, 7
    %v1523 = vsub.s32 6, %v1522
    %v1524 = vrot.slane %v77, %v1523
    %v1525 = vlaneseq
    %v1526 = vshrl.u32 %v1525, 7
    %v1527 = vsub.s32 6, %v1526
    %v1528 = vrot.slane %v78, %v1527
    %v1529 = vmul.f32 %v1519, %v1524
    %v1530 = vmul.f32 %v1520, %v1528
    %1531 = vst [vmem:[#allocation2 + $0xe0] sm:$0xff] %v1529
    %1532 = vst [vmem:[#allocation2 + $0xe8] sm:$0xff] %v1530
    %1533 = vrot.lane.b32.xlu0 %v1259, 114
    %v1534 = vpop.permute.xlu0 %1533
    %1535 = vrot.lane.b32.xlu0 %v1260, 114
    %v1536 = vpop.permute.xlu0 %1535
    %vm1537 = vcmp.lt.s32.totalorder %v93, 114
    %v1538 = vsel %vm1537, %v1534, %v1536
    %v1539 = vsel %vm1537, %v1536, %v1534
    %v1540 = vlaneseq
    %v1541 = vshrl.u32 %v1540, 7
    %v1542 = vsub.s32 7, %v1541
    %v1543 = vrot.slane %v77, %v1542
    %v1544 = vlaneseq
    %v1545 = vshrl.u32 %v1544, 7
    %v1546 = vsub.s32 7, %v1545
    %v1547 = vrot.slane %v78, %v1546
    %v1548 = vmul.f32 %v1538, %v1543
    %v1549 = vmul.f32 %v1539, %v1547
    %1550 = vst [vmem:[#allocation2 + $0xf0] sm:$0xff] %v1548
    %1551 = vst [vmem:[#allocation2 + $0xf8] sm:$0xff] %v1549
    %1552 = vrot.lane.b32.xlu0 %v1259, 113
    %v1553 = vpop.permute.xlu0 %1552
    %1554 = vrot.lane.b32.xlu0 %v1260, 113
    %v1555 = vpop.permute.xlu0 %1554
    %vm1556 = vcmp.lt.s32.totalorder %v93, 113
    %v1557 = vsel %vm1556, %v1553, %v1555
    %v1558 = vsel %vm1556, %v1555, %v1553
    %v1559 = vlaneseq
    %v1560 = vshrl.u32 %v1559, 7
    %v1561 = vsub.s32 0, %v1560
    %v1562 = vrot.slane %v79, %v1561
    %v1563 = vlaneseq
    %v1564 = vshrl.u32 %v1563, 7
    %v1565 = vsub.s32 0, %v1564
    %v1566 = vrot.slane %v80, %v1565
    %v1567 = vmul.f32 %v1557, %v1562
    %v1568 = vmul.f32 %v1558, %v1566
    %1569 = vst [vmem:[#allocation2 + $0x100] sm:$0xff] %v1567
    %1570 = vst [vmem:[#allocation2 + $0x108] sm:$0xff] %v1568
    %1571 = vrot.lane.b32.xlu0 %v1259, 112
    %v1572 = vpop.permute.xlu0 %1571
    %1573 = vrot.lane.b32.xlu0 %v1260, 112
    %v1574 = vpop.permute.xlu0 %1573
    %v1575 = vsel %vm232, %v1572, %v1574
    %v1576 = vsel %vm232, %v1574, %v1572
    %v1577 = vlaneseq
    %v1578 = vshrl.u32 %v1577, 7
    %v1579 = vsub.s32 1, %v1578
    %v1580 = vrot.slane %v79, %v1579
    %v1581 = vlaneseq
    %v1582 = vshrl.u32 %v1581, 7
    %v1583 = vsub.s32 1, %v1582
    %v1584 = vrot.slane %v80, %v1583
    %v1585 = vmul.f32 %v1575, %v1580
    %v1586 = vmul.f32 %v1576, %v1584
    %1587 = vst [vmem:[#allocation2 + $0x110] sm:$0xff] %v1585
    %1588 = vst [vmem:[#allocation2 + $0x118] sm:$0xff] %v1586
    %1589 = vrot.lane.b32.xlu0 %v1259, 111
    %v1590 = vpop.permute.xlu0 %1589
    %1591 = vrot.lane.b32.xlu0 %v1260, 111
    %v1592 = vpop.permute.xlu0 %1591
    %vm1593 = vcmp.lt.s32.totalorder %v93, 111
    %v1594 = vsel %vm1593, %v1590, %v1592
    %v1595 = vsel %vm1593, %v1592, %v1590
    %v1596 = vlaneseq
    %v1597 = vshrl.u32 %v1596, 7
    %v1598 = vsub.s32 2, %v1597
    %v1599 = vrot.slane %v79, %v1598
    %v1600 = vlaneseq
    %v1601 = vshrl.u32 %v1600, 7
    %v1602 = vsub.s32 2, %v1601
    %v1603 = vrot.slane %v80, %v1602
    %v1604 = vmul.f32 %v1594, %v1599
    %v1605 = vmul.f32 %v1595, %v1603
    %1606 = vst [vmem:[#allocation2 + $0x120] sm:$0xff] %v1604
    %1607 = vst [vmem:[#allocation2 + $0x128] sm:$0xff] %v1605
    %1608 = vrot.lane.b32.xlu0 %v1259, 110
    %v1609 = vpop.permute.xlu0 %1608
    %1610 = vrot.lane.b32.xlu0 %v1260, 110
    %v1611 = vpop.permute.xlu0 %1610
    %vm1612 = vcmp.lt.s32.totalorder %v93, 110
    %v1613 = vsel %vm1612, %v1609, %v1611
    %v1614 = vsel %vm1612, %v1611, %v1609
    %v1615 = vlaneseq
    %v1616 = vshrl.u32 %v1615, 7
    %v1617 = vsub.s32 3, %v1616
    %v1618 = vrot.slane %v79, %v1617
    %v1619 = vlaneseq
    %v1620 = vshrl.u32 %v1619, 7
    %v1621 = vsub.s32 3, %v1620
    %v1622 = vrot.slane %v80, %v1621
    %v1623 = vmul.f32 %v1613, %v1618
    %v1624 = vmul.f32 %v1614, %v1622
    %1625 = vst [vmem:[#allocation2 + $0x130] sm:$0xff] %v1623
    %1626 = vst [vmem:[#allocation2 + $0x138] sm:$0xff] %v1624
    %1627 = vrot.lane.b32.xlu0 %v1259, 98
    %v1628 = vpop.permute.xlu0 %1627
    %1629 = vrot.lane.b32.xlu0 %v1260, 98
    %v1630 = vpop.permute.xlu0 %1629
    %vm1631 = vcmp.lt.s32.totalorder %v93, 98
    %v1632 = vsel %vm1631, %v1628, %v1630
    %v1633 = vsel %vm1631, %v1630, %v1628
    %v1634 = vlaneseq
    %v1635 = vshrl.u32 %v1634, 7
    %v1636 = vsub.s32 4, %v1635
    %v1637 = vrot.slane %v79, %v1636
    %v1638 = vlaneseq
    %v1639 = vshrl.u32 %v1638, 7
    %v1640 = vsub.s32 4, %v1639
    %v1641 = vrot.slane %v80, %v1640
    %v1642 = vmul.f32 %v1632, %v1637
    %v1643 = vmul.f32 %v1633, %v1641
    %1644 = vst [vmem:[#allocation2 + $0x140] sm:$0xff] %v1642
    %1645 = vst [vmem:[#allocation2 + $0x148] sm:$0xff] %v1643
    %1646 = vrot.lane.b32.xlu0 %v1259, 97
    %v1647 = vpop.permute.xlu0 %1646
    %1648 = vrot.lane.b32.xlu0 %v1260, 97
    %v1649 = vpop.permute.xlu0 %1648
    %vm1650 = vcmp.lt.s32.totalorder %v93, 97
    %v1651 = vsel %vm1650, %v1647, %v1649
    %v1652 = vsel %vm1650, %v1649, %v1647
    %v1653 = vlaneseq
    %v1654 = vshrl.u32 %v1653, 7
    %v1655 = vsub.s32 5, %v1654
    %v1656 = vrot.slane %v79, %v1655
    %v1657 = vlaneseq
    %v1658 = vshrl.u32 %v1657, 7
    %v1659 = vsub.s32 5, %v1658
    %v1660 = vrot.slane %v80, %v1659
    %v1661 = vmul.f32 %v1651, %v1656
    %v1662 = vmul.f32 %v1652, %v1660
    %1663 = vst [vmem:[#allocation2 + $0x150] sm:$0xff] %v1661
    %1664 = vst [vmem:[#allocation2 + $0x158] sm:$0xff] %v1662
    %1665 = vrot.lane.b32.xlu0 %v1259, 96
    %v1666 = vpop.permute.xlu0 %1665
    %1667 = vrot.lane.b32.xlu0 %v1260, 96
    %v1668 = vpop.permute.xlu0 %1667
    %v1669 = vsel %vm251, %v1666, %v1668
    %v1670 = vsel %vm251, %v1668, %v1666
    %v1671 = vlaneseq
    %v1672 = vshrl.u32 %v1671, 7
    %v1673 = vsub.s32 6, %v1672
    %v1674 = vrot.slane %v79, %v1673
    %v1675 = vlaneseq
    %v1676 = vshrl.u32 %v1675, 7
    %v1677 = vsub.s32 6, %v1676
    %v1678 = vrot.slane %v80, %v1677
    %v1679 = vmul.f32 %v1669, %v1674
    %v1680 = vmul.f32 %v1670, %v1678
    %1681 = vst [vmem:[#allocation2 + $0x160] sm:$0xff] %v1679
    %1682 = vst [vmem:[#allocation2 + $0x168] sm:$0xff] %v1680
    %1683 = vrot.lane.b32.xlu0 %v1259, 95
    %v1684 = vpop.permute.xlu0 %1683
    %1685 = vrot.lane.b32.xlu0 %v1260, 95
    %v1686 = vpop.permute.xlu0 %1685
    %vm1687 = vcmp.lt.s32.totalorder %v93, 95
    %v1688 = vsel %vm1687, %v1684, %v1686
    %v1689 = vsel %vm1687, %v1686, %v1684
    %v1690 = vlaneseq
    %v1691 = vshrl.u32 %v1690, 7
    %v1692 = vsub.s32 7, %v1691
    %v1693 = vrot.slane %v79, %v1692
    %v1694 = vlaneseq
    %v1695 = vshrl.u32 %v1694, 7
    %v1696 = vsub.s32 7, %v1695
    %v1697 = vrot.slane %v80, %v1696
    %v1698 = vmul.f32 %v1688, %v1693
    %v1699 = vmul.f32 %v1689, %v1697
    %1700 = vst [vmem:[#allocation2 + $0x170] sm:$0xff] %v1698
    %1701 = vst [vmem:[#allocation2 + $0x178] sm:$0xff] %v1699
    %1702 = vrot.lane.b32.xlu0 %v1259, 94
    %v1703 = vpop.permute.xlu0 %1702
    %1704 = vrot.lane.b32.xlu0 %v1260, 94
    %v1705 = vpop.permute.xlu0 %1704
    %vm1706 = vcmp.lt.s32.totalorder %v93, 94
    %v1707 = vsel %vm1706, %v1703, %v1705
    %v1708 = vsel %vm1706, %v1705, %v1703
    %v1709 = vlaneseq
    %v1710 = vshrl.u32 %v1709, 7
    %v1711 = vsub.s32 0, %v1710
    %v1712 = vrot.slane %v81, %v1711
    %v1713 = vlaneseq
    %v1714 = vshrl.u32 %v1713, 7
    %v1715 = vsub.s32 0, %v1714
    %v1716 = vrot.slane %v82, %v1715
    %v1717 = vmul.f32 %v1707, %v1712
    %v1718 = vmul.f32 %v1708, %v1716
    %1719 = vst [vmem:[#allocation2 + $0x180] sm:$0xff] %v1717
    %1720 = vst [vmem:[#allocation2 + $0x188] sm:$0xff] %v1718
    %v1721 = vld [vmem:[%s4] sm:$0xff]
    %v1722 = vld [vmem:[%s4 + $0x8] sm:$0xff]
    %v1723 = vld [vmem:[%s4 + $0x10] sm:$0xff]
    %v1724 = vld [vmem:[%s4 + $0x18] sm:$0xff]
    %v1725 = vld [vmem:[#allocation2] sm:$0xff]
    %v1726 = vld [vmem:[#allocation2 + $0x8] sm:$0xff]
    %v1727 = vld [vmem:[#allocation2 + $0x10] sm:$0xff]
    %v1728 = vld [vmem:[#allocation2 + $0x18] sm:$0xff]
    %v1729 = vld [vmem:[#allocation2 + $0x20] sm:$0xff]
    %v1730 = vld [vmem:[#allocation2 + $0x28] sm:$0xff]
    %v1731 = vld [vmem:[#allocation2 + $0x30] sm:$0xff]
    %v1732 = vld [vmem:[#allocation2 + $0x38] sm:$0xff]
    %v1733 = vld [vmem:[#allocation2 + $0x40] sm:$0xff]
    %v1734 = vld [vmem:[#allocation2 + $0x48] sm:$0xff]
    %v1735 = vld [vmem:[#allocation2 + $0x50] sm:$0xff]
    %v1736 = vld [vmem:[#allocation2 + $0x58] sm:$0xff]
    %v1737 = vld [vmem:[#allocation2 + $0x60] sm:$0xff]
    %v1738 = vld [vmem:[#allocation2 + $0x68] sm:$0xff]
    %v1739 = vld [vmem:[#allocation2 + $0x70] sm:$0xff]
    %v1740 = vld [vmem:[#allocation2 + $0x78] sm:$0xff]
    %v1741 = vld [vmem:[#allocation2 + $0x80] sm:$0xff]
    %v1742 = vld [vmem:[#allocation2 + $0x88] sm:$0xff]
    %v1743 = vld [vmem:[#allocation2 + $0x90] sm:$0xff]
    %v1744 = vld [vmem:[#allocation2 + $0x98] sm:$0xff]
    %v1745 = vld [vmem:[#allocation2 + $0xa0] sm:$0xff]
    %v1746 = vld [vmem:[#allocation2 + $0xa8] sm:$0xff]
    %v1747 = vld [vmem:[#allocation2 + $0xb0] sm:$0xff]
    %v1748 = vld [vmem:[#allocation2 + $0xb8] sm:$0xff]
    %v1749 = vld [vmem:[#allocation2 + $0xc0] sm:$0xff]
    %v1750 = vld [vmem:[#allocation2 + $0xc8] sm:$0xff]
    %v1751 = vld [vmem:[#allocation2 + $0xd0] sm:$0xff]
    %v1752 = vld [vmem:[#allocation2 + $0xd8] sm:$0xff]
    %v1753 = vld [vmem:[#allocation2 + $0xe0] sm:$0xff]
    %v1754 = vld [vmem:[#allocation2 + $0xe8] sm:$0xff]
    %v1755 = vld [vmem:[#allocation2 + $0xf0] sm:$0xff]
    %v1756 = vld [vmem:[#allocation2 + $0xf8] sm:$0xff]
    %v1757 = vld [vmem:[#allocation2 + $0x100] sm:$0xff]
    %v1758 = vld [vmem:[#allocation2 + $0x108] sm:$0xff]
    %v1759 = vld [vmem:[#allocation2 + $0x110] sm:$0xff]
    %v1760 = vld [vmem:[#allocation2 + $0x118] sm:$0xff]
    %v1761 = vld [vmem:[#allocation2 + $0x120] sm:$0xff]
    %v1762 = vld [vmem:[#allocation2 + $0x128] sm:$0xff]
    %v1763 = vld [vmem:[#allocation2 + $0x130] sm:$0xff]
    %v1764 = vld [vmem:[#allocation2 + $0x138] sm:$0xff]
    %v1765 = vld [vmem:[#allocation2 + $0x140] sm:$0xff]
    %v1766 = vld [vmem:[#allocation2 + $0x148] sm:$0xff]
    %v1767 = vld [vmem:[#allocation2 + $0x150] sm:$0xff]
    %v1768 = vld [vmem:[#allocation2 + $0x158] sm:$0xff]
    %v1769 = vld [vmem:[#allocation2 + $0x160] sm:$0xff]
    %v1770 = vld [vmem:[#allocation2 + $0x168] sm:$0xff]
    %v1771 = vld [vmem:[#allocation2 + $0x170] sm:$0xff]
    %v1772 = vld [vmem:[#allocation2 + $0x178] sm:$0xff]
    %v1773 = vld [vmem:[#allocation2 + $0x180] sm:$0xff]
    %v1774 = vld [vmem:[#allocation2 + $0x188] sm:$0xff]
    %vm1775 = vcmask 588800
    %v1777 = vsel %vm1775, %v1722, 0
    %v1780 = vsel %vm1775, %v1724, 0
    %v1782 = vand.u32 %v1756, 4294901760
    %1783 = vmatprep.subr.mxu0 %v1782
    %v1784 = vand.u32 %v1755, 4294901760
    %1785 = vmatpush1.msra.mxu0 %v1784
    %v1786 = vand.u32 %v1754, 4294901760
    %1787 = vmatprep.subr.mxu0 %v1786
    %v1788 = vand.u32 %v1753, 4294901760
    %1789 = vmatpush1.msra.mxu0 %v1788
    %v1790 = vand.u32 %v1752, 4294901760
    %1791 = vmatprep.subr.mxu0 %v1790
    %v1792 = vand.u32 %v1751, 4294901760
    %1793 = vmatpush1.msra.mxu0 %v1792
    %v1794 = vand.u32 %v1750, 4294901760
    %1795 = vmatprep.subr.mxu0 %v1794
    %v1796 = vand.u32 %v1749, 4294901760
    %1797 = vmatpush1.msra.mxu0 %v1796
    %v1798 = vand.u32 %v1748, 4294901760
    %1799 = vmatprep.subr.mxu0 %v1798
    %v1800 = vand.u32 %v1747, 4294901760
    %1801 = vmatpush1.msra.mxu0 %v1800
    %v1802 = vand.u32 %v1746, 4294901760
    %1803 = vmatprep.subr.mxu0 %v1802
    %v1804 = vand.u32 %v1745, 4294901760
    %1805 = vmatpush1.msra.mxu0 %v1804
    %v1806 = vand.u32 %v1744, 4294901760
    %1807 = vmatprep.subr.mxu0 %v1806
    %v1808 = vand.u32 %v1743, 4294901760
    %1809 = vmatpush1.msra.mxu0 %v1808
    %v1810 = vand.u32 %v1742, 4294901760
    %1811 = vmatprep.subr.mxu0 %v1810
    %v1812 = vand.u32 %v1741, 4294901760
    %1813 = vmatpush1.msra.mxu0 %v1812
    %v1814 = vand.u32 %v1740, 4294901760
    %1815 = vmatprep.subr.mxu0 %v1814
    %v1816 = vand.u32 %v1739, 4294901760
    %1817 = vmatpush1.msra.mxu0 %v1816
    %v1818 = vand.u32 %v1738, 4294901760
    %1819 = vmatprep.subr.mxu0 %v1818
    %v1820 = vand.u32 %v1737, 4294901760
    %1821 = vmatpush1.msra.mxu0 %v1820
    %v1822 = vand.u32 %v1736, 4294901760
    %1823 = vmatprep.subr.mxu0 %v1822
    %v1824 = vand.u32 %v1735, 4294901760
    %1825 = vmatpush1.msra.mxu0 %v1824
    %v1826 = vand.u32 %v1734, 4294901760
    %1827 = vmatprep.subr.mxu0 %v1826
    %v1828 = vand.u32 %v1733, 4294901760
    %1829 = vmatpush1.msra.mxu0 %v1828
    %v1830 = vand.u32 %v1732, 4294901760
    %1831 = vmatprep.subr.mxu0 %v1830
    %v1832 = vand.u32 %v1731, 4294901760
    %1833 = vmatpush1.msra.mxu0 %v1832
    %v1834 = vand.u32 %v1730, 4294901760
    %1835 = vmatprep.subr.mxu0 %v1834
    %v1836 = vand.u32 %v1729, 4294901760
    %1837 = vmatpush1.msra.mxu0 %v1836
    %v1838 = vand.u32 %v1728, 4294901760
    %1839 = vmatprep.subr.mxu0 %v1838
    %v1840 = vand.u32 %v1727, 4294901760
    %1841 = vmatpush1.msra.mxu0 %v1840
    %v1842 = vand.u32 %v1726, 4294901760
    %1843 = vmatprep.subr.mxu0 %v1842
    %v1844 = vand.u32 %v1725, 4294901760
    %1845 = vmatpush1.msra.mxu0 %v1844
    %1846 = vmatprep.subr.mxu0 0.0
    %1847 = vmatpush2.msra.mxu0 0.0
    %1848 = vmatprep.subr.mxu0 0.0
    %1849 = vmatpush2.msra.mxu0 0.0
    %1850 = vmatprep.subr.mxu0 0.0
    %1851 = vmatpush2.msra.mxu0 0.0
    %1852 = vmatprep.subr.mxu0 0.0
    %1853 = vmatpush2.msra.mxu0 0.0
    %1854 = vmatprep.subr.mxu0 0.0
    %1855 = vmatpush2.msra.mxu0 0.0
    %1856 = vmatprep.subr.mxu0 0.0
    %1857 = vmatpush2.msra.mxu0 0.0
    %1858 = vmatprep.subr.mxu0 0.0
    %1859 = vmatpush2.msra.mxu0 0.0
    %v1860 = vand.u32 %v1774, 4294901760
    %1861 = vmatprep.subr.mxu0 %v1860
    %v1862 = vand.u32 %v1773, 4294901760
    %1863 = vmatpush2.msra.mxu0 %v1862
    %v1864 = vand.u32 %v1772, 4294901760
    %1865 = vmatprep.subr.mxu0 %v1864
    %v1866 = vand.u32 %v1771, 4294901760
    %1867 = vmatpush2.msra.mxu0 %v1866
    %v1868 = vand.u32 %v1770, 4294901760
    %1869 = vmatprep.subr.mxu0 %v1868
    %v1870 = vand.u32 %v1769, 4294901760
    %1871 = vmatpush2.msra.mxu0 %v1870
    %v1872 = vand.u32 %v1768, 4294901760
    %1873 = vmatprep.subr.mxu0 %v1872
    %v1874 = vand.u32 %v1767, 4294901760
    %1875 = vmatpush2.msra.mxu0 %v1874
    %v1876 = vand.u32 %v1766, 4294901760
    %1877 = vmatprep.subr.mxu0 %v1876
    %v1878 = vand.u32 %v1765, 4294901760
    %1879 = vmatpush2.msra.mxu0 %v1878
    %v1880 = vand.u32 %v1764, 4294901760
    %1881 = vmatprep.subr.mxu0 %v1880
    %v1882 = vand.u32 %v1763, 4294901760
    %1883 = vmatpush2.msra.mxu0 %v1882
    %v1884 = vand.u32 %v1762, 4294901760
    %1885 = vmatprep.subr.mxu0 %v1884
    %v1886 = vand.u32 %v1761, 4294901760
    %1887 = vmatpush2.msra.mxu0 %v1886
    %v1888 = vand.u32 %v1760, 4294901760
    %1889 = vmatprep.subr.mxu0 %v1888
    %v1890 = vand.u32 %v1759, 4294901760
    %1891 = vmatpush2.msra.mxu0 %v1890
    %v1892 = vand.u32 %v1758, 4294901760
    %1893 = vmatprep.subr.mxu0 %v1892
    %v1894 = vand.u32 %v1757, 4294901760
    %1895 = vmatpush2.msra.mxu0 %v1894
    %v1896 = vand.u32 %v1777, 4294901760
    %v1897 = vsub.f32 %v1777, %v1896
    %v1898 = vand.u32 %v1897, 4294901760
    %v1899 = vsub.f32 %v1897, %v1898
    %v1900 = vand.u32 %v1899, 4294901760
    %1901 = vmatprep.mubr.f32.mxu0 %v1900
    %v1902 = vand.u32 %v1721, 4294901760
    %v1903 = vsub.f32 %v1721, %v1902
    %v1904 = vand.u32 %v1903, 4294901760
    %v1905 = vsub.f32 %v1903, %v1904
    %v1906 = vand.u32 %v1905, 4294901760
    %1907 = vmatmul.mubr.f32.gmra.mxu0 %v1906
    %v1908 = vpop.f32.mrf.mxu0
    %v1909 = vadd.f32 0.0, %v1908
    %v1910 = vpop.f32.mrf.mxu0
    %v1911 = vadd.f32 0.0, %v1910
    %v1912 = vand.u32 %v1780, 4294901760
    %v1913 = vsub.f32 %v1780, %v1912
    %v1914 = vand.u32 %v1913, 4294901760
    %v1915 = vsub.f32 %v1913, %v1914
    %v1916 = vand.u32 %v1915, 4294901760
    %1917 = vmatprep.mubr.f32.mxu0 %v1916
    %v1918 = vand.u32 %v1723, 4294901760
    %v1919 = vsub.f32 %v1723, %v1918
    %v1920 = vand.u32 %v1919, 4294901760
    %v1921 = vsub.f32 %v1919, %v1920
    %v1922 = vand.u32 %v1921, 4294901760
    %1923 = vmatmul.mubr.f32.gmra.mxu0 %v1922
    %v1924 = vpop.f32.mrf.mxu0
    %v1925 = vadd.f32 0.0, %v1924
    %v1926 = vpop.f32.mrf.mxu0
    %v1927 = vadd.f32 0.0, %v1926
    %1928 = vdwg.mxu0
    %v1929 = vand.u32 %v1756, 4294901760
    %v1930 = vsub.f32 %v1756, %v1929
    %v1931 = vand.u32 %v1930, 4294901760
    %v1932 = vsub.f32 %v1930, %v1931
    %v1933 = vand.u32 %v1932, 4294901760
    %1934 = vmatprep.subr.mxu0 %v1933
    %v1935 = vand.u32 %v1755, 4294901760
    %v1936 = vsub.f32 %v1755, %v1935
    %v1937 = vand.u32 %v1936, 4294901760
    %v1938 = vsub.f32 %v1936, %v1937
    %v1939 = vand.u32 %v1938, 4294901760
    %1940 = vmatpush1.msra.mxu0 %v1939
    %v1941 = vand.u32 %v1754, 4294901760
    %v1942 = vsub.f32 %v1754, %v1941
    %v1943 = vand.u32 %v1942, 4294901760
    %v1944 = vsub.f32 %v1942, %v1943
    %v1945 = vand.u32 %v1944, 4294901760
    %1946 = vmatprep.subr.mxu0 %v1945
    %v1947 = vand.u32 %v1753, 4294901760
    %v1948 = vsub.f32 %v1753, %v1947
    %v1949 = vand.u32 %v1948, 4294901760
    %v1950 = vsub.f32 %v1948, %v1949
    %v1951 = vand.u32 %v1950, 4294901760
    %1952 = vmatpush1.msra.mxu0 %v1951
    %v1953 = vand.u32 %v1752, 4294901760
    %v1954 = vsub.f32 %v1752, %v1953
    %v1955 = vand.u32 %v1954, 4294901760
    %v1956 = vsub.f32 %v1954, %v1955
    %v1957 = vand.u32 %v1956, 4294901760
    %1958 = vmatprep.subr.mxu0 %v1957
    %v1959 = vand.u32 %v1751, 4294901760
    %v1960 = vsub.f32 %v1751, %v1959
    %v1961 = vand.u32 %v1960, 4294901760
    %v1962 = vsub.f32 %v1960, %v1961
    %v1963 = vand.u32 %v1962, 4294901760
    %1964 = vmatpush1.msra.mxu0 %v1963
    %v1965 = vand.u32 %v1750, 4294901760
    %v1966 = vsub.f32 %v1750, %v1965
    %v1967 = vand.u32 %v1966, 4294901760
    %v1968 = vsub.f32 %v1966, %v1967
    %v1969 = vand.u32 %v1968, 4294901760
    %1970 = vmatprep.subr.mxu0 %v1969
    %v1971 = vand.u32 %v1749, 4294901760
    %v1972 = vsub.f32 %v1749, %v1971
    %v1973 = vand.u32 %v1972, 4294901760
    %v1974 = vsub.f32 %v1972, %v1973
    %v1975 = vand.u32 %v1974, 4294901760
    %1976 = vmatpush1.msra.mxu0 %v1975
    %v1977 = vand.u32 %v1748, 4294901760
    %v1978 = vsub.f32 %v1748, %v1977
    %v1979 = vand.u32 %v1978, 4294901760
    %v1980 = vsub.f32 %v1978, %v1979
    %v1981 = vand.u32 %v1980, 4294901760
    %1982 = vmatprep.subr.mxu0 %v1981
    %v1983 = vand.u32 %v1747, 4294901760
    %v1984 = vsub.f32 %v1747, %v1983
    %v1985 = vand.u32 %v1984, 4294901760
    %v1986 = vsub.f32 %v1984, %v1985
    %v1987 = vand.u32 %v1986, 4294901760
    %1988 = vmatpush1.msra.mxu0 %v1987
    %v1989 = vand.u32 %v1746, 4294901760
    %v1990 = vsub.f32 %v1746, %v1989
    %v1991 = vand.u32 %v1990, 4294901760
    %v1992 = vsub.f32 %v1990, %v1991
    %v1993 = vand.u32 %v1992, 4294901760
    %1994 = vmatprep.subr.mxu0 %v1993
    %v1995 = vand.u32 %v1745, 4294901760
    %v1996 = vsub.f32 %v1745, %v1995
    %v1997 = vand.u32 %v1996, 4294901760
    %v1998 = vsub.f32 %v1996, %v1997
    %v1999 = vand.u32 %v1998, 4294901760
    %2000 = vmatpush1.msra.mxu0 %v1999
    %v2001 = vand.u32 %v1744, 4294901760
    %v2002 = vsub.f32 %v1744, %v2001
    %v2003 = vand.u32 %v2002, 4294901760
    %v2004 = vsub.f32 %v2002, %v2003
    %v2005 = vand.u32 %v2004, 4294901760
    %2006 = vmatprep.subr.mxu0 %v2005
    %v2007 = vand.u32 %v1743, 4294901760
    %v2008 = vsub.f32 %v1743, %v2007
    %v2009 = vand.u32 %v2008, 4294901760
    %v2010 = vsub.f32 %v2008, %v2009
    %v2011 = vand.u32 %v2010, 4294901760
    %2012 = vmatpush1.msra.mxu0 %v2011
    %v2013 = vand.u32 %v1742, 4294901760
    %v2014 = vsub.f32 %v1742, %v2013
    %v2015 = vand.u32 %v2014, 4294901760
    %v2016 = vsub.f32 %v2014, %v2015
    %v2017 = vand.u32 %v2016, 4294901760
    %2018 = vmatprep.subr.mxu0 %v2017
    %v2019 = vand.u32 %v1741, 4294901760
    %v2020 = vsub.f32 %v1741, %v2019
    %v2021 = vand.u32 %v2020, 4294901760
    %v2022 = vsub.f32 %v2020, %v2021
    %v2023 = vand.u32 %v2022, 4294901760
    %2024 = vmatpush1.msra.mxu0 %v2023
    %v2025 = vand.u32 %v1740, 4294901760
    %v2026 = vsub.f32 %v1740, %v2025
    %v2027 = vand.u32 %v2026, 4294901760
    %v2028 = vsub.f32 %v2026, %v2027
    %v2029 = vand.u32 %v2028, 4294901760
    %2030 = vmatprep.subr.mxu0 %v2029
    %v2031 = vand.u32 %v1739, 4294901760
    %v2032 = vsub.f32 %v1739, %v2031
    %v2033 = vand.u32 %v2032, 4294901760
    %v2034 = vsub.f32 %v2032, %v2033
    %v2035 = vand.u32 %v2034, 4294901760
    %2036 = vmatpush1.msra.mxu0 %v2035
    %v2037 = vand.u32 %v1738, 4294901760
    %v2038 = vsub.f32 %v1738, %v2037
    %v2039 = vand.u32 %v2038, 4294901760
    %v2040 = vsub.f32 %v2038, %v2039
    %v2041 = vand.u32 %v2040, 4294901760
    %2042 = vmatprep.subr.mxu0 %v2041
    %v2043 = vand.u32 %v1737, 4294901760
    %v2044 = vsub.f32 %v1737, %v2043
    %v2045 = vand.u32 %v2044, 4294901760
    %v2046 = vsub.f32 %v2044, %v2045
    %v2047 = vand.u32 %v2046, 4294901760
    %2048 = vmatpush1.msra.mxu0 %v2047
    %v2049 = vand.u32 %v1736, 4294901760
    %v2050 = vsub.f32 %v1736, %v2049
    %v2051 = vand.u32 %v2050, 4294901760
    %v2052 = vsub.f32 %v2050, %v2051
    %v2053 = vand.u32 %v2052, 4294901760
    %2054 = vmatprep.subr.mxu0 %v2053
    %v2055 = vand.u32 %v1735, 4294901760
    %v2056 = vsub.f32 %v1735, %v2055
    %v2057 = vand.u32 %v2056, 4294901760
    %v2058 = vsub.f32 %v2056, %v2057
    %v2059 = vand.u32 %v2058, 4294901760
    %2060 = vmatpush1.msra.mxu0 %v2059
    %v2061 = vand.u32 %v1734, 4294901760
    %v2062 = vsub.f32 %v1734, %v2061
    %v2063 = vand.u32 %v2062, 4294901760
    %v2064 = vsub.f32 %v2062, %v2063
    %v2065 = vand.u32 %v2064, 4294901760
    %2066 = vmatprep.subr.mxu0 %v2065
    %v2067 = vand.u32 %v1733, 4294901760
    %v2068 = vsub.f32 %v1733, %v2067
    %v2069 = vand.u32 %v2068, 4294901760
    %v2070 = vsub.f32 %v2068, %v2069
    %v2071 = vand.u32 %v2070, 4294901760
    %2072 = vmatpush1.msra.mxu0 %v2071
    %v2073 = vand.u32 %v1732, 4294901760
    %v2074 = vsub.f32 %v1732, %v2073
    %v2075 = vand.u32 %v2074, 4294901760
    %v2076 = vsub.f32 %v2074, %v2075
    %v2077 = vand.u32 %v2076, 4294901760
    %2078 = vmatprep.subr.mxu0 %v2077
    %v2079 = vand.u32 %v1731, 4294901760
    %v2080 = vsub.f32 %v1731, %v2079
    %v2081 = vand.u32 %v2080, 4294901760
    %v2082 = vsub.f32 %v2080, %v2081
    %v2083 = vand.u32 %v2082, 4294901760
    %2084 = vmatpush1.msra.mxu0 %v2083
    %v2085 = vand.u32 %v1730, 4294901760
    %v2086 = vsub.f32 %v1730, %v2085
    %v2087 = vand.u32 %v2086, 4294901760
    %v2088 = vsub.f32 %v2086, %v2087
    %v2089 = vand.u32 %v2088, 4294901760
    %2090 = vmatprep.subr.mxu0 %v2089
    %v2091 = vand.u32 %v1729, 4294901760
    %v2092 = vsub.f32 %v1729, %v2091
    %v2093 = vand.u32 %v2092, 4294901760
    %v2094 = vsub.f32 %v2092, %v2093
    %v2095 = vand.u32 %v2094, 4294901760
    %2096 = vmatpush1.msra.mxu0 %v2095
    %v2097 = vand.u32 %v1728, 4294901760
    %v2098 = vsub.f32 %v1728, %v2097
    %v2099 = vand.u32 %v2098, 4294901760
    %v2100 = vsub.f32 %v2098, %v2099
    %v2101 = vand.u32 %v2100, 4294901760
    %2102 = vmatprep.subr.mxu0 %v2101
    %v2103 = vand.u32 %v1727, 4294901760
    %v2104 = vsub.f32 %v1727, %v2103
    %v2105 = vand.u32 %v2104, 4294901760
    %v2106 = vsub.f32 %v2104, %v2105
    %v2107 = vand.u32 %v2106, 4294901760
    %2108 = vmatpush1.msra.mxu0 %v2107
    %v2109 = vand.u32 %v1726, 4294901760
    %v2110 = vsub.f32 %v1726, %v2109
    %v2111 = vand.u32 %v2110, 4294901760
    %v2112 = vsub.f32 %v2110, %v2111
    %v2113 = vand.u32 %v2112, 4294901760
    %2114 = vmatprep.subr.mxu0 %v2113
    %v2115 = vand.u32 %v1725, 4294901760
    %v2116 = vsub.f32 %v1725, %v2115
    %v2117 = vand.u32 %v2116, 4294901760
    %v2118 = vsub.f32 %v2116, %v2117
    %v2119 = vand.u32 %v2118, 4294901760
    %2120 = vmatpush1.msra.mxu0 %v2119
    %2121 = vmatprep.subr.mxu0 0.0
    %2122 = vmatpush2.msra.mxu0 0.0
    %2123 = vmatprep.subr.mxu0 0.0
    %2124 = vmatpush2.msra.mxu0 0.0
    %2125 = vmatprep.subr.mxu0 0.0
    %2126 = vmatpush2.msra.mxu0 0.0
    %2127 = vmatprep.subr.mxu0 0.0
    %2128 = vmatpush2.msra.mxu0 0.0
    %2129 = vmatprep.subr.mxu0 0.0
    %2130 = vmatpush2.msra.mxu0 0.0
    %2131 = vmatprep.subr.mxu0 0.0
    %2132 = vmatpush2.msra.mxu0 0.0
    %2133 = vmatprep.subr.mxu0 0.0
    %2134 = vmatpush2.msra.mxu0 0.0
    %v2135 = vand.u32 %v1774, 4294901760
    %v2136 = vsub.f32 %v1774, %v2135
    %v2137 = vand.u32 %v2136, 4294901760
    %v2138 = vsub.f32 %v2136, %v2137
    %v2139 = vand.u32 %v2138, 4294901760
    %2140 = vmatprep.subr.mxu0 %v2139
    %v2141 = vand.u32 %v1773, 4294901760
    %v2142 = vsub.f32 %v1773, %v2141
    %v2143 = vand.u32 %v2142, 4294901760
    %v2144 = vsub.f32 %v2142, %v2143
    %v2145 = vand.u32 %v2144, 4294901760
    %2146 = vmatpush2.msra.mxu0 %v2145
    %v2147 = vand.u32 %v1772, 4294901760
    %v2148 = vsub.f32 %v1772, %v2147
    %v2149 = vand.u32 %v2148, 4294901760
    %v2150 = vsub.f32 %v2148, %v2149
    %v2151 = vand.u32 %v2150, 4294901760
    %2152 = vmatprep.subr.mxu0 %v2151
    %v2153 = vand.u32 %v1771, 4294901760
    %v2154 = vsub.f32 %v1771, %v2153
    %v2155 = vand.u32 %v2154, 4294901760
    %v2156 = vsub.f32 %v2154, %v2155
    %v2157 = vand.u32 %v2156, 4294901760
    %2158 = vmatpush2.msra.mxu0 %v2157
    %v2159 = vand.u32 %v1770, 4294901760
    %v2160 = vsub.f32 %v1770, %v2159
    %v2161 = vand.u32 %v2160, 4294901760
    %v2162 = vsub.f32 %v2160, %v2161
    %v2163 = vand.u32 %v2162, 4294901760
    %2164 = vmatprep.subr.mxu0 %v2163
    %v2165 = vand.u32 %v1769, 4294901760
    %v2166 = vsub.f32 %v1769, %v2165
    %v2167 = vand.u32 %v2166, 4294901760
    %v2168 = vsub.f32 %v2166, %v2167
    %v2169 = vand.u32 %v2168, 4294901760
    %2170 = vmatpush2.msra.mxu0 %v2169
    %v2171 = vand.u32 %v1768, 4294901760
    %v2172 = vsub.f32 %v1768, %v2171
    %v2173 = vand.u32 %v2172, 4294901760
    %v2174 = vsub.f32 %v2172, %v2173
    %v2175 = vand.u32 %v2174, 4294901760
    %2176 = vmatprep.subr.mxu0 %v2175
    %v2177 = vand.u32 %v1767, 4294901760
    %v2178 = vsub.f32 %v1767, %v2177
    %v2179 = vand.u32 %v2178, 4294901760
    %v2180 = vsub.f32 %v2178, %v2179
    %v2181 = vand.u32 %v2180, 4294901760
    %2182 = vmatpush2.msra.mxu0 %v2181
    %v2183 = vand.u32 %v1766, 4294901760
    %v2184 = vsub.f32 %v1766, %v2183
    %v2185 = vand.u32 %v2184, 4294901760
    %v2186 = vsub.f32 %v2184, %v2185
    %v2187 = vand.u32 %v2186, 4294901760
    %2188 = vmatprep.subr.mxu0 %v2187
    %v2189 = vand.u32 %v1765, 4294901760
    %v2190 = vsub.f32 %v1765, %v2189
    %v2191 = vand.u32 %v2190, 4294901760
    %v2192 = vsub.f32 %v2190, %v2191
    %v2193 = vand.u32 %v2192, 4294901760
    %2194 = vmatpush2.msra.mxu0 %v2193
    %v2195 = vand.u32 %v1764, 4294901760
    %v2196 = vsub.f32 %v1764, %v2195
    %v2197 = vand.u32 %v2196, 4294901760
    %v2198 = vsub.f32 %v2196, %v2197
    %v2199 = vand.u32 %v2198, 4294901760
    %2200 = vmatprep.subr.mxu0 %v2199
    %v2201 = vand.u32 %v1763, 4294901760
    %v2202 = vsub.f32 %v1763, %v2201
    %v2203 = vand.u32 %v2202, 4294901760
    %v2204 = vsub.f32 %v2202, %v2203
    %v2205 = vand.u32 %v2204, 4294901760
    %2206 = vmatpush2.msra.mxu0 %v2205
    %v2207 = vand.u32 %v1762, 4294901760
    %v2208 = vsub.f32 %v1762, %v2207
    %v2209 = vand.u32 %v2208, 4294901760
    %v2210 = vsub.f32 %v2208, %v2209
    %v2211 = vand.u32 %v2210, 4294901760
    %2212 = vmatprep.subr.mxu0 %v2211
    %v2213 = vand.u32 %v1761, 4294901760
    %v2214 = vsub.f32 %v1761, %v2213
    %v2215 = vand.u32 %v2214, 4294901760
    %v2216 = vsub.f32 %v2214, %v2215
    %v2217 = vand.u32 %v2216, 4294901760
    %2218 = vmatpush2.msra.mxu0 %v2217
    %v2219 = vand.u32 %v1760, 4294901760
    %v2220 = vsub.f32 %v1760, %v2219
    %v2221 = vand.u32 %v2220, 4294901760
    %v2222 = vsub.f32 %v2220, %v2221
    %v2223 = vand.u32 %v2222, 4294901760
    %2224 = vmatprep.subr.mxu0 %v2223
    %v2225 = vand.u32 %v1759, 4294901760
    %v2226 = vsub.f32 %v1759, %v2225
    %v2227 = vand.u32 %v2226, 4294901760
    %v2228 = vsub.f32 %v2226, %v2227
    %v2229 = vand.u32 %v2228, 4294901760
    %2230 = vmatpush2.msra.mxu0 %v2229
    %v2231 = vand.u32 %v1758, 4294901760
    %v2232 = vsub.f32 %v1758, %v2231
    %v2233 = vand.u32 %v2232, 4294901760
    %v2234 = vsub.f32 %v2232, %v2233
    %v2235 = vand.u32 %v2234, 4294901760
    %2236 = vmatprep.subr.mxu0 %v2235
    %v2237 = vand.u32 %v1757, 4294901760
    %v2238 = vsub.f32 %v1757, %v2237
    %v2239 = vand.u32 %v2238, 4294901760
    %v2240 = vsub.f32 %v2238, %v2239
    %v2241 = vand.u32 %v2240, 4294901760
    %2242 = vmatpush2.msra.mxu0 %v2241
    %v2243 = vand.u32 %v1777, 4294901760
    %2244 = vmatprep.mubr.f32.mxu0 %v2243
    %v2245 = vand.u32 %v1721, 4294901760
    %2246 = vmatmul.mubr.f32.gmra.mxu0 %v2245
    %v2247 = vpop.f32.mrf.mxu0
    %v2248 = vadd.f32 %v1909, %v2247
    %v2249 = vpop.f32.mrf.mxu0
    %v2250 = vadd.f32 %v1911, %v2249
    %v2251 = vand.u32 %v1780, 4294901760
    %2252 = vmatprep.mubr.f32.mxu0 %v2251
    %v2253 = vand.u32 %v1723, 4294901760
    %2254 = vmatmul.mubr.f32.gmra.mxu0 %v2253
    %v2255 = vpop.f32.mrf.mxu0
    %v2256 = vadd.f32 %v1925, %v2255
    %v2257 = vpop.f32.mrf.mxu0
    %v2258 = vadd.f32 %v1927, %v2257
    %2259 = vdwg.mxu0
    %v2260 = vand.u32 %v1756, 4294901760
    %v2261 = vsub.f32 %v1756, %v2260
    %2262 = vmatprep.subr.mxu0 %v2261
    %v2263 = vand.u32 %v1755, 4294901760
    %v2264 = vsub.f32 %v1755, %v2263
    %2265 = vmatpush1.msra.mxu0 %v2264
    %v2266 = vand.u32 %v1754, 4294901760
    %v2267 = vsub.f32 %v1754, %v2266
    %2268 = vmatprep.subr.mxu0 %v2267
    %v2269 = vand.u32 %v1753, 4294901760
    %v2270 = vsub.f32 %v1753, %v2269
    %2271 = vmatpush1.msra.mxu0 %v2270
    %v2272 = vand.u32 %v1752, 4294901760
    %v2273 = vsub.f32 %v1752, %v2272
    %2274 = vmatprep.subr.mxu0 %v2273
    %v2275 = vand.u32 %v1751, 4294901760
    %v2276 = vsub.f32 %v1751, %v2275
    %2277 = vmatpush1.msra.mxu0 %v2276
    %v2278 = vand.u32 %v1750, 4294901760
    %v2279 = vsub.f32 %v1750, %v2278
    %2280 = vmatprep.subr.mxu0 %v2279
    %v2281 = vand.u32 %v1749, 4294901760
    %v2282 = vsub.f32 %v1749, %v2281
    %2283 = vmatpush1.msra.mxu0 %v2282
    %v2284 = vand.u32 %v1748, 4294901760
    %v2285 = vsub.f32 %v1748, %v2284
    %2286 = vmatprep.subr.mxu0 %v2285
    %v2287 = vand.u32 %v1747, 4294901760
    %v2288 = vsub.f32 %v1747, %v2287
    %2289 = vmatpush1.msra.mxu0 %v2288
    %v2290 = vand.u32 %v1746, 4294901760
    %v2291 = vsub.f32 %v1746, %v2290
    %2292 = vmatprep.subr.mxu0 %v2291
    %v2293 = vand.u32 %v1745, 4294901760
    %v2294 = vsub.f32 %v1745, %v2293
    %2295 = vmatpush1.msra.mxu0 %v2294
    %v2296 = vand.u32 %v1744, 4294901760
    %v2297 = vsub.f32 %v1744, %v2296
    %2298 = vmatprep.subr.mxu0 %v2297
    %v2299 = vand.u32 %v1743, 4294901760
    %v2300 = vsub.f32 %v1743, %v2299
    %2301 = vmatpush1.msra.mxu0 %v2300
    %v2302 = vand.u32 %v1742, 4294901760
    %v2303 = vsub.f32 %v1742, %v2302
    %2304 = vmatprep.subr.mxu0 %v2303
    %v2305 = vand.u32 %v1741, 4294901760
    %v2306 = vsub.f32 %v1741, %v2305
    %2307 = vmatpush1.msra.mxu0 %v2306
    %v2308 = vand.u32 %v1740, 4294901760
    %v2309 = vsub.f32 %v1740, %v2308
    %2310 = vmatprep.subr.mxu0 %v2309
    %v2311 = vand.u32 %v1739, 4294901760
    %v2312 = vsub.f32 %v1739, %v2311
    %2313 = vmatpush1.msra.mxu0 %v2312
    %v2314 = vand.u32 %v1738, 4294901760
    %v2315 = vsub.f32 %v1738, %v2314
    %2316 = vmatprep.subr.mxu0 %v2315
    %v2317 = vand.u32 %v1737, 4294901760
    %v2318 = vsub.f32 %v1737, %v2317
    %2319 = vmatpush1.msra.mxu0 %v2318
    %v2320 = vand.u32 %v1736, 4294901760
    %v2321 = vsub.f32 %v1736, %v2320
    %2322 = vmatprep.subr.mxu0 %v2321
    %v2323 = vand.u32 %v1735, 4294901760
    %v2324 = vsub.f32 %v1735, %v2323
    %2325 = vmatpush1.msra.mxu0 %v2324
    %v2326 = vand.u32 %v1734, 4294901760
    %v2327 = vsub.f32 %v1734, %v2326
    %2328 = vmatprep.subr.mxu0 %v2327
    %v2329 = vand.u32 %v1733, 4294901760
    %v2330 = vsub.f32 %v1733, %v2329
    %2331 = vmatpush1.msra.mxu0 %v2330
    %v2332 = vand.u32 %v1732, 4294901760
    %v2333 = vsub.f32 %v1732, %v2332
    %2334 = vmatprep.subr.mxu0 %v2333
    %v2335 = vand.u32 %v1731, 4294901760
    %v2336 = vsub.f32 %v1731, %v2335
    %2337 = vmatpush1.msra.mxu0 %v2336
    %v2338 = vand.u32 %v1730, 4294901760
    %v2339 = vsub.f32 %v1730, %v2338
    %2340 = vmatprep.subr.mxu0 %v2339
    %v2341 = vand.u32 %v1729, 4294901760
    %v2342 = vsub.f32 %v1729, %v2341
    %2343 = vmatpush1.msra.mxu0 %v2342
    %v2344 = vand.u32 %v1728, 4294901760
    %v2345 = vsub.f32 %v1728, %v2344
    %2346 = vmatprep.subr.mxu0 %v2345
    %v2347 = vand.u32 %v1727, 4294901760
    %v2348 = vsub.f32 %v1727, %v2347
    %2349 = vmatpush1.msra.mxu0 %v2348
    %v2350 = vand.u32 %v1726, 4294901760
    %v2351 = vsub.f32 %v1726, %v2350
    %2352 = vmatprep.subr.mxu0 %v2351
    %v2353 = vand.u32 %v1725, 4294901760
    %v2354 = vsub.f32 %v1725, %v2353
    %2355 = vmatpush1.msra.mxu0 %v2354
    %2356 = vmatprep.subr.mxu0 0.0
    %2357 = vmatpush2.msra.mxu0 0.0
    %2358 = vmatprep.subr.mxu0 0.0
    %2359 = vmatpush2.msra.mxu0 0.0
    %2360 = vmatprep.subr.mxu0 0.0
    %2361 = vmatpush2.msra.mxu0 0.0
    %2362 = vmatprep.subr.mxu0 0.0
    %2363 = vmatpush2.msra.mxu0 0.0
    %2364 = vmatprep.subr.mxu0 0.0
    %2365 = vmatpush2.msra.mxu0 0.0
    %2366 = vmatprep.subr.mxu0 0.0
    %2367 = vmatpush2.msra.mxu0 0.0
    %2368 = vmatprep.subr.mxu0 0.0
    %2369 = vmatpush2.msra.mxu0 0.0
    %v2370 = vand.u32 %v1774, 4294901760
    %v2371 = vsub.f32 %v1774, %v2370
    %2372 = vmatprep.subr.mxu0 %v2371
    %v2373 = vand.u32 %v1773, 4294901760
    %v2374 = vsub.f32 %v1773, %v2373
    %2375 = vmatpush2.msra.mxu0 %v2374
    %v2376 = vand.u32 %v1772, 4294901760
    %v2377 = vsub.f32 %v1772, %v2376
    %2378 = vmatprep.subr.mxu0 %v2377
    %v2379 = vand.u32 %v1771, 4294901760
    %v2380 = vsub.f32 %v1771, %v2379
    %2381 = vmatpush2.msra.mxu0 %v2380
    %v2382 = vand.u32 %v1770, 4294901760
    %v2383 = vsub.f32 %v1770, %v2382
    %2384 = vmatprep.subr.mxu0 %v2383
    %v2385 = vand.u32 %v1769, 4294901760
    %v2386 = vsub.f32 %v1769, %v2385
    %2387 = vmatpush2.msra.mxu0 %v2386
    %v2388 = vand.u32 %v1768, 4294901760
    %v2389 = vsub.f32 %v1768, %v2388
    %2390 = vmatprep.subr.mxu0 %v2389
    %v2391 = vand.u32 %v1767, 4294901760
    %v2392 = vsub.f32 %v1767, %v2391
    %2393 = vmatpush2.msra.mxu0 %v2392
    %v2394 = vand.u32 %v1766, 4294901760
    %v2395 = vsub.f32 %v1766, %v2394
    %2396 = vmatprep.subr.mxu0 %v2395
    %v2397 = vand.u32 %v1765, 4294901760
    %v2398 = vsub.f32 %v1765, %v2397
    %2399 = vmatpush2.msra.mxu0 %v2398
    %v2400 = vand.u32 %v1764, 4294901760
    %v2401 = vsub.f32 %v1764, %v2400
    %2402 = vmatprep.subr.mxu0 %v2401
    %v2403 = vand.u32 %v1763, 4294901760
    %v2404 = vsub.f32 %v1763, %v2403
    %2405 = vmatpush2.msra.mxu0 %v2404
    %v2406 = vand.u32 %v1762, 4294901760
    %v2407 = vsub.f32 %v1762, %v2406
    %2408 = vmatprep.subr.mxu0 %v2407
    %v2409 = vand.u32 %v1761, 4294901760
    %v2410 = vsub.f32 %v1761, %v2409
    %2411 = vmatpush2.msra.mxu0 %v2410
    %v2412 = vand.u32 %v1760, 4294901760
    %v2413 = vsub.f32 %v1760, %v2412
    %2414 = vmatprep.subr.mxu0 %v2413
    %v2415 = vand.u32 %v1759, 4294901760
    %v2416 = vsub.f32 %v1759, %v2415
    %2417 = vmatpush2.msra.mxu0 %v2416
    %v2418 = vand.u32 %v1758, 4294901760
    %v2419 = vsub.f32 %v1758, %v2418
    %2420 = vmatprep.subr.mxu0 %v2419
    %v2421 = vand.u32 %v1757, 4294901760
    %v2422 = vsub.f32 %v1757, %v2421
    %2423 = vmatpush2.msra.mxu0 %v2422
    %v2424 = vand.u32 %v1777, 4294901760
    %v2425 = vsub.f32 %v1777, %v2424
    %2426 = vmatprep.mubr.f32.mxu0 %v2425
    %v2427 = vand.u32 %v1721, 4294901760
    %v2428 = vsub.f32 %v1721, %v2427
    %2429 = vmatmul.mubr.f32.gmra.mxu0 %v2428
    %v2430 = vpop.f32.mrf.mxu0
    %v2431 = vadd.f32 %v2248, %v2430
    %v2432 = vpop.f32.mrf.mxu0
    %v2433 = vadd.f32 %v2250, %v2432
    %v2434 = vand.u32 %v1780, 4294901760
    %v2435 = vsub.f32 %v1780, %v2434
    %2436 = vmatprep.mubr.f32.mxu0 %v2435
    %v2437 = vand.u32 %v1723, 4294901760
    %v2438 = vsub.f32 %v1723, %v2437
    %2439 = vmatmul.mubr.f32.gmra.mxu0 %v2438
    %v2440 = vpop.f32.mrf.mxu0
    %v2441 = vadd.f32 %v2256, %v2440
    %v2442 = vpop.f32.mrf.mxu0
    %v2443 = vadd.f32 %v2258, %v2442
    %2444 = vdwg.mxu0
    %v2445 = vand.u32 %v1756, 4294901760
    %2446 = vmatprep.subr.mxu0 %v2445
    %v2447 = vand.u32 %v1755, 4294901760
    %2448 = vmatpush1.msra.mxu0 %v2447
    %v2449 = vand.u32 %v1754, 4294901760
    %2450 = vmatprep.subr.mxu0 %v2449
    %v2451 = vand.u32 %v1753, 4294901760
    %2452 = vmatpush1.msra.mxu0 %v2451
    %v2453 = vand.u32 %v1752, 4294901760
    %2454 = vmatprep.subr.mxu0 %v2453
    %v2455 = vand.u32 %v1751, 4294901760
    %2456 = vmatpush1.msra.mxu0 %v2455
    %v2457 = vand.u32 %v1750, 4294901760
    %2458 = vmatprep.subr.mxu0 %v2457
    %v2459 = vand.u32 %v1749, 4294901760
    %2460 = vmatpush1.msra.mxu0 %v2459
    %v2461 = vand.u32 %v1748, 4294901760
    %2462 = vmatprep.subr.mxu0 %v2461
    %v2463 = vand.u32 %v1747, 4294901760
    %2464 = vmatpush1.msra.mxu0 %v2463
    %v2465 = vand.u32 %v1746, 4294901760
    %2466 = vmatprep.subr.mxu0 %v2465
    %v2467 = vand.u32 %v1745, 4294901760
    %2468 = vmatpush1.msra.mxu0 %v2467
    %v2469 = vand.u32 %v1744, 4294901760
    %2470 = vmatprep.subr.mxu0 %v2469
    %v2471 = vand.u32 %v1743, 4294901760
    %2472 = vmatpush1.msra.mxu0 %v2471
    %v2473 = vand.u32 %v1742, 4294901760
    %2474 = vmatprep.subr.mxu0 %v2473
    %v2475 = vand.u32 %v1741, 4294901760
    %2476 = vmatpush1.msra.mxu0 %v2475
    %v2477 = vand.u32 %v1740, 4294901760
    %2478 = vmatprep.subr.mxu0 %v2477
    %v2479 = vand.u32 %v1739, 4294901760
    %2480 = vmatpush1.msra.mxu0 %v2479
    %v2481 = vand.u32 %v1738, 4294901760
    %2482 = vmatprep.subr.mxu0 %v2481
    %v2483 = vand.u32 %v1737, 4294901760
    %2484 = vmatpush1.msra.mxu0 %v2483
    %v2485 = vand.u32 %v1736, 4294901760
    %2486 = vmatprep.subr.mxu0 %v2485
    %v2487 = vand.u32 %v1735, 4294901760
    %2488 = vmatpush1.msra.mxu0 %v2487
    %v2489 = vand.u32 %v1734, 4294901760
    %2490 = vmatprep.subr.mxu0 %v2489
    %v2491 = vand.u32 %v1733, 4294901760
    %2492 = vmatpush1.msra.mxu0 %v2491
    %v2493 = vand.u32 %v1732, 4294901760
    %2494 = vmatprep.subr.mxu0 %v2493
    %v2495 = vand.u32 %v1731, 4294901760
    %2496 = vmatpush1.msra.mxu0 %v2495
    %v2497 = vand.u32 %v1730, 4294901760
    %2498 = vmatprep.subr.mxu0 %v2497
    %v2499 = vand.u32 %v1729, 4294901760
    %2500 = vmatpush1.msra.mxu0 %v2499
    %v2501 = vand.u32 %v1728, 4294901760
    %2502 = vmatprep.subr.mxu0 %v2501
    %v2503 = vand.u32 %v1727, 4294901760
    %2504 = vmatpush1.msra.mxu0 %v2503
    %v2505 = vand.u32 %v1726, 4294901760
    %2506 = vmatprep.subr.mxu0 %v2505
    %v2507 = vand.u32 %v1725, 4294901760
    %2508 = vmatpush1.msra.mxu0 %v2507
    %2509 = vmatprep.subr.mxu0 0.0
    %2510 = vmatpush2.msra.mxu0 0.0
    %2511 = vmatprep.subr.mxu0 0.0
    %2512 = vmatpush2.msra.mxu0 0.0
    %2513 = vmatprep.subr.mxu0 0.0
    %2514 = vmatpush2.msra.mxu0 0.0
    %2515 = vmatprep.subr.mxu0 0.0
    %2516 = vmatpush2.msra.mxu0 0.0
    %2517 = vmatprep.subr.mxu0 0.0
    %2518 = vmatpush2.msra.mxu0 0.0
    %2519 = vmatprep.subr.mxu0 0.0
    %2520 = vmatpush2.msra.mxu0 0.0
    %2521 = vmatprep.subr.mxu0 0.0
    %2522 = vmatpush2.msra.mxu0 0.0
    %v2523 = vand.u32 %v1774, 4294901760
    %2524 = vmatprep.subr.mxu0 %v2523
    %v2525 = vand.u32 %v1773, 4294901760
    %2526 = vmatpush2.msra.mxu0 %v2525
    %v2527 = vand.u32 %v1772, 4294901760
    %2528 = vmatprep.subr.mxu0 %v2527
    %v2529 = vand.u32 %v1771, 4294901760
    %2530 = vmatpush2.msra.mxu0 %v2529
    %v2531 = vand.u32 %v1770, 4294901760
    %2532 = vmatprep.subr.mxu0 %v2531
    %v2533 = vand.u32 %v1769, 4294901760
    %2534 = vmatpush2.msra.mxu0 %v2533
    %v2535 = vand.u32 %v1768, 4294901760
    %2536 = vmatprep.subr.mxu0 %v2535
    %v2537 = vand.u32 %v1767, 4294901760
    %2538 = vmatpush2.msra.mxu0 %v2537
    %v2539 = vand.u32 %v1766, 4294901760
    %2540 = vmatprep.subr.mxu0 %v2539
    %v2541 = vand.u32 %v1765, 4294901760
    %2542 = vmatpush2.msra.mxu0 %v2541
    %v2543 = vand.u32 %v1764, 4294901760
    %2544 = vmatprep.subr.mxu0 %v2543
    %v2545 = vand.u32 %v1763, 4294901760
    %2546 = vmatpush2.msra.mxu0 %v2545
    %v2547 = vand.u32 %v1762, 4294901760
    %2548 = vmatprep.subr.mxu0 %v2547
    %v2549 = vand.u32 %v1761, 4294901760
    %2550 = vmatpush2.msra.mxu0 %v2549
    %v2551 = vand.u32 %v1760, 4294901760
    %2552 = vmatprep.subr.mxu0 %v2551
    %v2553 = vand.u32 %v1759, 4294901760
    %2554 = vmatpush2.msra.mxu0 %v2553
    %v2555 = vand.u32 %v1758, 4294901760
    %2556 = vmatprep.subr.mxu0 %v2555
    %v2557 = vand.u32 %v1757, 4294901760
    %2558 = vmatpush2.msra.mxu0 %v2557
    %v2559 = vand.u32 %v1777, 4294901760
    %v2560 = vsub.f32 %v1777, %v2559
    %v2561 = vand.u32 %v2560, 4294901760
    %2562 = vmatprep.mubr.f32.mxu0 %v2561
    %v2563 = vand.u32 %v1721, 4294901760
    %v2564 = vsub.f32 %v1721, %v2563
    %v2565 = vand.u32 %v2564, 4294901760
    %2566 = vmatmul.mubr.f32.gmra.mxu0 %v2565
    %v2567 = vpop.f32.mrf.mxu0
    %v2568 = vadd.f32 %v2431, %v2567
    %v2569 = vpop.f32.mrf.mxu0
    %v2570 = vadd.f32 %v2433, %v2569
    %v2571 = vand.u32 %v1780, 4294901760
    %v2572 = vsub.f32 %v1780, %v2571
    %v2573 = vand.u32 %v2572, 4294901760
    %2574 = vmatprep.mubr.f32.mxu0 %v2573
    %v2575 = vand.u32 %v1723, 4294901760
    %v2576 = vsub.f32 %v1723, %v2575
    %v2577 = vand.u32 %v2576, 4294901760
    %2578 = vmatmul.mubr.f32.gmra.mxu0 %v2577
    %v2579 = vpop.f32.mrf.mxu0
    %v2580 = vadd.f32 %v2441, %v2579
    %v2581 = vpop.f32.mrf.mxu0
    %v2582 = vadd.f32 %v2443, %v2581
    %2583 = vdwg.mxu0
    %v2584 = vand.u32 %v1756, 4294901760
    %v2585 = vsub.f32 %v1756, %v2584
    %v2586 = vand.u32 %v2585, 4294901760
    %2587 = vmatprep.subr.mxu0 %v2586
    %v2588 = vand.u32 %v1755, 4294901760
    %v2589 = vsub.f32 %v1755, %v2588
    %v2590 = vand.u32 %v2589, 4294901760
    %2591 = vmatpush1.msra.mxu0 %v2590
    %v2592 = vand.u32 %v1754, 4294901760
    %v2593 = vsub.f32 %v1754, %v2592
    %v2594 = vand.u32 %v2593, 4294901760
    %2595 = vmatprep.subr.mxu0 %v2594
    %v2596 = vand.u32 %v1753, 4294901760
    %v2597 = vsub.f32 %v1753, %v2596
    %v2598 = vand.u32 %v2597, 4294901760
    %2599 = vmatpush1.msra.mxu0 %v2598
    %v2600 = vand.u32 %v1752, 4294901760
    %v2601 = vsub.f32 %v1752, %v2600
    %v2602 = vand.u32 %v2601, 4294901760
    %2603 = vmatprep.subr.mxu0 %v2602
    %v2604 = vand.u32 %v1751, 4294901760
    %v2605 = vsub.f32 %v1751, %v2604
    %v2606 = vand.u32 %v2605, 4294901760
    %2607 = vmatpush1.msra.mxu0 %v2606
    %v2608 = vand.u32 %v1750, 4294901760
    %v2609 = vsub.f32 %v1750, %v2608
    %v2610 = vand.u32 %v2609, 4294901760
    %2611 = vmatprep.subr.mxu0 %v2610
    %v2612 = vand.u32 %v1749, 4294901760
    %v2613 = vsub.f32 %v1749, %v2612
    %v2614 = vand.u32 %v2613, 4294901760
    %2615 = vmatpush1.msra.mxu0 %v2614
    %v2616 = vand.u32 %v1748, 4294901760
    %v2617 = vsub.f32 %v1748, %v2616
    %v2618 = vand.u32 %v2617, 4294901760
    %2619 = vmatprep.subr.mxu0 %v2618
    %v2620 = vand.u32 %v1747, 4294901760
    %v2621 = vsub.f32 %v1747, %v2620
    %v2622 = vand.u32 %v2621, 4294901760
    %2623 = vmatpush1.msra.mxu0 %v2622
    %v2624 = vand.u32 %v1746, 4294901760
    %v2625 = vsub.f32 %v1746, %v2624
    %v2626 = vand.u32 %v2625, 4294901760
    %2627 = vmatprep.subr.mxu0 %v2626
    %v2628 = vand.u32 %v1745, 4294901760
    %v2629 = vsub.f32 %v1745, %v2628
    %v2630 = vand.u32 %v2629, 4294901760
    %2631 = vmatpush1.msra.mxu0 %v2630
    %v2632 = vand.u32 %v1744, 4294901760
    %v2633 = vsub.f32 %v1744, %v2632
    %v2634 = vand.u32 %v2633, 4294901760
    %2635 = vmatprep.subr.mxu0 %v2634
    %v2636 = vand.u32 %v1743, 4294901760
    %v2637 = vsub.f32 %v1743, %v2636
    %v2638 = vand.u32 %v2637, 4294901760
    %2639 = vmatpush1.msra.mxu0 %v2638
    %v2640 = vand.u32 %v1742, 4294901760
    %v2641 = vsub.f32 %v1742, %v2640
    %v2642 = vand.u32 %v2641, 4294901760
    %2643 = vmatprep.subr.mxu0 %v2642
    %v2644 = vand.u32 %v1741, 4294901760
    %v2645 = vsub.f32 %v1741, %v2644
    %v2646 = vand.u32 %v2645, 4294901760
    %2647 = vmatpush1.msra.mxu0 %v2646
    %v2648 = vand.u32 %v1740, 4294901760
    %v2649 = vsub.f32 %v1740, %v2648
    %v2650 = vand.u32 %v2649, 4294901760
    %2651 = vmatprep.subr.mxu0 %v2650
    %v2652 = vand.u32 %v1739, 4294901760
    %v2653 = vsub.f32 %v1739, %v2652
    %v2654 = vand.u32 %v2653, 4294901760
    %2655 = vmatpush1.msra.mxu0 %v2654
    %v2656 = vand.u32 %v1738, 4294901760
    %v2657 = vsub.f32 %v1738, %v2656
    %v2658 = vand.u32 %v2657, 4294901760
    %2659 = vmatprep.subr.mxu0 %v2658
    %v2660 = vand.u32 %v1737, 4294901760
    %v2661 = vsub.f32 %v1737, %v2660
    %v2662 = vand.u32 %v2661, 4294901760
    %2663 = vmatpush1.msra.mxu0 %v2662
    %v2664 = vand.u32 %v1736, 4294901760
    %v2665 = vsub.f32 %v1736, %v2664
    %v2666 = vand.u32 %v2665, 4294901760
    %2667 = vmatprep.subr.mxu0 %v2666
    %v2668 = vand.u32 %v1735, 4294901760
    %v2669 = vsub.f32 %v1735, %v2668
    %v2670 = vand.u32 %v2669, 4294901760
    %2671 = vmatpush1.msra.mxu0 %v2670
    %v2672 = vand.u32 %v1734, 4294901760
    %v2673 = vsub.f32 %v1734, %v2672
    %v2674 = vand.u32 %v2673, 4294901760
    %2675 = vmatprep.subr.mxu0 %v2674
    %v2676 = vand.u32 %v1733, 4294901760
    %v2677 = vsub.f32 %v1733, %v2676
    %v2678 = vand.u32 %v2677, 4294901760
    %2679 = vmatpush1.msra.mxu0 %v2678
    %v2680 = vand.u32 %v1732, 4294901760
    %v2681 = vsub.f32 %v1732, %v2680
    %v2682 = vand.u32 %v2681, 4294901760
    %2683 = vmatprep.subr.mxu0 %v2682
    %v2684 = vand.u32 %v1731, 4294901760
    %v2685 = vsub.f32 %v1731, %v2684
    %v2686 = vand.u32 %v2685, 4294901760
    %2687 = vmatpush1.msra.mxu0 %v2686
    %v2688 = vand.u32 %v1730, 4294901760
    %v2689 = vsub.f32 %v1730, %v2688
    %v2690 = vand.u32 %v2689, 4294901760
    %2691 = vmatprep.subr.mxu0 %v2690
    %v2692 = vand.u32 %v1729, 4294901760
    %v2693 = vsub.f32 %v1729, %v2692
    %v2694 = vand.u32 %v2693, 4294901760
    %2695 = vmatpush1.msra.mxu0 %v2694
    %v2696 = vand.u32 %v1728, 4294901760
    %v2697 = vsub.f32 %v1728, %v2696
    %v2698 = vand.u32 %v2697, 4294901760
    %2699 = vmatprep.subr.mxu0 %v2698
    %v2700 = vand.u32 %v1727, 4294901760
    %v2701 = vsub.f32 %v1727, %v2700
    %v2702 = vand.u32 %v2701, 4294901760
    %2703 = vmatpush1.msra.mxu0 %v2702
    %v2704 = vand.u32 %v1726, 4294901760
    %v2705 = vsub.f32 %v1726, %v2704
    %v2706 = vand.u32 %v2705, 4294901760
    %2707 = vmatprep.subr.mxu0 %v2706
    %v2708 = vand.u32 %v1725, 4294901760
    %v2709 = vsub.f32 %v1725, %v2708
    %v2710 = vand.u32 %v2709, 4294901760
    %2711 = vmatpush1.msra.mxu0 %v2710
    %2712 = vmatprep.subr.mxu0 0.0
    %2713 = vmatpush2.msra.mxu0 0.0
    %2714 = vmatprep.subr.mxu0 0.0
    %2715 = vmatpush2.msra.mxu0 0.0
    %2716 = vmatprep.subr.mxu0 0.0
    %2717 = vmatpush2.msra.mxu0 0.0
    %2718 = vmatprep.subr.mxu0 0.0
    %2719 = vmatpush2.msra.mxu0 0.0
    %2720 = vmatprep.subr.mxu0 0.0
    %2721 = vmatpush2.msra.mxu0 0.0
    %2722 = vmatprep.subr.mxu0 0.0
    %2723 = vmatpush2.msra.mxu0 0.0
    %2724 = vmatprep.subr.mxu0 0.0
    %2725 = vmatpush2.msra.mxu0 0.0
    %v2726 = vand.u32 %v1774, 4294901760
    %v2727 = vsub.f32 %v1774, %v2726
    %v2728 = vand.u32 %v2727, 4294901760
    %2729 = vmatprep.subr.mxu0 %v2728
    %v2730 = vand.u32 %v1773, 4294901760
    %v2731 = vsub.f32 %v1773, %v2730
    %v2732 = vand.u32 %v2731, 4294901760
    %2733 = vmatpush2.msra.mxu0 %v2732
    %v2734 = vand.u32 %v1772, 4294901760
    %v2735 = vsub.f32 %v1772, %v2734
    %v2736 = vand.u32 %v2735, 4294901760
    %2737 = vmatprep.subr.mxu0 %v2736
    %v2738 = vand.u32 %v1771, 4294901760
    %v2739 = vsub.f32 %v1771, %v2738
    %v2740 = vand.u32 %v2739, 4294901760
    %2741 = vmatpush2.msra.mxu0 %v2740
    %v2742 = vand.u32 %v1770, 4294901760
    %v2743 = vsub.f32 %v1770, %v2742
    %v2744 = vand.u32 %v2743, 4294901760
    %2745 = vmatprep.subr.mxu0 %v2744
    %v2746 = vand.u32 %v1769, 4294901760
    %v2747 = vsub.f32 %v1769, %v2746
    %v2748 = vand.u32 %v2747, 4294901760
    %2749 = vmatpush2.msra.mxu0 %v2748
    %v2750 = vand.u32 %v1768, 4294901760
    %v2751 = vsub.f32 %v1768, %v2750
    %v2752 = vand.u32 %v2751, 4294901760
    %2753 = vmatprep.subr.mxu0 %v2752
    %v2754 = vand.u32 %v1767, 4294901760
    %v2755 = vsub.f32 %v1767, %v2754
    %v2756 = vand.u32 %v2755, 4294901760
    %2757 = vmatpush2.msra.mxu0 %v2756
    %v2758 = vand.u32 %v1766, 4294901760
    %v2759 = vsub.f32 %v1766, %v2758
    %v2760 = vand.u32 %v2759, 4294901760
    %2761 = vmatprep.subr.mxu0 %v2760
    %v2762 = vand.u32 %v1765, 4294901760
    %v2763 = vsub.f32 %v1765, %v2762
    %v2764 = vand.u32 %v2763, 4294901760
    %2765 = vmatpush2.msra.mxu0 %v2764
    %v2766 = vand.u32 %v1764, 4294901760
    %v2767 = vsub.f32 %v1764, %v2766
    %v2768 = vand.u32 %v2767, 4294901760
    %2769 = vmatprep.subr.mxu0 %v2768
    %v2770 = vand.u32 %v1763, 4294901760
    %v2771 = vsub.f32 %v1763, %v2770
    %v2772 = vand.u32 %v2771, 4294901760
    %2773 = vmatpush2.msra.mxu0 %v2772
    %v2774 = vand.u32 %v1762, 4294901760
    %v2775 = vsub.f32 %v1762, %v2774
    %v2776 = vand.u32 %v2775, 4294901760
    %2777 = vmatprep.subr.mxu0 %v2776
    %v2778 = vand.u32 %v1761, 4294901760
    %v2779 = vsub.f32 %v1761, %v2778
    %v2780 = vand.u32 %v2779, 4294901760
    %2781 = vmatpush2.msra.mxu0 %v2780
    %v2782 = vand.u32 %v1760, 4294901760
    %v2783 = vsub.f32 %v1760, %v2782
    %v2784 = vand.u32 %v2783, 4294901760
    %2785 = vmatprep.subr.mxu0 %v2784
    %v2786 = vand.u32 %v1759, 4294901760
    %v2787 = vsub.f32 %v1759, %v2786
    %v2788 = vand.u32 %v2787, 4294901760
    %2789 = vmatpush2.msra.mxu0 %v2788
    %v2790 = vand.u32 %v1758, 4294901760
    %v2791 = vsub.f32 %v1758, %v2790
    %v2792 = vand.u32 %v2791, 4294901760
    %2793 = vmatprep.subr.mxu0 %v2792
    %v2794 = vand.u32 %v1757, 4294901760
    %v2795 = vsub.f32 %v1757, %v2794
    %v2796 = vand.u32 %v2795, 4294901760
    %2797 = vmatpush2.msra.mxu0 %v2796
    %v2798 = vand.u32 %v1777, 4294901760
    %2799 = vmatprep.mubr.f32.mxu0 %v2798
    %v2800 = vand.u32 %v1721, 4294901760
    %2801 = vmatmul.mubr.f32.gmra.mxu0 %v2800
    %v2802 = vpop.f32.mrf.mxu0
    %v2803 = vadd.f32 %v2568, %v2802
    %v2804 = vpop.f32.mrf.mxu0
    %v2805 = vadd.f32 %v2570, %v2804
    %v2806 = vand.u32 %v1780, 4294901760
    %2807 = vmatprep.mubr.f32.mxu0 %v2806
    %v2808 = vand.u32 %v1723, 4294901760
    %2809 = vmatmul.mubr.f32.gmra.mxu0 %v2808
    %v2810 = vpop.f32.mrf.mxu0
    %v2811 = vadd.f32 %v2580, %v2810
    %v2812 = vpop.f32.mrf.mxu0
    %v2813 = vadd.f32 %v2582, %v2812
    %2814 = vdwg.mxu0
    %v2815 = vand.u32 %v1756, 4294901760
    %2816 = vmatprep.subr.mxu0 %v2815
    %v2817 = vand.u32 %v1755, 4294901760
    %2818 = vmatpush1.msra.mxu0 %v2817
    %v2819 = vand.u32 %v1754, 4294901760
    %2820 = vmatprep.subr.mxu0 %v2819
    %v2821 = vand.u32 %v1753, 4294901760
    %2822 = vmatpush1.msra.mxu0 %v2821
    %v2823 = vand.u32 %v1752, 4294901760
    %2824 = vmatprep.subr.mxu0 %v2823
    %v2825 = vand.u32 %v1751, 4294901760
    %2826 = vmatpush1.msra.mxu0 %v2825
    %v2827 = vand.u32 %v1750, 4294901760
    %2828 = vmatprep.subr.mxu0 %v2827
    %v2829 = vand.u32 %v1749, 4294901760
    %2830 = vmatpush1.msra.mxu0 %v2829
    %v2831 = vand.u32 %v1748, 4294901760
    %2832 = vmatprep.subr.mxu0 %v2831
    %v2833 = vand.u32 %v1747, 4294901760
    %2834 = vmatpush1.msra.mxu0 %v2833
    %v2835 = vand.u32 %v1746, 4294901760
    %2836 = vmatprep.subr.mxu0 %v2835
    %v2837 = vand.u32 %v1745, 4294901760
    %2838 = vmatpush1.msra.mxu0 %v2837
    %v2839 = vand.u32 %v1744, 4294901760
    %2840 = vmatprep.subr.mxu0 %v2839
    %v2841 = vand.u32 %v1743, 4294901760
    %2842 = vmatpush1.msra.mxu0 %v2841
    %v2843 = vand.u32 %v1742, 4294901760
    %2844 = vmatprep.subr.mxu0 %v2843
    %v2845 = vand.u32 %v1741, 4294901760
    %2846 = vmatpush1.msra.mxu0 %v2845
    %v2847 = vand.u32 %v1740, 4294901760
    %2848 = vmatprep.subr.mxu0 %v2847
    %v2849 = vand.u32 %v1739, 4294901760
    %2850 = vmatpush1.msra.mxu0 %v2849
    %v2851 = vand.u32 %v1738, 4294901760
    %2852 = vmatprep.subr.mxu0 %v2851
    %v2853 = vand.u32 %v1737, 4294901760
    %2854 = vmatpush1.msra.mxu0 %v2853
    %v2855 = vand.u32 %v1736, 4294901760
    %2856 = vmatprep.subr.mxu0 %v2855
    %v2857 = vand.u32 %v1735, 4294901760
    %2858 = vmatpush1.msra.mxu0 %v2857
    %v2859 = vand.u32 %v1734, 4294901760
    %2860 = vmatprep.subr.mxu0 %v2859
    %v2861 = vand.u32 %v1733, 4294901760
    %2862 = vmatpush1.msra.mxu0 %v2861
    %v2863 = vand.u32 %v1732, 4294901760
    %2864 = vmatprep.subr.mxu0 %v2863
    %v2865 = vand.u32 %v1731, 4294901760
    %2866 = vmatpush1.msra.mxu0 %v2865
    %v2867 = vand.u32 %v1730, 4294901760
    %2868 = vmatprep.subr.mxu0 %v2867
    %v2869 = vand.u32 %v1729, 4294901760
    %2870 = vmatpush1.msra.mxu0 %v2869
    %v2871 = vand.u32 %v1728, 4294901760
    %2872 = vmatprep.subr.mxu0 %v2871
    %v2873 = vand.u32 %v1727, 4294901760
    %2874 = vmatpush1.msra.mxu0 %v2873
    %v2875 = vand.u32 %v1726, 4294901760
    %2876 = vmatprep.subr.mxu0 %v2875
    %v2877 = vand.u32 %v1725, 4294901760
    %2878 = vmatpush1.msra.mxu0 %v2877
    %2879 = vmatprep.subr.mxu0 0.0
    %2880 = vmatpush2.msra.mxu0 0.0
    %2881 = vmatprep.subr.mxu0 0.0
    %2882 = vmatpush2.msra.mxu0 0.0
    %2883 = vmatprep.subr.mxu0 0.0
    %2884 = vmatpush2.msra.mxu0 0.0
    %2885 = vmatprep.subr.mxu0 0.0
    %2886 = vmatpush2.msra.mxu0 0.0
    %2887 = vmatprep.subr.mxu0 0.0
    %2888 = vmatpush2.msra.mxu0 0.0
    %2889 = vmatprep.subr.mxu0 0.0
    %2890 = vmatpush2.msra.mxu0 0.0
    %2891 = vmatprep.subr.mxu0 0.0
    %2892 = vmatpush2.msra.mxu0 0.0
    %v2893 = vand.u32 %v1774, 4294901760
    %2894 = vmatprep.subr.mxu0 %v2893
    %v2895 = vand.u32 %v1773, 4294901760
    %2896 = vmatpush2.msra.mxu0 %v2895
    %v2897 = vand.u32 %v1772, 4294901760
    %2898 = vmatprep.subr.mxu0 %v2897
    %v2899 = vand.u32 %v1771, 4294901760
    %2900 = vmatpush2.msra.mxu0 %v2899
    %v2901 = vand.u32 %v1770, 4294901760
    %2902 = vmatprep.subr.mxu0 %v2901
    %v2903 = vand.u32 %v1769, 4294901760
    %2904 = vmatpush2.msra.mxu0 %v2903
    %v2905 = vand.u32 %v1768, 4294901760
    %2906 = vmatprep.subr.mxu0 %v2905
    %v2907 = vand.u32 %v1767, 4294901760
    %2908 = vmatpush2.msra.mxu0 %v2907
    %v2909 = vand.u32 %v1766, 4294901760
    %2910 = vmatprep.subr.mxu0 %v2909
    %v2911 = vand.u32 %v1765, 4294901760
    %2912 = vmatpush2.msra.mxu0 %v2911
    %v2913 = vand.u32 %v1764, 4294901760
    %2914 = vmatprep.subr.mxu0 %v2913
    %v2915 = vand.u32 %v1763, 4294901760
    %2916 = vmatpush2.msra.mxu0 %v2915
    %v2917 = vand.u32 %v1762, 4294901760
    %2918 = vmatprep.subr.mxu0 %v2917
    %v2919 = vand.u32 %v1761, 4294901760
    %2920 = vmatpush2.msra.mxu0 %v2919
    %v2921 = vand.u32 %v1760, 4294901760
    %2922 = vmatprep.subr.mxu0 %v2921
    %v2923 = vand.u32 %v1759, 4294901760
    %2924 = vmatpush2.msra.mxu0 %v2923
    %v2925 = vand.u32 %v1758, 4294901760
    %2926 = vmatprep.subr.mxu0 %v2925
    %v2927 = vand.u32 %v1757, 4294901760
    %2928 = vmatpush2.msra.mxu0 %v2927
    %v2929 = vand.u32 %v1777, 4294901760
    %2930 = vmatprep.mubr.f32.mxu0 %v2929
    %v2931 = vand.u32 %v1721, 4294901760
    %2932 = vmatmul.mubr.f32.gmra.mxu0 %v2931
    %v2933 = vpop.f32.mrf.mxu0
    %v2934 = vadd.f32 %v2803, %v2933
    %v2935 = vpop.f32.mrf.mxu0
    %v2936 = vadd.f32 %v2805, %v2935
    %v2937 = vand.u32 %v1780, 4294901760
    %2938 = vmatprep.mubr.f32.mxu0 %v2937
    %v2939 = vand.u32 %v1723, 4294901760
    %2940 = vmatmul.mubr.f32.gmra.mxu0 %v2939
    %v2941 = vpop.f32.mrf.mxu0
    %v2942 = vadd.f32 %v2811, %v2941
    %v2943 = vpop.f32.mrf.mxu0
    %v2944 = vadd.f32 %v2813, %v2943
    %2945 = vdwg.mxu0
    %v2946 = vsub.f32 1.0, %v1241
    %v2947 = vsub.f32 1.0, %v1242
    %v2948 = vmul.f32 %v2942, %v2946
    %v2949 = vmul.f32 %v2944, %v2947
    %v2950 = vmul.f32 %v2934, %v1241
    %v2951 = vmul.f32 %v2936, %v1242
    %v2952 = vadd.f32 %v2948, %v2950
    %v2953 = vadd.f32 %v2949, %v2951
    %v2954 = vsub.f32 1.0, %v1252
    %v2955 = vsub.f32 1.0, %v1254
    %v2956 = vmul.f32 %v67, %v2954
    %v2957 = vmul.f32 %v68, %v2955
    %v2958 = vmul.f32 %v2952, %v1252
    %v2959 = vmul.f32 %v2953, %v1254
    %v2960 = vadd.f32 %v2956, %v2958
    %v2961 = vadd.f32 %v2957, %v2959
    %v2963 = vsel %vm272, %v267, 0
    %2965 = vmatprep.subr.mxu0 0.0
    %2966 = vmatpush1.msra.mxu0 0.0
    %2967 = vmatprep.subr.mxu0 0.0
    %2968 = vmatpush1.msra.mxu0 0.0
    %2969 = vmatprep.subr.mxu0 0.0
    %2970 = vmatpush1.msra.mxu0 0.0
    %2971 = vmatprep.subr.mxu0 0.0
    %2972 = vmatpush1.msra.mxu0 0.0
    %2973 = vmatprep.subr.mxu0 0.0
    %2974 = vmatpush1.msra.mxu0 0.0
    %2975 = vmatprep.subr.mxu0 0.0
    %2976 = vmatpush1.msra.mxu0 0.0
    %2977 = vmatprep.subr.mxu0 0.0
    %2978 = vmatpush1.msra.mxu0 0.0
    %2979 = vmatprep.subr.mxu0 0.0
    %2980 = vmatpush1.msra.mxu0 0.0
    %2981 = vmatprep.subr.mxu0 0.0
    %2982 = vmatpush1.msra.mxu0 0.0
    %2983 = vmatprep.subr.mxu0 0.0
    %2984 = vmatpush1.msra.mxu0 0.0
    %2985 = vmatprep.subr.mxu0 0.0
    %2986 = vmatpush1.msra.mxu0 0.0
    %2987 = vmatprep.subr.mxu0 0.0
    %2988 = vmatpush1.msra.mxu0 0.0
    %2989 = vmatprep.subr.mxu0 0.0
    %2990 = vmatpush1.msra.mxu0 0.0
    %2991 = vmatprep.subr.mxu0 0.0
    %2992 = vmatpush1.msra.mxu0 0.0
    %2993 = vmatprep.subr.mxu0 0.0
    %2994 = vmatpush1.msra.mxu0 0.0
    %v2995 = vand.u32 %v68, 4294901760
    %2996 = vmatprep.subr.mxu0 %v2995
    %v2997 = vand.u32 %v67, 4294901760
    %2998 = vmatpush1.msra.mxu0 %v2997
    %2999 = vmatprep.subr.mxu0 0.0
    %3000 = vmatpush2.msra.mxu0 0.0
    %3001 = vmatprep.subr.mxu0 0.0
    %3002 = vmatpush2.msra.mxu0 0.0
    %3003 = vmatprep.subr.mxu0 0.0
    %3004 = vmatpush2.msra.mxu0 0.0
    %3005 = vmatprep.subr.mxu0 0.0
    %3006 = vmatpush2.msra.mxu0 0.0
    %3007 = vmatprep.subr.mxu0 0.0
    %3008 = vmatpush2.msra.mxu0 0.0
    %3009 = vmatprep.subr.mxu0 0.0
    %3010 = vmatpush2.msra.mxu0 0.0
    %3011 = vmatprep.subr.mxu0 0.0
    %3012 = vmatpush2.msra.mxu0 0.0
    %3013 = vmatprep.subr.mxu0 0.0
    %3014 = vmatpush2.msra.mxu0 0.0
    %3015 = vmatprep.subr.mxu0 0.0
    %3016 = vmatpush2.msra.mxu0 0.0
    %3017 = vmatprep.subr.mxu0 0.0
    %3018 = vmatpush2.msra.mxu0 0.0
    %3019 = vmatprep.subr.mxu0 0.0
    %3020 = vmatpush2.msra.mxu0 0.0
    %3021 = vmatprep.subr.mxu0 0.0
    %3022 = vmatpush2.msra.mxu0 0.0
    %3023 = vmatprep.subr.mxu0 0.0
    %3024 = vmatpush2.msra.mxu0 0.0
    %3025 = vmatprep.subr.mxu0 0.0
    %3026 = vmatpush2.msra.mxu0 0.0
    %3027 = vmatprep.subr.mxu0 0.0
    %3028 = vmatpush2.msra.mxu0 0.0
    %3029 = vmatprep.subr.mxu0 0.0
    %3030 = vmatpush2.msra.mxu0 0.0
    %3031 = vmatprep.mubr.f32.mxu0 0.0
    %v3032 = vand.u32 %v2963, 4294901760
    %v3033 = vsub.f32 %v2963, %v3032
    %v3034 = vand.u32 %v3033, 4294901760
    %v3035 = vsub.f32 %v3033, %v3034
    %v3036 = vand.u32 %v3035, 4294901760
    %3037 = vmatmul.mubr.f32.gmra.mxu0 %v3036
    %v3038 = vpop.f32.mrf.mxu0
    %v3039 = vadd.f32 0.0, %v3038
    %v3040 = vpop.f32.mrf.mxu0
    %v3041 = vadd.f32 0.0, %v3040
    %3042 = vdwg.mxu0
    %3043 = vmatprep.subr.mxu0 0.0
    %3044 = vmatpush1.msra.mxu0 0.0
    %3045 = vmatprep.subr.mxu0 0.0
    %3046 = vmatpush1.msra.mxu0 0.0
    %3047 = vmatprep.subr.mxu0 0.0
    %3048 = vmatpush1.msra.mxu0 0.0
    %3049 = vmatprep.subr.mxu0 0.0
    %3050 = vmatpush1.msra.mxu0 0.0
    %3051 = vmatprep.subr.mxu0 0.0
    %3052 = vmatpush1.msra.mxu0 0.0
    %3053 = vmatprep.subr.mxu0 0.0
    %3054 = vmatpush1.msra.mxu0 0.0
    %3055 = vmatprep.subr.mxu0 0.0
    %3056 = vmatpush1.msra.mxu0 0.0
    %3057 = vmatprep.subr.mxu0 0.0
    %3058 = vmatpush1.msra.mxu0 0.0
    %3059 = vmatprep.subr.mxu0 0.0
    %3060 = vmatpush1.msra.mxu0 0.0
    %3061 = vmatprep.subr.mxu0 0.0
    %3062 = vmatpush1.msra.mxu0 0.0
    %3063 = vmatprep.subr.mxu0 0.0
    %3064 = vmatpush1.msra.mxu0 0.0
    %3065 = vmatprep.subr.mxu0 0.0
    %3066 = vmatpush1.msra.mxu0 0.0
    %3067 = vmatprep.subr.mxu0 0.0
    %3068 = vmatpush1.msra.mxu0 0.0
    %3069 = vmatprep.subr.mxu0 0.0
    %3070 = vmatpush1.msra.mxu0 0.0
    %3071 = vmatprep.subr.mxu0 0.0
    %3072 = vmatpush1.msra.mxu0 0.0
    %v3073 = vand.u32 %v68, 4294901760
    %v3074 = vsub.f32 %v68, %v3073
    %v3075 = vand.u32 %v3074, 4294901760
    %v3076 = vsub.f32 %v3074, %v3075
    %v3077 = vand.u32 %v3076, 4294901760
    %3078 = vmatprep.subr.mxu0 %v3077
    %v3079 = vand.u32 %v67, 4294901760
    %v3080 = vsub.f32 %v67, %v3079
    %v3081 = vand.u32 %v3080, 4294901760
    %v3082 = vsub.f32 %v3080, %v3081
    %v3083 = vand.u32 %v3082, 4294901760
    %3084 = vmatpush1.msra.mxu0 %v3083
    %3085 = vmatprep.subr.mxu0 0.0
    %3086 = vmatpush2.msra.mxu0 0.0
    %3087 = vmatprep.subr.mxu0 0.0
    %3088 = vmatpush2.msra.mxu0 0.0
    %3089 = vmatprep.subr.mxu0 0.0
    %3090 = vmatpush2.msra.mxu0 0.0
    %3091 = vmatprep.subr.mxu0 0.0
    %3092 = vmatpush2.msra.mxu0 0.0
    %3093 = vmatprep.subr.mxu0 0.0
    %3094 = vmatpush2.msra.mxu0 0.0
    %3095 = vmatprep.subr.mxu0 0.0
    %3096 = vmatpush2.msra.mxu0 0.0
    %3097 = vmatprep.subr.mxu0 0.0
    %3098 = vmatpush2.msra.mxu0 0.0
    %3099 = vmatprep.subr.mxu0 0.0
    %3100 = vmatpush2.msra.mxu0 0.0
    %3101 = vmatprep.subr.mxu0 0.0
    %3102 = vmatpush2.msra.mxu0 0.0
    %3103 = vmatprep.subr.mxu0 0.0
    %3104 = vmatpush2.msra.mxu0 0.0
    %3105 = vmatprep.subr.mxu0 0.0
    %3106 = vmatpush2.msra.mxu0 0.0
    %3107 = vmatprep.subr.mxu0 0.0
    %3108 = vmatpush2.msra.mxu0 0.0
    %3109 = vmatprep.subr.mxu0 0.0
    %3110 = vmatpush2.msra.mxu0 0.0
    %3111 = vmatprep.subr.mxu0 0.0
    %3112 = vmatpush2.msra.mxu0 0.0
    %3113 = vmatprep.subr.mxu0 0.0
    %3114 = vmatpush2.msra.mxu0 0.0
    %3115 = vmatprep.subr.mxu0 0.0
    %3116 = vmatpush2.msra.mxu0 0.0
    %3117 = vmatprep.mubr.f32.mxu0 0.0
    %v3118 = vand.u32 %v2963, 4294901760
    %3119 = vmatmul.mubr.f32.gmra.mxu0 %v3118
    %v3120 = vpop.f32.mrf.mxu0
    %v3121 = vadd.f32 %v3039, %v3120
    %v3122 = vpop.f32.mrf.mxu0
    %v3123 = vadd.f32 %v3041, %v3122
    %3124 = vdwg.mxu0
    %3125 = vmatprep.subr.mxu0 0.0
    %3126 = vmatpush1.msra.mxu0 0.0
    %3127 = vmatprep.subr.mxu0 0.0
    %3128 = vmatpush1.msra.mxu0 0.0
    %3129 = vmatprep.subr.mxu0 0.0
    %3130 = vmatpush1.msra.mxu0 0.0
    %3131 = vmatprep.subr.mxu0 0.0
    %3132 = vmatpush1.msra.mxu0 0.0
    %3133 = vmatprep.subr.mxu0 0.0
    %3134 = vmatpush1.msra.mxu0 0.0
    %3135 = vmatprep.subr.mxu0 0.0
    %3136 = vmatpush1.msra.mxu0 0.0
    %3137 = vmatprep.subr.mxu0 0.0
    %3138 = vmatpush1.msra.mxu0 0.0
    %3139 = vmatprep.subr.mxu0 0.0
    %3140 = vmatpush1.msra.mxu0 0.0
    %3141 = vmatprep.subr.mxu0 0.0
    %3142 = vmatpush1.msra.mxu0 0.0
    %3143 = vmatprep.subr.mxu0 0.0
    %3144 = vmatpush1.msra.mxu0 0.0
    %3145 = vmatprep.subr.mxu0 0.0
    %3146 = vmatpush1.msra.mxu0 0.0
    %3147 = vmatprep.subr.mxu0 0.0
    %3148 = vmatpush1.msra.mxu0 0.0
    %3149 = vmatprep.subr.mxu0 0.0
    %3150 = vmatpush1.msra.mxu0 0.0
    %3151 = vmatprep.subr.mxu0 0.0
    %3152 = vmatpush1.msra.mxu0 0.0
    %3153 = vmatprep.subr.mxu0 0.0
    %3154 = vmatpush1.msra.mxu0 0.0
    %v3155 = vand.u32 %v68, 4294901760
    %v3156 = vsub.f32 %v68, %v3155
    %3157 = vmatprep.subr.mxu0 %v3156
    %v3158 = vand.u32 %v67, 4294901760
    %v3159 = vsub.f32 %v67, %v3158
    %3160 = vmatpush1.msra.mxu0 %v3159
    %3161 = vmatprep.subr.mxu0 0.0
    %3162 = vmatpush2.msra.mxu0 0.0
    %3163 = vmatprep.subr.mxu0 0.0
    %3164 = vmatpush2.msra.mxu0 0.0
    %3165 = vmatprep.subr.mxu0 0.0
    %3166 = vmatpush2.msra.mxu0 0.0
    %3167 = vmatprep.subr.mxu0 0.0
    %3168 = vmatpush2.msra.mxu0 0.0
    %3169 = vmatprep.subr.mxu0 0.0
    %3170 = vmatpush2.msra.mxu0 0.0
    %3171 = vmatprep.subr.mxu0 0.0
    %3172 = vmatpush2.msra.mxu0 0.0
    %3173 = vmatprep.subr.mxu0 0.0
    %3174 = vmatpush2.msra.mxu0 0.0
    %3175 = vmatprep.subr.mxu0 0.0
    %3176 = vmatpush2.msra.mxu0 0.0
    %3177 = vmatprep.subr.mxu0 0.0
    %3178 = vmatpush2.msra.mxu0 0.0
    %3179 = vmatprep.subr.mxu0 0.0
    %3180 = vmatpush2.msra.mxu0 0.0
    %3181 = vmatprep.subr.mxu0 0.0
    %3182 = vmatpush2.msra.mxu0 0.0
    %3183 = vmatprep.subr.mxu0 0.0
    %3184 = vmatpush2.msra.mxu0 0.0
    %3185 = vmatprep.subr.mxu0 0.0
    %3186 = vmatpush2.msra.mxu0 0.0
    %3187 = vmatprep.subr.mxu0 0.0
    %3188 = vmatpush2.msra.mxu0 0.0
    %3189 = vmatprep.subr.mxu0 0.0
    %3190 = vmatpush2.msra.mxu0 0.0
    %3191 = vmatprep.subr.mxu0 0.0
    %3192 = vmatpush2.msra.mxu0 0.0
    %3193 = vmatprep.mubr.f32.mxu0 0.0
    %v3194 = vand.u32 %v2963, 4294901760
    %v3195 = vsub.f32 %v2963, %v3194
    %3196 = vmatmul.mubr.f32.gmra.mxu0 %v3195
    %v3197 = vpop.f32.mrf.mxu0
    %v3198 = vadd.f32 %v3121, %v3197
    %v3199 = vpop.f32.mrf.mxu0
    %v3200 = vadd.f32 %v3123, %v3199
    %3201 = vdwg.mxu0
    %3202 = vmatprep.subr.mxu0 0.0
    %3203 = vmatpush1.msra.mxu0 0.0
    %3204 = vmatprep.subr.mxu0 0.0
    %3205 = vmatpush1.msra.mxu0 0.0
    %3206 = vmatprep.subr.mxu0 0.0
    %3207 = vmatpush1.msra.mxu0 0.0
    %3208 = vmatprep.subr.mxu0 0.0
    %3209 = vmatpush1.msra.mxu0 0.0
    %3210 = vmatprep.subr.mxu0 0.0
    %3211 = vmatpush1.msra.mxu0 0.0
    %3212 = vmatprep.subr.mxu0 0.0
    %3213 = vmatpush1.msra.mxu0 0.0
    %3214 = vmatprep.subr.mxu0 0.0
    %3215 = vmatpush1.msra.mxu0 0.0
    %3216 = vmatprep.subr.mxu0 0.0
    %3217 = vmatpush1.msra.mxu0 0.0
    %3218 = vmatprep.subr.mxu0 0.0
    %3219 = vmatpush1.msra.mxu0 0.0
    %3220 = vmatprep.subr.mxu0 0.0
    %3221 = vmatpush1.msra.mxu0 0.0
    %3222 = vmatprep.subr.mxu0 0.0
    %3223 = vmatpush1.msra.mxu0 0.0
    %3224 = vmatprep.subr.mxu0 0.0
    %3225 = vmatpush1.msra.mxu0 0.0
    %3226 = vmatprep.subr.mxu0 0.0
    %3227 = vmatpush1.msra.mxu0 0.0
    %3228 = vmatprep.subr.mxu0 0.0
    %3229 = vmatpush1.msra.mxu0 0.0
    %3230 = vmatprep.subr.mxu0 0.0
    %3231 = vmatpush1.msra.mxu0 0.0
    %v3232 = vand.u32 %v68, 4294901760
    %3233 = vmatprep.subr.mxu0 %v3232
    %v3234 = vand.u32 %v67, 4294901760
    %3235 = vmatpush1.msra.mxu0 %v3234
    %3236 = vmatprep.subr.mxu0 0.0
    %3237 = vmatpush2.msra.mxu0 0.0
    %3238 = vmatprep.subr.mxu0 0.0
    %3239 = vmatpush2.msra.mxu0 0.0
    %3240 = vmatprep.subr.mxu0 0.0
    %3241 = vmatpush2.msra.mxu0 0.0
    %3242 = vmatprep.subr.mxu0 0.0
    %3243 = vmatpush2.msra.mxu0 0.0
    %3244 = vmatprep.subr.mxu0 0.0
    %3245 = vmatpush2.msra.mxu0 0.0
    %3246 = vmatprep.subr.mxu0 0.0
    %3247 = vmatpush2.msra.mxu0 0.0
    %3248 = vmatprep.subr.mxu0 0.0
    %3249 = vmatpush2.msra.mxu0 0.0
    %3250 = vmatprep.subr.mxu0 0.0
    %3251 = vmatpush2.msra.mxu0 0.0
    %3252 = vmatprep.subr.mxu0 0.0
    %3253 = vmatpush2.msra.mxu0 0.0
    %3254 = vmatprep.subr.mxu0 0.0
    %3255 = vmatpush2.msra.mxu0 0.0
    %3256 = vmatprep.subr.mxu0 0.0
    %3257 = vmatpush2.msra.mxu0 0.0
    %3258 = vmatprep.subr.mxu0 0.0
    %3259 = vmatpush2.msra.mxu0 0.0
    %3260 = vmatprep.subr.mxu0 0.0
    %3261 = vmatpush2.msra.mxu0 0.0
    %3262 = vmatprep.subr.mxu0 0.0
    %3263 = vmatpush2.msra.mxu0 0.0
    %3264 = vmatprep.subr.mxu0 0.0
    %3265 = vmatpush2.msra.mxu0 0.0
    %3266 = vmatprep.subr.mxu0 0.0
    %3267 = vmatpush2.msra.mxu0 0.0
    %3268 = vmatprep.mubr.f32.mxu0 0.0
    %v3269 = vand.u32 %v2963, 4294901760
    %v3270 = vsub.f32 %v2963, %v3269
    %v3271 = vand.u32 %v3270, 4294901760
    %3272 = vmatmul.mubr.f32.gmra.mxu0 %v3271
    %v3273 = vpop.f32.mrf.mxu0
    %v3274 = vadd.f32 %v3198, %v3273
    %v3275 = vpop.f32.mrf.mxu0
    %v3276 = vadd.f32 %v3200, %v3275
    %3277 = vdwg.mxu0
    %3278 = vmatprep.subr.mxu0 0.0
    %3279 = vmatpush1.msra.mxu0 0.0
    %3280 = vmatprep.subr.mxu0 0.0
    %3281 = vmatpush1.msra.mxu0 0.0
    %3282 = vmatprep.subr.mxu0 0.0
    %3283 = vmatpush1.msra.mxu0 0.0
    %3284 = vmatprep.subr.mxu0 0.0
    %3285 = vmatpush1.msra.mxu0 0.0
    %3286 = vmatprep.subr.mxu0 0.0
    %3287 = vmatpush1.msra.mxu0 0.0
    %3288 = vmatprep.subr.mxu0 0.0
    %3289 = vmatpush1.msra.mxu0 0.0
    %3290 = vmatprep.subr.mxu0 0.0
    %3291 = vmatpush1.msra.mxu0 0.0
    %3292 = vmatprep.subr.mxu0 0.0
    %3293 = vmatpush1.msra.mxu0 0.0
    %3294 = vmatprep.subr.mxu0 0.0
    %3295 = vmatpush1.msra.mxu0 0.0
    %3296 = vmatprep.subr.mxu0 0.0
    %3297 = vmatpush1.msra.mxu0 0.0
    %3298 = vmatprep.subr.mxu0 0.0
    %3299 = vmatpush1.msra.mxu0 0.0
    %3300 = vmatprep.subr.mxu0 0.0
    %3301 = vmatpush1.msra.mxu0 0.0
    %3302 = vmatprep.subr.mxu0 0.0
    %3303 = vmatpush1.msra.mxu0 0.0
    %3304 = vmatprep.subr.mxu0 0.0
    %3305 = vmatpush1.msra.mxu0 0.0
    %3306 = vmatprep.subr.mxu0 0.0
    %3307 = vmatpush1.msra.mxu0 0.0
    %v3308 = vand.u32 %v68, 4294901760
    %v3309 = vsub.f32 %v68, %v3308
    %v3310 = vand.u32 %v3309, 4294901760
    %3311 = vmatprep.subr.mxu0 %v3310
    %v3312 = vand.u32 %v67, 4294901760
    %v3313 = vsub.f32 %v67, %v3312
    %v3314 = vand.u32 %v3313, 4294901760
    %3315 = vmatpush1.msra.mxu0 %v3314
    %3316 = vmatprep.subr.mxu0 0.0
    %3317 = vmatpush2.msra.mxu0 0.0
    %3318 = vmatprep.subr.mxu0 0.0
    %3319 = vmatpush2.msra.mxu0 0.0
    %3320 = vmatprep.subr.mxu0 0.0
    %3321 = vmatpush2.msra.mxu0 0.0
    %3322 = vmatprep.subr.mxu0 0.0
    %3323 = vmatpush2.msra.mxu0 0.0
    %3324 = vmatprep.subr.mxu0 0.0
    %3325 = vmatpush2.msra.mxu0 0.0
    %3326 = vmatprep.subr.mxu0 0.0
    %3327 = vmatpush2.msra.mxu0 0.0
    %3328 = vmatprep.subr.mxu0 0.0
    %3329 = vmatpush2.msra.mxu0 0.0
    %3330 = vmatprep.subr.mxu0 0.0
    %3331 = vmatpush2.msra.mxu0 0.0
    %3332 = vmatprep.subr.mxu0 0.0
    %3333 = vmatpush2.msra.mxu0 0.0
    %3334 = vmatprep.subr.mxu0 0.0
    %3335 = vmatpush2.msra.mxu0 0.0
    %3336 = vmatprep.subr.mxu0 0.0
    %3337 = vmatpush2.msra.mxu0 0.0
    %3338 = vmatprep.subr.mxu0 0.0
    %3339 = vmatpush2.msra.mxu0 0.0
    %3340 = vmatprep.subr.mxu0 0.0
    %3341 = vmatpush2.msra.mxu0 0.0
    %3342 = vmatprep.subr.mxu0 0.0
    %3343 = vmatpush2.msra.mxu0 0.0
    %3344 = vmatprep.subr.mxu0 0.0
    %3345 = vmatpush2.msra.mxu0 0.0
    %3346 = vmatprep.subr.mxu0 0.0
    %3347 = vmatpush2.msra.mxu0 0.0
    %3348 = vmatprep.mubr.f32.mxu0 0.0
    %v3349 = vand.u32 %v2963, 4294901760
    %3350 = vmatmul.mubr.f32.gmra.mxu0 %v3349
    %v3351 = vpop.f32.mrf.mxu0
    %v3352 = vadd.f32 %v3274, %v3351
    %v3353 = vpop.f32.mrf.mxu0
    %v3354 = vadd.f32 %v3276, %v3353
    %3355 = vdwg.mxu0
    %3356 = vmatprep.subr.mxu0 0.0
    %3357 = vmatpush1.msra.mxu0 0.0
    %3358 = vmatprep.subr.mxu0 0.0
    %3359 = vmatpush1.msra.mxu0 0.0
    %3360 = vmatprep.subr.mxu0 0.0
    %3361 = vmatpush1.msra.mxu0 0.0
    %3362 = vmatprep.subr.mxu0 0.0
    %3363 = vmatpush1.msra.mxu0 0.0
    %3364 = vmatprep.subr.mxu0 0.0
    %3365 = vmatpush1.msra.mxu0 0.0
    %3366 = vmatprep.subr.mxu0 0.0
    %3367 = vmatpush1.msra.mxu0 0.0
    %3368 = vmatprep.subr.mxu0 0.0
    %3369 = vmatpush1.msra.mxu0 0.0
    %3370 = vmatprep.subr.mxu0 0.0
    %3371 = vmatpush1.msra.mxu0 0.0
    %3372 = vmatprep.subr.mxu0 0.0
    %3373 = vmatpush1.msra.mxu0 0.0
    %3374 = vmatprep.subr.mxu0 0.0
    %3375 = vmatpush1.msra.mxu0 0.0
    %3376 = vmatprep.subr.mxu0 0.0
    %3377 = vmatpush1.msra.mxu0 0.0
    %3378 = vmatprep.subr.mxu0 0.0
    %3379 = vmatpush1.msra.mxu0 0.0
    %3380 = vmatprep.subr.mxu0 0.0
    %3381 = vmatpush1.msra.mxu0 0.0
    %3382 = vmatprep.subr.mxu0 0.0
    %3383 = vmatpush1.msra.mxu0 0.0
    %3384 = vmatprep.subr.mxu0 0.0
    %3385 = vmatpush1.msra.mxu0 0.0
    %v3386 = vand.u32 %v68, 4294901760
    %3387 = vmatprep.subr.mxu0 %v3386
    %v3388 = vand.u32 %v67, 4294901760
    %3389 = vmatpush1.msra.mxu0 %v3388
    %3390 = vmatprep.subr.mxu0 0.0
    %3391 = vmatpush2.msra.mxu0 0.0
    %3392 = vmatprep.subr.mxu0 0.0
    %3393 = vmatpush2.msra.mxu0 0.0
    %3394 = vmatprep.subr.mxu0 0.0
    %3395 = vmatpush2.msra.mxu0 0.0
    %3396 = vmatprep.subr.mxu0 0.0
    %3397 = vmatpush2.msra.mxu0 0.0
    %3398 = vmatprep.subr.mxu0 0.0
    %3399 = vmatpush2.msra.mxu0 0.0
    %3400 = vmatprep.subr.mxu0 0.0
    %3401 = vmatpush2.msra.mxu0 0.0
    %3402 = vmatprep.subr.mxu0 0.0
    %3403 = vmatpush2.msra.mxu0 0.0
    %3404 = vmatprep.subr.mxu0 0.0
    %3405 = vmatpush2.msra.mxu0 0.0
    %3406 = vmatprep.subr.mxu0 0.0
    %3407 = vmatpush2.msra.mxu0 0.0
    %3408 = vmatprep.subr.mxu0 0.0
    %3409 = vmatpush2.msra.mxu0 0.0
    %3410 = vmatprep.subr.mxu0 0.0
    %3411 = vmatpush2.msra.mxu0 0.0
    %3412 = vmatprep.subr.mxu0 0.0
    %3413 = vmatpush2.msra.mxu0 0.0
    %3414 = vmatprep.subr.mxu0 0.0
    %3415 = vmatpush2.msra.mxu0 0.0
    %3416 = vmatprep.subr.mxu0 0.0
    %3417 = vmatpush2.msra.mxu0 0.0
    %3418 = vmatprep.subr.mxu0 0.0
    %3419 = vmatpush2.msra.mxu0 0.0
    %3420 = vmatprep.subr.mxu0 0.0
    %3421 = vmatpush2.msra.mxu0 0.0
    %3422 = vmatprep.mubr.f32.mxu0 0.0
    %v3423 = vand.u32 %v2963, 4294901760
    %3424 = vmatmul.mubr.f32.gmra.mxu0 %v3423
    %v3425 = vpop.f32.mrf.mxu0
    %v3426 = vadd.f32 %v3352, %v3425
    %v3427 = vpop.f32.mrf.mxu0
    %v3428 = vadd.f32 %v3354, %v3427
    %3429 = vdwg.mxu0
    %3430 = vmatprep.subr.mxu0 0.0
    %3431 = vmatpush1.msra.mxu0 0.0
    %3432 = vmatprep.subr.mxu0 0.0
    %3433 = vmatpush1.msra.mxu0 0.0
    %3434 = vmatprep.subr.mxu0 0.0
    %3435 = vmatpush1.msra.mxu0 0.0
    %3436 = vmatprep.subr.mxu0 0.0
    %3437 = vmatpush1.msra.mxu0 0.0
    %3438 = vmatprep.subr.mxu0 0.0
    %3439 = vmatpush1.msra.mxu0 0.0
    %3440 = vmatprep.subr.mxu0 0.0
    %3441 = vmatpush1.msra.mxu0 0.0
    %3442 = vmatprep.subr.mxu0 0.0
    %3443 = vmatpush1.msra.mxu0 0.0
    %3444 = vmatprep.subr.mxu0 0.0
    %3445 = vmatpush1.msra.mxu0 0.0
    %3446 = vmatprep.subr.mxu0 0.0
    %3447 = vmatpush1.msra.mxu0 0.0
    %3448 = vmatprep.subr.mxu0 0.0
    %3449 = vmatpush1.msra.mxu0 0.0
    %3450 = vmatprep.subr.mxu0 0.0
    %3451 = vmatpush1.msra.mxu0 0.0
    %3452 = vmatprep.subr.mxu0 0.0
    %3453 = vmatpush1.msra.mxu0 0.0
    %3454 = vmatprep.subr.mxu0 0.0
    %3455 = vmatpush1.msra.mxu0 0.0
    %3456 = vmatprep.subr.mxu0 0.0
    %3457 = vmatpush1.msra.mxu0 0.0
    %3458 = vmatprep.subr.mxu0 0.0
    %3459 = vmatpush1.msra.mxu0 0.0
    %v3460 = vand.u32 %v70, 4294901760
    %3461 = vmatprep.subr.mxu0 %v3460
    %v3462 = vand.u32 %v69, 4294901760
    %3463 = vmatpush1.msra.mxu0 %v3462
    %3464 = vmatprep.subr.mxu0 0.0
    %3465 = vmatpush2.msra.mxu0 0.0
    %3466 = vmatprep.subr.mxu0 0.0
    %3467 = vmatpush2.msra.mxu0 0.0
    %3468 = vmatprep.subr.mxu0 0.0
    %3469 = vmatpush2.msra.mxu0 0.0
    %3470 = vmatprep.subr.mxu0 0.0
    %3471 = vmatpush2.msra.mxu0 0.0
    %3472 = vmatprep.subr.mxu0 0.0
    %3473 = vmatpush2.msra.mxu0 0.0
    %3474 = vmatprep.subr.mxu0 0.0
    %3475 = vmatpush2.msra.mxu0 0.0
    %3476 = vmatprep.subr.mxu0 0.0
    %3477 = vmatpush2.msra.mxu0 0.0
    %3478 = vmatprep.subr.mxu0 0.0
    %3479 = vmatpush2.msra.mxu0 0.0
    %3480 = vmatprep.subr.mxu0 0.0
    %3481 = vmatpush2.msra.mxu0 0.0
    %3482 = vmatprep.subr.mxu0 0.0
    %3483 = vmatpush2.msra.mxu0 0.0
    %3484 = vmatprep.subr.mxu0 0.0
    %3485 = vmatpush2.msra.mxu0 0.0
    %3486 = vmatprep.subr.mxu0 0.0
    %3487 = vmatpush2.msra.mxu0 0.0
    %3488 = vmatprep.subr.mxu0 0.0
    %3489 = vmatpush2.msra.mxu0 0.0
    %3490 = vmatprep.subr.mxu0 0.0
    %3491 = vmatpush2.msra.mxu0 0.0
    %3492 = vmatprep.subr.mxu0 0.0
    %3493 = vmatpush2.msra.mxu0 0.0
    %3494 = vmatprep.subr.mxu0 0.0
    %3495 = vmatpush2.msra.mxu0 0.0
    %3496 = vmatprep.mubr.f32.mxu0 0.0
    %v3497 = vand.u32 %v2963, 4294901760
    %v3498 = vsub.f32 %v2963, %v3497
    %v3499 = vand.u32 %v3498, 4294901760
    %v3500 = vsub.f32 %v3498, %v3499
    %v3501 = vand.u32 %v3500, 4294901760
    %3502 = vmatmul.mubr.f32.gmra.mxu0 %v3501
    %v3503 = vpop.f32.mrf.mxu0
    %v3504 = vadd.f32 0.0, %v3503
    %v3505 = vpop.f32.mrf.mxu0
    %v3506 = vadd.f32 0.0, %v3505
    %3507 = vdwg.mxu0
    %3508 = vmatprep.subr.mxu0 0.0
    %3509 = vmatpush1.msra.mxu0 0.0
    %3510 = vmatprep.subr.mxu0 0.0
    %3511 = vmatpush1.msra.mxu0 0.0
    %3512 = vmatprep.subr.mxu0 0.0
    %3513 = vmatpush1.msra.mxu0 0.0
    %3514 = vmatprep.subr.mxu0 0.0
    %3515 = vmatpush1.msra.mxu0 0.0
    %3516 = vmatprep.subr.mxu0 0.0
    %3517 = vmatpush1.msra.mxu0 0.0
    %3518 = vmatprep.subr.mxu0 0.0
    %3519 = vmatpush1.msra.mxu0 0.0
    %3520 = vmatprep.subr.mxu0 0.0
    %3521 = vmatpush1.msra.mxu0 0.0
    %3522 = vmatprep.subr.mxu0 0.0
    %3523 = vmatpush1.msra.mxu0 0.0
    %3524 = vmatprep.subr.mxu0 0.0
    %3525 = vmatpush1.msra.mxu0 0.0
    %3526 = vmatprep.subr.mxu0 0.0
    %3527 = vmatpush1.msra.mxu0 0.0
    %3528 = vmatprep.subr.mxu0 0.0
    %3529 = vmatpush1.msra.mxu0 0.0
    %3530 = vmatprep.subr.mxu0 0.0
    %3531 = vmatpush1.msra.mxu0 0.0
    %3532 = vmatprep.subr.mxu0 0.0
    %3533 = vmatpush1.msra.mxu0 0.0
    %3534 = vmatprep.subr.mxu0 0.0
    %3535 = vmatpush1.msra.mxu0 0.0
    %3536 = vmatprep.subr.mxu0 0.0
    %3537 = vmatpush1.msra.mxu0 0.0
    %v3538 = vand.u32 %v70, 4294901760
    %v3539 = vsub.f32 %v70, %v3538
    %v3540 = vand.u32 %v3539, 4294901760
    %v3541 = vsub.f32 %v3539, %v3540
    %v3542 = vand.u32 %v3541, 4294901760
    %3543 = vmatprep.subr.mxu0 %v3542
    %v3544 = vand.u32 %v69, 4294901760
    %v3545 = vsub.f32 %v69, %v3544
    %v3546 = vand.u32 %v3545, 4294901760
    %v3547 = vsub.f32 %v3545, %v3546
    %v3548 = vand.u32 %v3547, 4294901760
    %3549 = vmatpush1.msra.mxu0 %v3548
    %3550 = vmatprep.subr.mxu0 0.0
    %3551 = vmatpush2.msra.mxu0 0.0
    %3552 = vmatprep.subr.mxu0 0.0
    %3553 = vmatpush2.msra.mxu0 0.0
    %3554 = vmatprep.subr.mxu0 0.0
    %3555 = vmatpush2.msra.mxu0 0.0
    %3556 = vmatprep.subr.mxu0 0.0
    %3557 = vmatpush2.msra.mxu0 0.0
    %3558 = vmatprep.subr.mxu0 0.0
    %3559 = vmatpush2.msra.mxu0 0.0
    %3560 = vmatprep.subr.mxu0 0.0
    %3561 = vmatpush2.msra.mxu0 0.0
    %3562 = vmatprep.subr.mxu0 0.0
    %3563 = vmatpush2.msra.mxu0 0.0
    %3564 = vmatprep.subr.mxu0 0.0
    %3565 = vmatpush2.msra.mxu0 0.0
    %3566 = vmatprep.subr.mxu0 0.0
    %3567 = vmatpush2.msra.mxu0 0.0
    %3568 = vmatprep.subr.mxu0 0.0
    %3569 = vmatpush2.msra.mxu0 0.0
    %3570 = vmatprep.subr.mxu0 0.0
    %3571 = vmatpush2.msra.mxu0 0.0
    %3572 = vmatprep.subr.mxu0 0.0
    %3573 = vmatpush2.msra.mxu0 0.0
    %3574 = vmatprep.subr.mxu0 0.0
    %3575 = vmatpush2.msra.mxu0 0.0
    %3576 = vmatprep.subr.mxu0 0.0
    %3577 = vmatpush2.msra.mxu0 0.0
    %3578 = vmatprep.subr.mxu0 0.0
    %3579 = vmatpush2.msra.mxu0 0.0
    %3580 = vmatprep.subr.mxu0 0.0
    %3581 = vmatpush2.msra.mxu0 0.0
    %3582 = vmatprep.mubr.f32.mxu0 0.0
    %v3583 = vand.u32 %v2963, 4294901760
    %3584 = vmatmul.mubr.f32.gmra.mxu0 %v3583
    %v3585 = vpop.f32.mrf.mxu0
    %v3586 = vadd.f32 %v3504, %v3585
    %v3587 = vpop.f32.mrf.mxu0
    %v3588 = vadd.f32 %v3506, %v3587
    %3589 = vdwg.mxu0
    %3590 = vmatprep.subr.mxu0 0.0
    %3591 = vmatpush1.msra.mxu0 0.0
    %3592 = vmatprep.subr.mxu0 0.0
    %3593 = vmatpush1.msra.mxu0 0.0
    %3594 = vmatprep.subr.mxu0 0.0
    %3595 = vmatpush1.msra.mxu0 0.0
    %3596 = vmatprep.subr.mxu0 0.0
    %3597 = vmatpush1.msra.mxu0 0.0
    %3598 = vmatprep.subr.mxu0 0.0
    %3599 = vmatpush1.msra.mxu0 0.0
    %3600 = vmatprep.subr.mxu0 0.0
    %3601 = vmatpush1.msra.mxu0 0.0
    %3602 = vmatprep.subr.mxu0 0.0
    %3603 = vmatpush1.msra.mxu0 0.0
    %3604 = vmatprep.subr.mxu0 0.0
    %3605 = vmatpush1.msra.mxu0 0.0
    %3606 = vmatprep.subr.mxu0 0.0
    %3607 = vmatpush1.msra.mxu0 0.0
    %3608 = vmatprep.subr.mxu0 0.0
    %3609 = vmatpush1.msra.mxu0 0.0
    %3610 = vmatprep.subr.mxu0 0.0
    %3611 = vmatpush1.msra.mxu0 0.0
    %3612 = vmatprep.subr.mxu0 0.0
    %3613 = vmatpush1.msra.mxu0 0.0
    %3614 = vmatprep.subr.mxu0 0.0
    %3615 = vmatpush1.msra.mxu0 0.0
    %3616 = vmatprep.subr.mxu0 0.0
    %3617 = vmatpush1.msra.mxu0 0.0
    %3618 = vmatprep.subr.mxu0 0.0
    %3619 = vmatpush1.msra.mxu0 0.0
    %v3620 = vand.u32 %v70, 4294901760
    %v3621 = vsub.f32 %v70, %v3620
    %3622 = vmatprep.subr.mxu0 %v3621
    %v3623 = vand.u32 %v69, 4294901760
    %v3624 = vsub.f32 %v69, %v3623
    %3625 = vmatpush1.msra.mxu0 %v3624
    %3626 = vmatprep.subr.mxu0 0.0
    %3627 = vmatpush2.msra.mxu0 0.0
    %3628 = vmatprep.subr.mxu0 0.0
    %3629 = vmatpush2.msra.mxu0 0.0
    %3630 = vmatprep.subr.mxu0 0.0
    %3631 = vmatpush2.msra.mxu0 0.0
    %3632 = vmatprep.subr.mxu0 0.0
    %3633 = vmatpush2.msra.mxu0 0.0
    %3634 = vmatprep.subr.mxu0 0.0
    %3635 = vmatpush2.msra.mxu0 0.0
    %3636 = vmatprep.subr.mxu0 0.0
    %3637 = vmatpush2.msra.mxu0 0.0
    %3638 = vmatprep.subr.mxu0 0.0
    %3639 = vmatpush2.msra.mxu0 0.0
    %3640 = vmatprep.subr.mxu0 0.0
    %3641 = vmatpush2.msra.mxu0 0.0
    %3642 = vmatprep.subr.mxu0 0.0
    %3643 = vmatpush2.msra.mxu0 0.0
    %3644 = vmatprep.subr.mxu0 0.0
    %3645 = vmatpush2.msra.mxu0 0.0
    %3646 = vmatprep.subr.mxu0 0.0
    %3647 = vmatpush2.msra.mxu0 0.0
    %3648 = vmatprep.subr.mxu0 0.0
    %3649 = vmatpush2.msra.mxu0 0.0
    %3650 = vmatprep.subr.mxu0 0.0
    %3651 = vmatpush2.msra.mxu0 0.0
    %3652 = vmatprep.subr.mxu0 0.0
    %3653 = vmatpush2.msra.mxu0 0.0
    %3654 = vmatprep.subr.mxu0 0.0
    %3655 = vmatpush2.msra.mxu0 0.0
    %3656 = vmatprep.subr.mxu0 0.0
    %3657 = vmatpush2.msra.mxu0 0.0
    %3658 = vmatprep.mubr.f32.mxu0 0.0
    %v3659 = vand.u32 %v2963, 4294901760
    %v3660 = vsub.f32 %v2963, %v3659
    %3661 = vmatmul.mubr.f32.gmra.mxu0 %v3660
    %v3662 = vpop.f32.mrf.mxu0
    %v3663 = vadd.f32 %v3586, %v3662
    %v3664 = vpop.f32.mrf.mxu0
    %v3665 = vadd.f32 %v3588, %v3664
    %3666 = vdwg.mxu0
    %3667 = vmatprep.subr.mxu0 0.0
    %3668 = vmatpush1.msra.mxu0 0.0
    %3669 = vmatprep.subr.mxu0 0.0
    %3670 = vmatpush1.msra.mxu0 0.0
    %3671 = vmatprep.subr.mxu0 0.0
    %3672 = vmatpush1.msra.mxu0 0.0
    %3673 = vmatprep.subr.mxu0 0.0
    %3674 = vmatpush1.msra.mxu0 0.0
    %3675 = vmatprep.subr.mxu0 0.0
    %3676 = vmatpush1.msra.mxu0 0.0
    %3677 = vmatprep.subr.mxu0 0.0
    %3678 = vmatpush1.msra.mxu0 0.0
    %3679 = vmatprep.subr.mxu0 0.0
    %3680 = vmatpush1.msra.mxu0 0.0
    %3681 = vmatprep.subr.mxu0 0.0
    %3682 = vmatpush1.msra.mxu0 0.0
    %3683 = vmatprep.subr.mxu0 0.0
    %3684 = vmatpush1.msra.mxu0 0.0
    %3685 = vmatprep.subr.mxu0 0.0
    %3686 = vmatpush1.msra.mxu0 0.0
    %3687 = vmatprep.subr.mxu0 0.0
    %3688 = vmatpush1.msra.mxu0 0.0
    %3689 = vmatprep.subr.mxu0 0.0
    %3690 = vmatpush1.msra.mxu0 0.0
    %3691 = vmatprep.subr.mxu0 0.0
    %3692 = vmatpush1.msra.mxu0 0.0
    %3693 = vmatprep.subr.mxu0 0.0
    %3694 = vmatpush1.msra.mxu0 0.0
    %3695 = vmatprep.subr.mxu0 0.0
    %3696 = vmatpush1.msra.mxu0 0.0
    %v3697 = vand.u32 %v70, 4294901760
    %3698 = vmatprep.subr.mxu0 %v3697
    %v3699 = vand.u32 %v69, 4294901760
    %3700 = vmatpush1.msra.mxu0 %v3699
    %3701 = vmatprep.subr.mxu0 0.0
    %3702 = vmatpush2.msra.mxu0 0.0
    %3703 = vmatprep.subr.mxu0 0.0
    %3704 = vmatpush2.msra.mxu0 0.0
    %3705 = vmatprep.subr.mxu0 0.0
    %3706 = vmatpush2.msra.mxu0 0.0
    %3707 = vmatprep.subr.mxu0 0.0
    %3708 = vmatpush2.msra.mxu0 0.0
    %3709 = vmatprep.subr.mxu0 0.0
    %3710 = vmatpush2.msra.mxu0 0.0
    %3711 = vmatprep.subr.mxu0 0.0
    %3712 = vmatpush2.msra.mxu0 0.0
    %3713 = vmatprep.subr.mxu0 0.0
    %3714 = vmatpush2.msra.mxu0 0.0
    %3715 = vmatprep.subr.mxu0 0.0
    %3716 = vmatpush2.msra.mxu0 0.0
    %3717 = vmatprep.subr.mxu0 0.0
    %3718 = vmatpush2.msra.mxu0 0.0
    %3719 = vmatprep.subr.mxu0 0.0
    %3720 = vmatpush2.msra.mxu0 0.0
    %3721 = vmatprep.subr.mxu0 0.0
    %3722 = vmatpush2.msra.mxu0 0.0
    %3723 = vmatprep.subr.mxu0 0.0
    %3724 = vmatpush2.msra.mxu0 0.0
    %3725 = vmatprep.subr.mxu0 0.0
    %3726 = vmatpush2.msra.mxu0 0.0
    %3727 = vmatprep.subr.mxu0 0.0
    %3728 = vmatpush2.msra.mxu0 0.0
    %3729 = vmatprep.subr.mxu0 0.0
    %3730 = vmatpush2.msra.mxu0 0.0
    %3731 = vmatprep.subr.mxu0 0.0
    %3732 = vmatpush2.msra.mxu0 0.0
    %3733 = vmatprep.mubr.f32.mxu0 0.0
    %v3734 = vand.u32 %v2963, 4294901760
    %v3735 = vsub.f32 %v2963, %v3734
    %v3736 = vand.u32 %v3735, 4294901760
    %3737 = vmatmul.mubr.f32.gmra.mxu0 %v3736
    %v3738 = vpop.f32.mrf.mxu0
    %v3739 = vadd.f32 %v3663, %v3738
    %v3740 = vpop.f32.mrf.mxu0
    %v3741 = vadd.f32 %v3665, %v3740
    %3742 = vdwg.mxu0
    %3743 = vmatprep.subr.mxu0 0.0
    %3744 = vmatpush1.msra.mxu0 0.0
    %3745 = vmatprep.subr.mxu0 0.0
    %3746 = vmatpush1.msra.mxu0 0.0
    %3747 = vmatprep.subr.mxu0 0.0
    %3748 = vmatpush1.msra.mxu0 0.0
    %3749 = vmatprep.subr.mxu0 0.0
    %3750 = vmatpush1.msra.mxu0 0.0
    %3751 = vmatprep.subr.mxu0 0.0
    %3752 = vmatpush1.msra.mxu0 0.0
    %3753 = vmatprep.subr.mxu0 0.0
    %3754 = vmatpush1.msra.mxu0 0.0
    %3755 = vmatprep.subr.mxu0 0.0
    %3756 = vmatpush1.msra.mxu0 0.0
    %3757 = vmatprep.subr.mxu0 0.0
    %3758 = vmatpush1.msra.mxu0 0.0
    %3759 = vmatprep.subr.mxu0 0.0
    %3760 = vmatpush1.msra.mxu0 0.0
    %3761 = vmatprep.subr.mxu0 0.0
    %3762 = vmatpush1.msra.mxu0 0.0
    %3763 = vmatprep.subr.mxu0 0.0
    %3764 = vmatpush1.msra.mxu0 0.0
    %3765 = vmatprep.subr.mxu0 0.0
    %3766 = vmatpush1.msra.mxu0 0.0
    %3767 = vmatprep.subr.mxu0 0.0
    %3768 = vmatpush1.msra.mxu0 0.0
    %3769 = vmatprep.subr.mxu0 0.0
    %3770 = vmatpush1.msra.mxu0 0.0
    %3771 = vmatprep.subr.mxu0 0.0
    %3772 = vmatpush1.msra.mxu0 0.0
    %v3773 = vand.u32 %v70, 4294901760
    %v3774 = vsub.f32 %v70, %v3773
    %v3775 = vand.u32 %v3774, 4294901760
    %3776 = vmatprep.subr.mxu0 %v3775
    %v3777 = vand.u32 %v69, 4294901760
    %v3778 = vsub.f32 %v69, %v3777
    %v3779 = vand.u32 %v3778, 4294901760
    %3780 = vmatpush1.msra.mxu0 %v3779
    %3781 = vmatprep.subr.mxu0 0.0
    %3782 = vmatpush2.msra.mxu0 0.0
    %3783 = vmatprep.subr.mxu0 0.0
    %3784 = vmatpush2.msra.mxu0 0.0
    %3785 = vmatprep.subr.mxu0 0.0
    %3786 = vmatpush2.msra.mxu0 0.0
    %3787 = vmatprep.subr.mxu0 0.0
    %3788 = vmatpush2.msra.mxu0 0.0
    %3789 = vmatprep.subr.mxu0 0.0
    %3790 = vmatpush2.msra.mxu0 0.0
    %3791 = vmatprep.subr.mxu0 0.0
    %3792 = vmatpush2.msra.mxu0 0.0
    %3793 = vmatprep.subr.mxu0 0.0
    %3794 = vmatpush2.msra.mxu0 0.0
    %3795 = vmatprep.subr.mxu0 0.0
    %3796 = vmatpush2.msra.mxu0 0.0
    %3797 = vmatprep.subr.mxu0 0.0
    %3798 = vmatpush2.msra.mxu0 0.0
    %3799 = vmatprep.subr.mxu0 0.0
    %3800 = vmatpush2.msra.mxu0 0.0
    %3801 = vmatprep.subr.mxu0 0.0
    %3802 = vmatpush2.msra.mxu0 0.0
    %3803 = vmatprep.subr.mxu0 0.0
    %3804 = vmatpush2.msra.mxu0 0.0
    %3805 = vmatprep.subr.mxu0 0.0
    %3806 = vmatpush2.msra.mxu0 0.0
    %3807 = vmatprep.subr.mxu0 0.0
    %3808 = vmatpush2.msra.mxu0 0.0
    %3809 = vmatprep.subr.mxu0 0.0
    %3810 = vmatpush2.msra.mxu0 0.0
    %3811 = vmatprep.subr.mxu0 0.0
    %3812 = vmatpush2.msra.mxu0 0.0
    %3813 = vmatprep.mubr.f32.mxu0 0.0
    %v3814 = vand.u32 %v2963, 4294901760
    %3815 = vmatmul.mubr.f32.gmra.mxu0 %v3814
    %v3816 = vpop.f32.mrf.mxu0
    %v3817 = vadd.f32 %v3739, %v3816
    %v3818 = vpop.f32.mrf.mxu0
    %v3819 = vadd.f32 %v3741, %v3818
    %3820 = vdwg.mxu0
    %3821 = vmatprep.subr.mxu0 0.0
    %3822 = vmatpush1.msra.mxu0 0.0
    %3823 = vmatprep.subr.mxu0 0.0
    %3824 = vmatpush1.msra.mxu0 0.0
    %3825 = vmatprep.subr.mxu0 0.0
    %3826 = vmatpush1.msra.mxu0 0.0
    %3827 = vmatprep.subr.mxu0 0.0
    %3828 = vmatpush1.msra.mxu0 0.0
    %3829 = vmatprep.subr.mxu0 0.0
    %3830 = vmatpush1.msra.mxu0 0.0
    %3831 = vmatprep.subr.mxu0 0.0
    %3832 = vmatpush1.msra.mxu0 0.0
    %3833 = vmatprep.subr.mxu0 0.0
    %3834 = vmatpush1.msra.mxu0 0.0
    %3835 = vmatprep.subr.mxu0 0.0
    %3836 = vmatpush1.msra.mxu0 0.0
    %3837 = vmatprep.subr.mxu0 0.0
    %3838 = vmatpush1.msra.mxu0 0.0
    %3839 = vmatprep.subr.mxu0 0.0
    %3840 = vmatpush1.msra.mxu0 0.0
    %3841 = vmatprep.subr.mxu0 0.0
    %3842 = vmatpush1.msra.mxu0 0.0
    %3843 = vmatprep.subr.mxu0 0.0
    %3844 = vmatpush1.msra.mxu0 0.0
    %3845 = vmatprep.subr.mxu0 0.0
    %3846 = vmatpush1.msra.mxu0 0.0
    %3847 = vmatprep.subr.mxu0 0.0
    %3848 = vmatpush1.msra.mxu0 0.0
    %3849 = vmatprep.subr.mxu0 0.0
    %3850 = vmatpush1.msra.mxu0 0.0
    %v3851 = vand.u32 %v70, 4294901760
    %3852 = vmatprep.subr.mxu0 %v3851
    %v3853 = vand.u32 %v69, 4294901760
    %3854 = vmatpush1.msra.mxu0 %v3853
    %3855 = vmatprep.subr.mxu0 0.0
    %3856 = vmatpush2.msra.mxu0 0.0
    %3857 = vmatprep.subr.mxu0 0.0
    %3858 = vmatpush2.msra.mxu0 0.0
    %3859 = vmatprep.subr.mxu0 0.0
    %3860 = vmatpush2.msra.mxu0 0.0
    %3861 = vmatprep.subr.mxu0 0.0
    %3862 = vmatpush2.msra.mxu0 0.0
    %3863 = vmatprep.subr.mxu0 0.0
    %3864 = vmatpush2.msra.mxu0 0.0
    %3865 = vmatprep.subr.mxu0 0.0
    %3866 = vmatpush2.msra.mxu0 0.0
    %3867 = vmatprep.subr.mxu0 0.0
    %3868 = vmatpush2.msra.mxu0 0.0
    %3869 = vmatprep.subr.mxu0 0.0
    %3870 = vmatpush2.msra.mxu0 0.0
    %3871 = vmatprep.subr.mxu0 0.0
    %3872 = vmatpush2.msra.mxu0 0.0
    %3873 = vmatprep.subr.mxu0 0.0
    %3874 = vmatpush2.msra.mxu0 0.0
    %3875 = vmatprep.subr.mxu0 0.0
    %3876 = vmatpush2.msra.mxu0 0.0
    %3877 = vmatprep.subr.mxu0 0.0
    %3878 = vmatpush2.msra.mxu0 0.0
    %3879 = vmatprep.subr.mxu0 0.0
    %3880 = vmatpush2.msra.mxu0 0.0
    %3881 = vmatprep.subr.mxu0 0.0
    %3882 = vmatpush2.msra.mxu0 0.0
    %3883 = vmatprep.subr.mxu0 0.0
    %3884 = vmatpush2.msra.mxu0 0.0
    %3885 = vmatprep.subr.mxu0 0.0
    %3886 = vmatpush2.msra.mxu0 0.0
    %3887 = vmatprep.mubr.f32.mxu0 0.0
    %v3888 = vand.u32 %v2963, 4294901760
    %3889 = vmatmul.mubr.f32.gmra.mxu0 %v3888
    %v3890 = vpop.f32.mrf.mxu0
    %v3891 = vadd.f32 %v3817, %v3890
    %v3892 = vpop.f32.mrf.mxu0
    %v3893 = vadd.f32 %v3819, %v3892
    %3894 = vdwg.mxu0
    %v3895 = vadd.f32 %v3426, %v3428
    %3896 = vadd.xlane.f32.xlu0 %v3895
    %v3897 = vpop.xlane.xlu0 %3896
    %v3898 = vmul.f32 %v3897, 0.00390625
    %v3899 = vadd.f32 %v3891, %v3893
    %3900 = vadd.xlane.f32.xlu0 %v3899
    %v3901 = vpop.xlane.xlu0 %3900
    %v3902 = vmul.f32 %v3901, 0.00390625
    %v3903 = vmul.f32 %v3898, %v3898
    %v3904 = vsub.f32 %v3902, %v3903
    %v3905 = vsub.f32 %v67, %v3898
    %v3906 = vsub.f32 %v68, %v3898
    %v3907 = vadd.f32 %v3904, 1e-05
    %v3908 = vrsqrt.pop %v3907
    %v3909 = vmul.f32 %v3905, %v3908
    %v3910 = vmul.f32 %v3906, %v3908
    %3912 = vset.pattern.permute.xlu0 0
    %3913 = vperm.xlu0 %3912, %v85
    %v3914 = vpop.permute.xlu0 %3913
    %v3916 = vmul.f32 %v3909, %v3914
    %v3917 = vmul.f32 %v3910, %v3914
    %3919 = vset.pattern.permute.xlu0 0
    %3920 = vperm.xlu0 %3919, %v86
    %v3921 = vpop.permute.xlu0 %3920
    %v3923 = vadd.f32 %v3916, %v3921
    %v3924 = vadd.f32 %v3917, %v3921
    %v3925 = vadd.f32 %v2960, %v3923
    %v3926 = vadd.f32 %v2961, %v3924
    %v3927 = vld [vmem:[%s5] sm:$0xff]
    %v3928 = vld [vmem:[%s5 + $0x8] sm:$0xff]
    %3930 = vset.pattern.permute.xlu0 0
    %3931 = vperm.xlu0 %3930, %v83
    %v3932 = vpop.permute.xlu0 %3931
    %3935 = vset.pattern.permute.xlu0 0
    %3936 = vperm.xlu0 %3935, %v84
    %v3937 = vpop.permute.xlu0 %3936
    %v3940 = vsel %vm272, %v3927, 0
    %v3943 = vsel %vm272, %v3928, 0
    %3945 = vmatprep.subr.mxu0 0.0
    %3946 = vmatpush1.msra.mxu0 0.0
    %3947 = vmatprep.subr.mxu0 0.0
    %3948 = vmatpush1.msra.mxu0 0.0
    %3949 = vmatprep.subr.mxu0 0.0
    %3950 = vmatpush1.msra.mxu0 0.0
    %3951 = vmatprep.subr.mxu0 0.0
    %3952 = vmatpush1.msra.mxu0 0.0
    %3953 = vmatprep.subr.mxu0 0.0
    %3954 = vmatpush1.msra.mxu0 0.0
    %3955 = vmatprep.subr.mxu0 0.0
    %3956 = vmatpush1.msra.mxu0 0.0
    %3957 = vmatprep.subr.mxu0 0.0
    %3958 = vmatpush1.msra.mxu0 0.0
    %3959 = vmatprep.subr.mxu0 0.0
    %3960 = vmatpush1.msra.mxu0 0.0
    %3961 = vmatprep.subr.mxu0 0.0
    %3962 = vmatpush1.msra.mxu0 0.0
    %3963 = vmatprep.subr.mxu0 0.0
    %3964 = vmatpush1.msra.mxu0 0.0
    %3965 = vmatprep.subr.mxu0 0.0
    %3966 = vmatpush1.msra.mxu0 0.0
    %3967 = vmatprep.subr.mxu0 0.0
    %3968 = vmatpush1.msra.mxu0 0.0
    %3969 = vmatprep.subr.mxu0 0.0
    %3970 = vmatpush1.msra.mxu0 0.0
    %3971 = vmatprep.subr.mxu0 0.0
    %3972 = vmatpush1.msra.mxu0 0.0
    %3973 = vmatprep.subr.mxu0 0.0
    %3974 = vmatpush1.msra.mxu0 0.0
    %v3975 = vand.u32 %v3926, 4294901760
    %3976 = vmatprep.subr.mxu0 %v3975
    %v3977 = vand.u32 %v3925, 4294901760
    %3978 = vmatpush1.msra.mxu0 %v3977
    %3979 = vmatprep.subr.mxu0 0.0
    %3980 = vmatpush2.msra.mxu0 0.0
    %3981 = vmatprep.subr.mxu0 0.0
    %3982 = vmatpush2.msra.mxu0 0.0
    %3983 = vmatprep.subr.mxu0 0.0
    %3984 = vmatpush2.msra.mxu0 0.0
    %3985 = vmatprep.subr.mxu0 0.0
    %3986 = vmatpush2.msra.mxu0 0.0
    %3987 = vmatprep.subr.mxu0 0.0
    %3988 = vmatpush2.msra.mxu0 0.0
    %3989 = vmatprep.subr.mxu0 0.0
    %3990 = vmatpush2.msra.mxu0 0.0
    %3991 = vmatprep.subr.mxu0 0.0
    %3992 = vmatpush2.msra.mxu0 0.0
    %3993 = vmatprep.subr.mxu0 0.0
    %3994 = vmatpush2.msra.mxu0 0.0
    %3995 = vmatprep.subr.mxu0 0.0
    %3996 = vmatpush2.msra.mxu0 0.0
    %3997 = vmatprep.subr.mxu0 0.0
    %3998 = vmatpush2.msra.mxu0 0.0
    %3999 = vmatprep.subr.mxu0 0.0
    %4000 = vmatpush2.msra.mxu0 0.0
    %4001 = vmatprep.subr.mxu0 0.0
    %4002 = vmatpush2.msra.mxu0 0.0
    %4003 = vmatprep.subr.mxu0 0.0
    %4004 = vmatpush2.msra.mxu0 0.0
    %4005 = vmatprep.subr.mxu0 0.0
    %4006 = vmatpush2.msra.mxu0 0.0
    %4007 = vmatprep.subr.mxu0 0.0
    %4008 = vmatpush2.msra.mxu0 0.0
    %4009 = vmatprep.subr.mxu0 0.0
    %4010 = vmatpush2.msra.mxu0 0.0
    %4011 = vmatprep.mubr.f32.mxu0 0.0
    %v4012 = vand.u32 %v3940, 4294901760
    %v4013 = vsub.f32 %v3940, %v4012
    %v4014 = vand.u32 %v4013, 4294901760
    %v4015 = vsub.f32 %v4013, %v4014
    %v4016 = vand.u32 %v4015, 4294901760
    %4017 = vmatmul.mubr.f32.gmra.mxu0 %v4016
    %v4018 = vpop.f32.mrf.mxu0
    %v4019 = vadd.f32 %v3932, %v4018
    %v4020 = vpop.f32.mrf.mxu0
    %v4021 = vadd.f32 %v3932, %v4020
    %4022 = vmatprep.mubr.f32.mxu0 0.0
    %v4023 = vand.u32 %v3943, 4294901760
    %v4024 = vsub.f32 %v3943, %v4023
    %v4025 = vand.u32 %v4024, 4294901760
    %v4026 = vsub.f32 %v4024, %v4025
    %v4027 = vand.u32 %v4026, 4294901760
    %4028 = vmatmul.mubr.f32.gmra.mxu0 %v4027
    %v4029 = vpop.f32.mrf.mxu0
    %v4030 = vadd.f32 %v3937, %v4029
    %v4031 = vpop.f32.mrf.mxu0
    %v4032 = vadd.f32 %v3937, %v4031
    %4033 = vdwg.mxu0
    %4034 = vmatprep.subr.mxu0 0.0
    %4035 = vmatpush1.msra.mxu0 0.0
    %4036 = vmatprep.subr.mxu0 0.0
    %4037 = vmatpush1.msra.mxu0 0.0
    %4038 = vmatprep.subr.mxu0 0.0
    %4039 = vmatpush1.msra.mxu0 0.0
    %4040 = vmatprep.subr.mxu0 0.0
    %4041 = vmatpush1.msra.mxu0 0.0
    %4042 = vmatprep.subr.mxu0 0.0
    %4043 = vmatpush1.msra.mxu0 0.0
    %4044 = vmatprep.subr.mxu0 0.0
    %4045 = vmatpush1.msra.mxu0 0.0
    %4046 = vmatprep.subr.mxu0 0.0
    %4047 = vmatpush1.msra.mxu0 0.0
    %4048 = vmatprep.subr.mxu0 0.0
    %4049 = vmatpush1.msra.mxu0 0.0
    %4050 = vmatprep.subr.mxu0 0.0
    %4051 = vmatpush1.msra.mxu0 0.0
    %4052 = vmatprep.subr.mxu0 0.0
    %4053 = vmatpush1.msra.mxu0 0.0
    %4054 = vmatprep.subr.mxu0 0.0
    %4055 = vmatpush1.msra.mxu0 0.0
    %4056 = vmatprep.subr.mxu0 0.0
    %4057 = vmatpush1.msra.mxu0 0.0
    %4058 = vmatprep.subr.mxu0 0.0
    %4059 = vmatpush1.msra.mxu0 0.0
    %4060 = vmatprep.subr.mxu0 0.0
    %4061 = vmatpush1.msra.mxu0 0.0
    %4062 = vmatprep.subr.mxu0 0.0
    %4063 = vmatpush1.msra.mxu0 0.0
    %v4064 = vand.u32 %v3926, 4294901760
    %v4065 = vsub.f32 %v3926, %v4064
    %v4066 = vand.u32 %v4065, 4294901760
    %v4067 = vsub.f32 %v4065, %v4066
    %v4068 = vand.u32 %v4067, 4294901760
    %4069 = vmatprep.subr.mxu0 %v4068
    %v4070 = vand.u32 %v3925, 4294901760
    %v4071 = vsub.f32 %v3925, %v4070
    %v4072 = vand.u32 %v4071, 4294901760
    %v4073 = vsub.f32 %v4071, %v4072
    %v4074 = vand.u32 %v4073, 4294901760
    %4075 = vmatpush1.msra.mxu0 %v4074
    %4076 = vmatprep.subr.mxu0 0.0
    %4077 = vmatpush2.msra.mxu0 0.0
    %4078 = vmatprep.subr.mxu0 0.0
    %4079 = vmatpush2.msra.mxu0 0.0
    %4080 = vmatprep.subr.mxu0 0.0
    %4081 = vmatpush2.msra.mxu0 0.0
    %4082 = vmatprep.subr.mxu0 0.0
    %4083 = vmatpush2.msra.mxu0 0.0
    %4084 = vmatprep.subr.mxu0 0.0
    %4085 = vmatpush2.msra.mxu0 0.0
    %4086 = vmatprep.subr.mxu0 0.0
    %4087 = vmatpush2.msra.mxu0 0.0
    %4088 = vmatprep.subr.mxu0 0.0
    %4089 = vmatpush2.msra.mxu0 0.0
    %4090 = vmatprep.subr.mxu0 0.0
    %4091 = vmatpush2.msra.mxu0 0.0
    %4092 = vmatprep.subr.mxu0 0.0
    %4093 = vmatpush2.msra.mxu0 0.0
    %4094 = vmatprep.subr.mxu0 0.0
    %4095 = vmatpush2.msra.mxu0 0.0
    %4096 = vmatprep.subr.mxu0 0.0
    %4097 = vmatpush2.msra.mxu0 0.0
    %4098 = vmatprep.subr.mxu0 0.0
    %4099 = vmatpush2.msra.mxu0 0.0
    %4100 = vmatprep.subr.mxu0 0.0
    %4101 = vmatpush2.msra.mxu0 0.0
    %4102 = vmatprep.subr.mxu0 0.0
    %4103 = vmatpush2.msra.mxu0 0.0
    %4104 = vmatprep.subr.mxu0 0.0
    %4105 = vmatpush2.msra.mxu0 0.0
    %4106 = vmatprep.subr.mxu0 0.0
    %4107 = vmatpush2.msra.mxu0 0.0
    %4108 = vmatprep.mubr.f32.mxu0 0.0
    %v4109 = vand.u32 %v3940, 4294901760
    %4110 = vmatmul.mubr.f32.gmra.mxu0 %v4109
    %v4111 = vpop.f32.mrf.mxu0
    %v4112 = vadd.f32 %v4019, %v4111
    %v4113 = vpop.f32.mrf.mxu0
    %v4114 = vadd.f32 %v4021, %v4113
    %4115 = vmatprep.mubr.f32.mxu0 0.0
    %v4116 = vand.u32 %v3943, 4294901760
    %4117 = vmatmul.mubr.f32.gmra.mxu0 %v4116
    %v4118 = vpop.f32.mrf.mxu0
    %v4119 = vadd.f32 %v4030, %v4118
    %v4120 = vpop.f32.mrf.mxu0
    %v4121 = vadd.f32 %v4032, %v4120
    %4122 = vdwg.mxu0
    %4123 = vmatprep.subr.mxu0 0.0
    %4124 = vmatpush1.msra.mxu0 0.0
    %4125 = vmatprep.subr.mxu0 0.0
    %4126 = vmatpush1.msra.mxu0 0.0
    %4127 = vmatprep.subr.mxu0 0.0
    %4128 = vmatpush1.msra.mxu0 0.0
    %4129 = vmatprep.subr.mxu0 0.0
    %4130 = vmatpush1.msra.mxu0 0.0
    %4131 = vmatprep.subr.mxu0 0.0
    %4132 = vmatpush1.msra.mxu0 0.0
    %4133 = vmatprep.subr.mxu0 0.0
    %4134 = vmatpush1.msra.mxu0 0.0
    %4135 = vmatprep.subr.mxu0 0.0
    %4136 = vmatpush1.msra.mxu0 0.0
    %4137 = vmatprep.subr.mxu0 0.0
    %4138 = vmatpush1.msra.mxu0 0.0
    %4139 = vmatprep.subr.mxu0 0.0
    %4140 = vmatpush1.msra.mxu0 0.0
    %4141 = vmatprep.subr.mxu0 0.0
    %4142 = vmatpush1.msra.mxu0 0.0
    %4143 = vmatprep.subr.mxu0 0.0
    %4144 = vmatpush1.msra.mxu0 0.0
    %4145 = vmatprep.subr.mxu0 0.0
    %4146 = vmatpush1.msra.mxu0 0.0
    %4147 = vmatprep.subr.mxu0 0.0
    %4148 = vmatpush1.msra.mxu0 0.0
    %4149 = vmatprep.subr.mxu0 0.0
    %4150 = vmatpush1.msra.mxu0 0.0
    %4151 = vmatprep.subr.mxu0 0.0
    %4152 = vmatpush1.msra.mxu0 0.0
    %v4153 = vand.u32 %v3926, 4294901760
    %v4154 = vsub.f32 %v3926, %v4153
    %4155 = vmatprep.subr.mxu0 %v4154
    %v4156 = vand.u32 %v3925, 4294901760
    %v4157 = vsub.f32 %v3925, %v4156
    %4158 = vmatpush1.msra.mxu0 %v4157
    %4159 = vmatprep.subr.mxu0 0.0
    %4160 = vmatpush2.msra.mxu0 0.0
    %4161 = vmatprep.subr.mxu0 0.0
    %4162 = vmatpush2.msra.mxu0 0.0
    %4163 = vmatprep.subr.mxu0 0.0
    %4164 = vmatpush2.msra.mxu0 0.0
    %4165 = vmatprep.subr.mxu0 0.0
    %4166 = vmatpush2.msra.mxu0 0.0
    %4167 = vmatprep.subr.mxu0 0.0
    %4168 = vmatpush2.msra.mxu0 0.0
    %4169 = vmatprep.subr.mxu0 0.0
    %4170 = vmatpush2.msra.mxu0 0.0
    %4171 = vmatprep.subr.mxu0 0.0
    %4172 = vmatpush2.msra.mxu0 0.0
    %4173 = vmatprep.subr.mxu0 0.0
    %4174 = vmatpush2.msra.mxu0 0.0
    %4175 = vmatprep.subr.mxu0 0.0
    %4176 = vmatpush2.msra.mxu0 0.0
    %4177 = vmatprep.subr.mxu0 0.0
    %4178 = vmatpush2.msra.mxu0 0.0
    %4179 = vmatprep.subr.mxu0 0.0
    %4180 = vmatpush2.msra.mxu0 0.0
    %4181 = vmatprep.subr.mxu0 0.0
    %4182 = vmatpush2.msra.mxu0 0.0
    %4183 = vmatprep.subr.mxu0 0.0
    %4184 = vmatpush2.msra.mxu0 0.0
    %4185 = vmatprep.subr.mxu0 0.0
    %4186 = vmatpush2.msra.mxu0 0.0
    %4187 = vmatprep.subr.mxu0 0.0
    %4188 = vmatpush2.msra.mxu0 0.0
    %4189 = vmatprep.subr.mxu0 0.0
    %4190 = vmatpush2.msra.mxu0 0.0
    %4191 = vmatprep.mubr.f32.mxu0 0.0
    %v4192 = vand.u32 %v3940, 4294901760
    %v4193 = vsub.f32 %v3940, %v4192
    %4194 = vmatmul.mubr.f32.gmra.mxu0 %v4193
    %v4195 = vpop.f32.mrf.mxu0
    %v4196 = vadd.f32 %v4112, %v4195
    %v4197 = vpop.f32.mrf.mxu0
    %v4198 = vadd.f32 %v4114, %v4197
    %4199 = vmatprep.mubr.f32.mxu0 0.0
    %v4200 = vand.u32 %v3943, 4294901760
    %v4201 = vsub.f32 %v3943, %v4200
    %4202 = vmatmul.mubr.f32.gmra.mxu0 %v4201
    %v4203 = vpop.f32.mrf.mxu0
    %v4204 = vadd.f32 %v4119, %v4203
    %v4205 = vpop.f32.mrf.mxu0
    %v4206 = vadd.f32 %v4121, %v4205
    %4207 = vdwg.mxu0
    %4208 = vmatprep.subr.mxu0 0.0
    %4209 = vmatpush1.msra.mxu0 0.0
    %4210 = vmatprep.subr.mxu0 0.0
    %4211 = vmatpush1.msra.mxu0 0.0
    %4212 = vmatprep.subr.mxu0 0.0
    %4213 = vmatpush1.msra.mxu0 0.0
    %4214 = vmatprep.subr.mxu0 0.0
    %4215 = vmatpush1.msra.mxu0 0.0
    %4216 = vmatprep.subr.mxu0 0.0
    %4217 = vmatpush1.msra.mxu0 0.0
    %4218 = vmatprep.subr.mxu0 0.0
    %4219 = vmatpush1.msra.mxu0 0.0
    %4220 = vmatprep.subr.mxu0 0.0
    %4221 = vmatpush1.msra.mxu0 0.0
    %4222 = vmatprep.subr.mxu0 0.0
    %4223 = vmatpush1.msra.mxu0 0.0
    %4224 = vmatprep.subr.mxu0 0.0
    %4225 = vmatpush1.msra.mxu0 0.0
    %4226 = vmatprep.subr.mxu0 0.0
    %4227 = vmatpush1.msra.mxu0 0.0
    %4228 = vmatprep.subr.mxu0 0.0
    %4229 = vmatpush1.msra.mxu0 0.0
    %4230 = vmatprep.subr.mxu0 0.0
    %4231 = vmatpush1.msra.mxu0 0.0
    %4232 = vmatprep.subr.mxu0 0.0
    %4233 = vmatpush1.msra.mxu0 0.0
    %4234 = vmatprep.subr.mxu0 0.0
    %4235 = vmatpush1.msra.mxu0 0.0
    %4236 = vmatprep.subr.mxu0 0.0
    %4237 = vmatpush1.msra.mxu0 0.0
    %v4238 = vand.u32 %v3926, 4294901760
    %4239 = vmatprep.subr.mxu0 %v4238
    %v4240 = vand.u32 %v3925, 4294901760
    %4241 = vmatpush1.msra.mxu0 %v4240
    %4242 = vmatprep.subr.mxu0 0.0
    %4243 = vmatpush2.msra.mxu0 0.0
    %4244 = vmatprep.subr.mxu0 0.0
    %4245 = vmatpush2.msra.mxu0 0.0
    %4246 = vmatprep.subr.mxu0 0.0
    %4247 = vmatpush2.msra.mxu0 0.0
    %4248 = vmatprep.subr.mxu0 0.0
    %4249 = vmatpush2.msra.mxu0 0.0
    %4250 = vmatprep.subr.mxu0 0.0
    %4251 = vmatpush2.msra.mxu0 0.0
    %4252 = vmatprep.subr.mxu0 0.0
    %4253 = vmatpush2.msra.mxu0 0.0
    %4254 = vmatprep.subr.mxu0 0.0
    %4255 = vmatpush2.msra.mxu0 0.0
    %4256 = vmatprep.subr.mxu0 0.0
    %4257 = vmatpush2.msra.mxu0 0.0
    %4258 = vmatprep.subr.mxu0 0.0
    %4259 = vmatpush2.msra.mxu0 0.0
    %4260 = vmatprep.subr.mxu0 0.0
    %4261 = vmatpush2.msra.mxu0 0.0
    %4262 = vmatprep.subr.mxu0 0.0
    %4263 = vmatpush2.msra.mxu0 0.0
    %4264 = vmatprep.subr.mxu0 0.0
    %4265 = vmatpush2.msra.mxu0 0.0
    %4266 = vmatprep.subr.mxu0 0.0
    %4267 = vmatpush2.msra.mxu0 0.0
    %4268 = vmatprep.subr.mxu0 0.0
    %4269 = vmatpush2.msra.mxu0 0.0
    %4270 = vmatprep.subr.mxu0 0.0
    %4271 = vmatpush2.msra.mxu0 0.0
    %4272 = vmatprep.subr.mxu0 0.0
    %4273 = vmatpush2.msra.mxu0 0.0
    %4274 = vmatprep.mubr.f32.mxu0 0.0
    %v4275 = vand.u32 %v3940, 4294901760
    %v4276 = vsub.f32 %v3940, %v4275
    %v4277 = vand.u32 %v4276, 4294901760
    %4278 = vmatmul.mubr.f32.gmra.mxu0 %v4277
    %v4279 = vpop.f32.mrf.mxu0
    %v4280 = vadd.f32 %v4196, %v4279
    %v4281 = vpop.f32.mrf.mxu0
    %v4282 = vadd.f32 %v4198, %v4281
    %4283 = vmatprep.mubr.f32.mxu0 0.0
    %v4284 = vand.u32 %v3943, 4294901760
    %v4285 = vsub.f32 %v3943, %v4284
    %v4286 = vand.u32 %v4285, 4294901760
    %4287 = vmatmul.mubr.f32.gmra.mxu0 %v4286
    %v4288 = vpop.f32.mrf.mxu0
    %v4289 = vadd.f32 %v4204, %v4288
    %v4290 = vpop.f32.mrf.mxu0
    %v4291 = vadd.f32 %v4206, %v4290
    %4292 = vdwg.mxu0
    %4293 = vmatprep.subr.mxu0 0.0
    %4294 = vmatpush1.msra.mxu0 0.0
    %4295 = vmatprep.subr.mxu0 0.0
    %4296 = vmatpush1.msra.mxu0 0.0
    %4297 = vmatprep.subr.mxu0 0.0
    %4298 = vmatpush1.msra.mxu0 0.0
    %4299 = vmatprep.subr.mxu0 0.0
    %4300 = vmatpush1.msra.mxu0 0.0
    %4301 = vmatprep.subr.mxu0 0.0
    %4302 = vmatpush1.msra.mxu0 0.0
    %4303 = vmatprep.subr.mxu0 0.0
    %4304 = vmatpush1.msra.mxu0 0.0
    %4305 = vmatprep.subr.mxu0 0.0
    %4306 = vmatpush1.msra.mxu0 0.0
    %4307 = vmatprep.subr.mxu0 0.0
    %4308 = vmatpush1.msra.mxu0 0.0
    %4309 = vmatprep.subr.mxu0 0.0
    %4310 = vmatpush1.msra.mxu0 0.0
    %4311 = vmatprep.subr.mxu0 0.0
    %4312 = vmatpush1.msra.mxu0 0.0
    %4313 = vmatprep.subr.mxu0 0.0
    %4314 = vmatpush1.msra.mxu0 0.0
    %4315 = vmatprep.subr.mxu0 0.0
    %4316 = vmatpush1.msra.mxu0 0.0
    %4317 = vmatprep.subr.mxu0 0.0
    %4318 = vmatpush1.msra.mxu0 0.0
    %4319 = vmatprep.subr.mxu0 0.0
    %4320 = vmatpush1.msra.mxu0 0.0
    %4321 = vmatprep.subr.mxu0 0.0
    %4322 = vmatpush1.msra.mxu0 0.0
    %v4323 = vand.u32 %v3926, 4294901760
    %v4324 = vsub.f32 %v3926, %v4323
    %v4325 = vand.u32 %v4324, 4294901760
    %4326 = vmatprep.subr.mxu0 %v4325
    %v4327 = vand.u32 %v3925, 4294901760
    %v4328 = vsub.f32 %v3925, %v4327
    %v4329 = vand.u32 %v4328, 4294901760
    %4330 = vmatpush1.msra.mxu0 %v4329
    %4331 = vmatprep.subr.mxu0 0.0
    %4332 = vmatpush2.msra.mxu0 0.0
    %4333 = vmatprep.subr.mxu0 0.0
    %4334 = vmatpush2.msra.mxu0 0.0
    %4335 = vmatprep.subr.mxu0 0.0
    %4336 = vmatpush2.msra.mxu0 0.0
    %4337 = vmatprep.subr.mxu0 0.0
    %4338 = vmatpush2.msra.mxu0 0.0
    %4339 = vmatprep.subr.mxu0 0.0
    %4340 = vmatpush2.msra.mxu0 0.0
    %4341 = vmatprep.subr.mxu0 0.0
    %4342 = vmatpush2.msra.mxu0 0.0
    %4343 = vmatprep.subr.mxu0 0.0
    %4344 = vmatpush2.msra.mxu0 0.0
    %4345 = vmatprep.subr.mxu0 0.0
    %4346 = vmatpush2.msra.mxu0 0.0
    %4347 = vmatprep.subr.mxu0 0.0
    %4348 = vmatpush2.msra.mxu0 0.0
    %4349 = vmatprep.subr.mxu0 0.0
    %4350 = vmatpush2.msra.mxu0 0.0
    %4351 = vmatprep.subr.mxu0 0.0
    %4352 = vmatpush2.msra.mxu0 0.0
    %4353 = vmatprep.subr.mxu0 0.0
    %4354 = vmatpush2.msra.mxu0 0.0
    %4355 = vmatprep.subr.mxu0 0.0
    %4356 = vmatpush2.msra.mxu0 0.0
    %4357 = vmatprep.subr.mxu0 0.0
    %4358 = vmatpush2.msra.mxu0 0.0
    %4359 = vmatprep.subr.mxu0 0.0
    %4360 = vmatpush2.msra.mxu0 0.0
    %4361 = vmatprep.subr.mxu0 0.0
    %4362 = vmatpush2.msra.mxu0 0.0
    %4363 = vmatprep.mubr.f32.mxu0 0.0
    %v4364 = vand.u32 %v3940, 4294901760
    %4365 = vmatmul.mubr.f32.gmra.mxu0 %v4364
    %v4366 = vpop.f32.mrf.mxu0
    %v4367 = vadd.f32 %v4280, %v4366
    %v4368 = vpop.f32.mrf.mxu0
    %v4369 = vadd.f32 %v4282, %v4368
    %4370 = vmatprep.mubr.f32.mxu0 0.0
    %v4371 = vand.u32 %v3943, 4294901760
    %4372 = vmatmul.mubr.f32.gmra.mxu0 %v4371
    %v4373 = vpop.f32.mrf.mxu0
    %v4374 = vadd.f32 %v4289, %v4373
    %v4375 = vpop.f32.mrf.mxu0
    %v4376 = vadd.f32 %v4291, %v4375
    %4377 = vdwg.mxu0
    %4378 = vmatprep.subr.mxu0 0.0
    %4379 = vmatpush1.msra.mxu0 0.0
    %4380 = vmatprep.subr.mxu0 0.0
    %4381 = vmatpush1.msra.mxu0 0.0
    %4382 = vmatprep.subr.mxu0 0.0
    %4383 = vmatpush1.msra.mxu0 0.0
    %4384 = vmatprep.subr.mxu0 0.0
    %4385 = vmatpush1.msra.mxu0 0.0
    %4386 = vmatprep.subr.mxu0 0.0
    %4387 = vmatpush1.msra.mxu0 0.0
    %4388 = vmatprep.subr.mxu0 0.0
    %4389 = vmatpush1.msra.mxu0 0.0
    %4390 = vmatprep.subr.mxu0 0.0
    %4391 = vmatpush1.msra.mxu0 0.0
    %4392 = vmatprep.subr.mxu0 0.0
    %4393 = vmatpush1.msra.mxu0 0.0
    %4394 = vmatprep.subr.mxu0 0.0
    %4395 = vmatpush1.msra.mxu0 0.0
    %4396 = vmatprep.subr.mxu0 0.0
    %4397 = vmatpush1.msra.mxu0 0.0
    %4398 = vmatprep.subr.mxu0 0.0
    %4399 = vmatpush1.msra.mxu0 0.0
    %4400 = vmatprep.subr.mxu0 0.0
    %4401 = vmatpush1.msra.mxu0 0.0
    %4402 = vmatprep.subr.mxu0 0.0
    %4403 = vmatpush1.msra.mxu0 0.0
    %4404 = vmatprep.subr.mxu0 0.0
    %4405 = vmatpush1.msra.mxu0 0.0
    %4406 = vmatprep.subr.mxu0 0.0
    %4407 = vmatpush1.msra.mxu0 0.0
    %v4408 = vand.u32 %v3926, 4294901760
    %4409 = vmatprep.subr.mxu0 %v4408
    %v4410 = vand.u32 %v3925, 4294901760
    %4411 = vmatpush1.msra.mxu0 %v4410
    %4412 = vmatprep.subr.mxu0 0.0
    %4413 = vmatpush2.msra.mxu0 0.0
    %4414 = vmatprep.subr.mxu0 0.0
    %4415 = vmatpush2.msra.mxu0 0.0
    %4416 = vmatprep.subr.mxu0 0.0
    %4417 = vmatpush2.msra.mxu0 0.0
    %4418 = vmatprep.subr.mxu0 0.0
    %4419 = vmatpush2.msra.mxu0 0.0
    %4420 = vmatprep.subr.mxu0 0.0
    %4421 = vmatpush2.msra.mxu0 0.0
    %4422 = vmatprep.subr.mxu0 0.0
    %4423 = vmatpush2.msra.mxu0 0.0
    %4424 = vmatprep.subr.mxu0 0.0
    %4425 = vmatpush2.msra.mxu0 0.0
    %4426 = vmatprep.subr.mxu0 0.0
    %4427 = vmatpush2.msra.mxu0 0.0
    %4428 = vmatprep.subr.mxu0 0.0
    %4429 = vmatpush2.msra.mxu0 0.0
    %4430 = vmatprep.subr.mxu0 0.0
    %4431 = vmatpush2.msra.mxu0 0.0
    %4432 = vmatprep.subr.mxu0 0.0
    %4433 = vmatpush2.msra.mxu0 0.0
    %4434 = vmatprep.subr.mxu0 0.0
    %4435 = vmatpush2.msra.mxu0 0.0
    %4436 = vmatprep.subr.mxu0 0.0
    %4437 = vmatpush2.msra.mxu0 0.0
    %4438 = vmatprep.subr.mxu0 0.0
    %4439 = vmatpush2.msra.mxu0 0.0
    %4440 = vmatprep.subr.mxu0 0.0
    %4441 = vmatpush2.msra.mxu0 0.0
    %4442 = vmatprep.subr.mxu0 0.0
    %4443 = vmatpush2.msra.mxu0 0.0
    %4444 = vmatprep.mubr.f32.mxu0 0.0
    %v4445 = vand.u32 %v3940, 4294901760
    %4446 = vmatmul.mubr.f32.gmra.mxu0 %v4445
    %v4447 = vpop.f32.mrf.mxu0
    %v4448 = vadd.f32 %v4367, %v4447
    %v4449 = vpop.f32.mrf.mxu0
    %v4450 = vadd.f32 %v4369, %v4449
    %4451 = vmatprep.mubr.f32.mxu0 0.0
    %v4452 = vand.u32 %v3943, 4294901760
    %4453 = vmatmul.mubr.f32.gmra.mxu0 %v4452
    %v4454 = vpop.f32.mrf.mxu0
    %v4455 = vadd.f32 %v4374, %v4454
    %v4456 = vpop.f32.mrf.mxu0
    %v4457 = vadd.f32 %v4376, %v4456
    %4458 = vdwg.mxu0
    %v4459 = vmax.f32 %v4448, 0.0
    %v4460 = vmax.f32 %v4450, 0.0
    %v4461 = vmax.f32 %v4455, 0.0
    %v4462 = vmax.f32 %v4457, 0.0
    %v4463 = vld [vmem:[#allocation8] sm:$0xff]
    %4465 = vset.pattern.permute.xlu0 0
    %4466 = vperm.xlu0 %4465, %v87
    %v4467 = vpop.permute.xlu0 %4466
    %vm4469 = vcmask 130048
    %v4471 = vsel %vm4469, %v4463, 0
    %4473 = vmatprep.subr.mxu0 0.0
    %4474 = vmatpush1.msra.mxu0 0.0
    %4475 = vmatprep.subr.mxu0 0.0
    %4476 = vmatpush1.msra.mxu0 0.0
    %4477 = vmatprep.subr.mxu0 0.0
    %4478 = vmatpush1.msra.mxu0 0.0
    %4479 = vmatprep.subr.mxu0 0.0
    %4480 = vmatpush1.msra.mxu0 0.0
    %4481 = vmatprep.subr.mxu0 0.0
    %4482 = vmatpush1.msra.mxu0 0.0
    %4483 = vmatprep.subr.mxu0 0.0
    %4484 = vmatpush1.msra.mxu0 0.0
    %4485 = vmatprep.subr.mxu0 0.0
    %4486 = vmatpush1.msra.mxu0 0.0
    %4487 = vmatprep.subr.mxu0 0.0
    %4488 = vmatpush1.msra.mxu0 0.0
    %4489 = vmatprep.subr.mxu0 0.0
    %4490 = vmatpush1.msra.mxu0 0.0
    %4491 = vmatprep.subr.mxu0 0.0
    %4492 = vmatpush1.msra.mxu0 0.0
    %4493 = vmatprep.subr.mxu0 0.0
    %4494 = vmatpush1.msra.mxu0 0.0
    %4495 = vmatprep.subr.mxu0 0.0
    %4496 = vmatpush1.msra.mxu0 0.0
    %4497 = vmatprep.subr.mxu0 0.0
    %4498 = vmatpush1.msra.mxu0 0.0
    %4499 = vmatprep.subr.mxu0 0.0
    %4500 = vmatpush1.msra.mxu0 0.0
    %v4501 = vand.u32 %v4462, 4294901760
    %4502 = vmatprep.subr.mxu0 %v4501
    %v4503 = vand.u32 %v4461, 4294901760
    %4504 = vmatpush1.msra.mxu0 %v4503
    %v4505 = vand.u32 %v4460, 4294901760
    %4506 = vmatprep.subr.mxu0 %v4505
    %v4507 = vand.u32 %v4459, 4294901760
    %4508 = vmatpush1.msra.mxu0 %v4507
    %4509 = vmatprep.subr.mxu0 0.0
    %4510 = vmatpush2.msra.mxu0 0.0
    %4511 = vmatprep.subr.mxu0 0.0
    %4512 = vmatpush2.msra.mxu0 0.0
    %4513 = vmatprep.subr.mxu0 0.0
    %4514 = vmatpush2.msra.mxu0 0.0
    %4515 = vmatprep.subr.mxu0 0.0
    %4516 = vmatpush2.msra.mxu0 0.0
    %4517 = vmatprep.subr.mxu0 0.0
    %4518 = vmatpush2.msra.mxu0 0.0
    %4519 = vmatprep.subr.mxu0 0.0
    %4520 = vmatpush2.msra.mxu0 0.0
    %4521 = vmatprep.subr.mxu0 0.0
    %4522 = vmatpush2.msra.mxu0 0.0
    %4523 = vmatprep.subr.mxu0 0.0
    %4524 = vmatpush2.msra.mxu0 0.0
    %4525 = vmatprep.subr.mxu0 0.0
    %4526 = vmatpush2.msra.mxu0 0.0
    %4527 = vmatprep.subr.mxu0 0.0
    %4528 = vmatpush2.msra.mxu0 0.0
    %4529 = vmatprep.subr.mxu0 0.0
    %4530 = vmatpush2.msra.mxu0 0.0
    %4531 = vmatprep.subr.mxu0 0.0
    %4532 = vmatpush2.msra.mxu0 0.0
    %4533 = vmatprep.subr.mxu0 0.0
    %4534 = vmatpush2.msra.mxu0 0.0
    %4535 = vmatprep.subr.mxu0 0.0
    %4536 = vmatpush2.msra.mxu0 0.0
    %4537 = vmatprep.subr.mxu0 0.0
    %4538 = vmatpush2.msra.mxu0 0.0
    %4539 = vmatprep.subr.mxu0 0.0
    %4540 = vmatpush2.msra.mxu0 0.0
    %4541 = vmatprep.mubr.f32.mxu0 0.0
    %v4542 = vand.u32 %v4471, 4294901760
    %v4543 = vsub.f32 %v4471, %v4542
    %v4544 = vand.u32 %v4543, 4294901760
    %v4545 = vsub.f32 %v4543, %v4544
    %v4546 = vand.u32 %v4545, 4294901760
    %4547 = vmatmul.mubr.f32.gmra.mxu0 %v4546
    %v4548 = vpop.f32.mrf.mxu0
    %v4549 = vadd.f32 %v4467, %v4548
    %v4550 = vpop.f32.mrf.mxu0
    %v4551 = vadd.f32 %v4467, %v4550
    %4552 = vdwg.mxu0
    %4553 = vmatprep.subr.mxu0 0.0
    %4554 = vmatpush1.msra.mxu0 0.0
    %4555 = vmatprep.subr.mxu0 0.0
    %4556 = vmatpush1.msra.mxu0 0.0
    %4557 = vmatprep.subr.mxu0 0.0
    %4558 = vmatpush1.msra.mxu0 0.0
    %4559 = vmatprep.subr.mxu0 0.0
    %4560 = vmatpush1.msra.mxu0 0.0
    %4561 = vmatprep.subr.mxu0 0.0
    %4562 = vmatpush1.msra.mxu0 0.0
    %4563 = vmatprep.subr.mxu0 0.0
    %4564 = vmatpush1.msra.mxu0 0.0
    %4565 = vmatprep.subr.mxu0 0.0
    %4566 = vmatpush1.msra.mxu0 0.0
    %4567 = vmatprep.subr.mxu0 0.0
    %4568 = vmatpush1.msra.mxu0 0.0
    %4569 = vmatprep.subr.mxu0 0.0
    %4570 = vmatpush1.msra.mxu0 0.0
    %4571 = vmatprep.subr.mxu0 0.0
    %4572 = vmatpush1.msra.mxu0 0.0
    %4573 = vmatprep.subr.mxu0 0.0
    %4574 = vmatpush1.msra.mxu0 0.0
    %4575 = vmatprep.subr.mxu0 0.0
    %4576 = vmatpush1.msra.mxu0 0.0
    %4577 = vmatprep.subr.mxu0 0.0
    %4578 = vmatpush1.msra.mxu0 0.0
    %4579 = vmatprep.subr.mxu0 0.0
    %4580 = vmatpush1.msra.mxu0 0.0
    %v4581 = vand.u32 %v4462, 4294901760
    %v4582 = vsub.f32 %v4462, %v4581
    %v4583 = vand.u32 %v4582, 4294901760
    %v4584 = vsub.f32 %v4582, %v4583
    %v4585 = vand.u32 %v4584, 4294901760
    %4586 = vmatprep.subr.mxu0 %v4585
    %v4587 = vand.u32 %v4461, 4294901760
    %v4588 = vsub.f32 %v4461, %v4587
    %v4589 = vand.u32 %v4588, 4294901760
    %v4590 = vsub.f32 %v4588, %v4589
    %v4591 = vand.u32 %v4590, 4294901760
    %4592 = vmatpush1.msra.mxu0 %v4591
    %v4593 = vand.u32 %v4460, 4294901760
    %v4594 = vsub.f32 %v4460, %v4593
    %v4595 = vand.u32 %v4594, 4294901760
    %v4596 = vsub.f32 %v4594, %v4595
    %v4597 = vand.u32 %v4596, 4294901760
    %4598 = vmatprep.subr.mxu0 %v4597
    %v4599 = vand.u32 %v4459, 4294901760
    %v4600 = vsub.f32 %v4459, %v4599
    %v4601 = vand.u32 %v4600, 4294901760
    %v4602 = vsub.f32 %v4600, %v4601
    %v4603 = vand.u32 %v4602, 4294901760
    %4604 = vmatpush1.msra.mxu0 %v4603
    %4605 = vmatprep.subr.mxu0 0.0
    %4606 = vmatpush2.msra.mxu0 0.0
    %4607 = vmatprep.subr.mxu0 0.0
    %4608 = vmatpush2.msra.mxu0 0.0
    %4609 = vmatprep.subr.mxu0 0.0
    %4610 = vmatpush2.msra.mxu0 0.0
    %4611 = vmatprep.subr.mxu0 0.0
    %4612 = vmatpush2.msra.mxu0 0.0
    %4613 = vmatprep.subr.mxu0 0.0
    %4614 = vmatpush2.msra.mxu0 0.0
    %4615 = vmatprep.subr.mxu0 0.0
    %4616 = vmatpush2.msra.mxu0 0.0
    %4617 = vmatprep.subr.mxu0 0.0
    %4618 = vmatpush2.msra.mxu0 0.0
    %4619 = vmatprep.subr.mxu0 0.0
    %4620 = vmatpush2.msra.mxu0 0.0
    %4621 = vmatprep.subr.mxu0 0.0
    %4622 = vmatpush2.msra.mxu0 0.0
    %4623 = vmatprep.subr.mxu0 0.0
    %4624 = vmatpush2.msra.mxu0 0.0
    %4625 = vmatprep.subr.mxu0 0.0
    %4626 = vmatpush2.msra.mxu0 0.0
    %4627 = vmatprep.subr.mxu0 0.0
    %4628 = vmatpush2.msra.mxu0 0.0
    %4629 = vmatprep.subr.mxu0 0.0
    %4630 = vmatpush2.msra.mxu0 0.0
    %4631 = vmatprep.subr.mxu0 0.0
    %4632 = vmatpush2.msra.mxu0 0.0
    %4633 = vmatprep.subr.mxu0 0.0
    %4634 = vmatpush2.msra.mxu0 0.0
    %4635 = vmatprep.subr.mxu0 0.0
    %4636 = vmatpush2.msra.mxu0 0.0
    %4637 = vmatprep.mubr.f32.mxu0 0.0
    %v4638 = vand.u32 %v4471, 4294901760
    %4639 = vmatmul.mubr.f32.gmra.mxu0 %v4638
    %v4640 = vpop.f32.mrf.mxu0
    %v4641 = vadd.f32 %v4549, %v4640
    %v4642 = vpop.f32.mrf.mxu0
    %v4643 = vadd.f32 %v4551, %v4642
    %4644 = vdwg.mxu0
    %4645 = vmatprep.subr.mxu0 0.0
    %4646 = vmatpush1.msra.mxu0 0.0
    %4647 = vmatprep.subr.mxu0 0.0
    %4648 = vmatpush1.msra.mxu0 0.0
    %4649 = vmatprep.subr.mxu0 0.0
    %4650 = vmatpush1.msra.mxu0 0.0
    %4651 = vmatprep.subr.mxu0 0.0
    %4652 = vmatpush1.msra.mxu0 0.0
    %4653 = vmatprep.subr.mxu0 0.0
    %4654 = vmatpush1.msra.mxu0 0.0
    %4655 = vmatprep.subr.mxu0 0.0
    %4656 = vmatpush1.msra.mxu0 0.0
    %4657 = vmatprep.subr.mxu0 0.0
    %4658 = vmatpush1.msra.mxu0 0.0
    %4659 = vmatprep.subr.mxu0 0.0
    %4660 = vmatpush1.msra.mxu0 0.0
    %4661 = vmatprep.subr.mxu0 0.0
    %4662 = vmatpush1.msra.mxu0 0.0
    %4663 = vmatprep.subr.mxu0 0.0
    %4664 = vmatpush1.msra.mxu0 0.0
    %4665 = vmatprep.subr.mxu0 0.0
    %4666 = vmatpush1.msra.mxu0 0.0
    %4667 = vmatprep.subr.mxu0 0.0
    %4668 = vmatpush1.msra.mxu0 0.0
    %4669 = vmatprep.subr.mxu0 0.0
    %4670 = vmatpush1.msra.mxu0 0.0
    %4671 = vmatprep.subr.mxu0 0.0
    %4672 = vmatpush1.msra.mxu0 0.0
    %v4673 = vand.u32 %v4462, 4294901760
    %v4674 = vsub.f32 %v4462, %v4673
    %4675 = vmatprep.subr.mxu0 %v4674
    %v4676 = vand.u32 %v4461, 4294901760
    %v4677 = vsub.f32 %v4461, %v4676
    %4678 = vmatpush1.msra.mxu0 %v4677
    %v4679 = vand.u32 %v4460, 4294901760
    %v4680 = vsub.f32 %v4460, %v4679
    %4681 = vmatprep.subr.mxu0 %v4680
    %v4682 = vand.u32 %v4459, 4294901760
    %v4683 = vsub.f32 %v4459, %v4682
    %4684 = vmatpush1.msra.mxu0 %v4683
    %4685 = vmatprep.subr.mxu0 0.0
    %4686 = vmatpush2.msra.mxu0 0.0
    %4687 = vmatprep.subr.mxu0 0.0
    %4688 = vmatpush2.msra.mxu0 0.0
    %4689 = vmatprep.subr.mxu0 0.0
    %4690 = vmatpush2.msra.mxu0 0.0
    %4691 = vmatprep.subr.mxu0 0.0
    %4692 = vmatpush2.msra.mxu0 0.0
    %4693 = vmatprep.subr.mxu0 0.0
    %4694 = vmatpush2.msra.mxu0 0.0
    %4695 = vmatprep.subr.mxu0 0.0
    %4696 = vmatpush2.msra.mxu0 0.0
    %4697 = vmatprep.subr.mxu0 0.0
    %4698 = vmatpush2.msra.mxu0 0.0
    %4699 = vmatprep.subr.mxu0 0.0
    %4700 = vmatpush2.msra.mxu0 0.0
    %4701 = vmatprep.subr.mxu0 0.0
    %4702 = vmatpush2.msra.mxu0 0.0
    %4703 = vmatprep.subr.mxu0 0.0
    %4704 = vmatpush2.msra.mxu0 0.0
    %4705 = vmatprep.subr.mxu0 0.0
    %4706 = vmatpush2.msra.mxu0 0.0
    %4707 = vmatprep.subr.mxu0 0.0
    %4708 = vmatpush2.msra.mxu0 0.0
    %4709 = vmatprep.subr.mxu0 0.0
    %4710 = vmatpush2.msra.mxu0 0.0
    %4711 = vmatprep.subr.mxu0 0.0
    %4712 = vmatpush2.msra.mxu0 0.0
    %4713 = vmatprep.subr.mxu0 0.0
    %4714 = vmatpush2.msra.mxu0 0.0
    %4715 = vmatprep.subr.mxu0 0.0
    %4716 = vmatpush2.msra.mxu0 0.0
    %4717 = vmatprep.mubr.f32.mxu0 0.0
    %v4718 = vand.u32 %v4471, 4294901760
    %v4719 = vsub.f32 %v4471, %v4718
    %4720 = vmatmul.mubr.f32.gmra.mxu0 %v4719
    %v4721 = vpop.f32.mrf.mxu0
    %v4722 = vadd.f32 %v4641, %v4721
    %v4723 = vpop.f32.mrf.mxu0
    %v4724 = vadd.f32 %v4643, %v4723
    %4725 = vdwg.mxu0
    %4726 = vmatprep.subr.mxu0 0.0
    %4727 = vmatpush1.msra.mxu0 0.0
    %4728 = vmatprep.subr.mxu0 0.0
    %4729 = vmatpush1.msra.mxu0 0.0
    %4730 = vmatprep.subr.mxu0 0.0
    %4731 = vmatpush1.msra.mxu0 0.0
    %4732 = vmatprep.subr.mxu0 0.0
    %4733 = vmatpush1.msra.mxu0 0.0
    %4734 = vmatprep.subr.mxu0 0.0
    %4735 = vmatpush1.msra.mxu0 0.0
    %4736 = vmatprep.subr.mxu0 0.0
    %4737 = vmatpush1.msra.mxu0 0.0
    %4738 = vmatprep.subr.mxu0 0.0
    %4739 = vmatpush1.msra.mxu0 0.0
    %4740 = vmatprep.subr.mxu0 0.0
    %4741 = vmatpush1.msra.mxu0 0.0
    %4742 = vmatprep.subr.mxu0 0.0
    %4743 = vmatpush1.msra.mxu0 0.0
    %4744 = vmatprep.subr.mxu0 0.0
    %4745 = vmatpush1.msra.mxu0 0.0
    %4746 = vmatprep.subr.mxu0 0.0
    %4747 = vmatpush1.msra.mxu0 0.0
    %4748 = vmatprep.subr.mxu0 0.0
    %4749 = vmatpush1.msra.mxu0 0.0
    %4750 = vmatprep.subr.mxu0 0.0
    %4751 = vmatpush1.msra.mxu0 0.0
    %4752 = vmatprep.subr.mxu0 0.0
    %4753 = vmatpush1.msra.mxu0 0.0
    %v4754 = vand.u32 %v4462, 4294901760
    %4755 = vmatprep.subr.mxu0 %v4754
    %v4756 = vand.u32 %v4461, 4294901760
    %4757 = vmatpush1.msra.mxu0 %v4756
    %v4758 = vand.u32 %v4460, 4294901760
    %4759 = vmatprep.subr.mxu0 %v4758
    %v4760 = vand.u32 %v4459, 4294901760
    %4761 = vmatpush1.msra.mxu0 %v4760
    %4762 = vmatprep.subr.mxu0 0.0
    %4763 = vmatpush2.msra.mxu0 0.0
    %4764 = vmatprep.subr.mxu0 0.0
    %4765 = vmatpush2.msra.mxu0 0.0
    %4766 = vmatprep.subr.mxu0 0.0
    %4767 = vmatpush2.msra.mxu0 0.0
    %4768 = vmatprep.subr.mxu0 0.0
    %4769 = vmatpush2.msra.mxu0 0.0
    %4770 = vmatprep.subr.mxu0 0.0
    %4771 = vmatpush2.msra.mxu0 0.0
    %4772 = vmatprep.subr.mxu0 0.0
    %4773 = vmatpush2.msra.mxu0 0.0
    %4774 = vmatprep.subr.mxu0 0.0
    %4775 = vmatpush2.msra.mxu0 0.0
    %4776 = vmatprep.subr.mxu0 0.0
    %4777 = vmatpush2.msra.mxu0 0.0
    %4778 = vmatprep.subr.mxu0 0.0
    %4779 = vmatpush2.msra.mxu0 0.0
    %4780 = vmatprep.subr.mxu0 0.0
    %4781 = vmatpush2.msra.mxu0 0.0
    %4782 = vmatprep.subr.mxu0 0.0
    %4783 = vmatpush2.msra.mxu0 0.0
    %4784 = vmatprep.subr.mxu0 0.0
    %4785 = vmatpush2.msra.mxu0 0.0
    %4786 = vmatprep.subr.mxu0 0.0
    %4787 = vmatpush2.msra.mxu0 0.0
    %4788 = vmatprep.subr.mxu0 0.0
    %4789 = vmatpush2.msra.mxu0 0.0
    %4790 = vmatprep.subr.mxu0 0.0
    %4791 = vmatpush2.msra.mxu0 0.0
    %4792 = vmatprep.subr.mxu0 0.0
    %4793 = vmatpush2.msra.mxu0 0.0
    %4794 = vmatprep.mubr.f32.mxu0 0.0
    %v4795 = vand.u32 %v4471, 4294901760
    %v4796 = vsub.f32 %v4471, %v4795
    %v4797 = vand.u32 %v4796, 4294901760
    %4798 = vmatmul.mubr.f32.gmra.mxu0 %v4797
    %v4799 = vpop.f32.mrf.mxu0
    %v4800 = vadd.f32 %v4722, %v4799
    %v4801 = vpop.f32.mrf.mxu0
    %v4802 = vadd.f32 %v4724, %v4801
    %4803 = vdwg.mxu0
    %4804 = vmatprep.subr.mxu0 0.0
    %4805 = vmatpush1.msra.mxu0 0.0
    %4806 = vmatprep.subr.mxu0 0.0
    %4807 = vmatpush1.msra.mxu0 0.0
    %4808 = vmatprep.subr.mxu0 0.0
    %4809 = vmatpush1.msra.mxu0 0.0
    %4810 = vmatprep.subr.mxu0 0.0
    %4811 = vmatpush1.msra.mxu0 0.0
    %4812 = vmatprep.subr.mxu0 0.0
    %4813 = vmatpush1.msra.mxu0 0.0
    %4814 = vmatprep.subr.mxu0 0.0
    %4815 = vmatpush1.msra.mxu0 0.0
    %4816 = vmatprep.subr.mxu0 0.0
    %4817 = vmatpush1.msra.mxu0 0.0
    %4818 = vmatprep.subr.mxu0 0.0
    %4819 = vmatpush1.msra.mxu0 0.0
    %4820 = vmatprep.subr.mxu0 0.0
    %4821 = vmatpush1.msra.mxu0 0.0
    %4822 = vmatprep.subr.mxu0 0.0
    %4823 = vmatpush1.msra.mxu0 0.0
    %4824 = vmatprep.subr.mxu0 0.0
    %4825 = vmatpush1.msra.mxu0 0.0
    %4826 = vmatprep.subr.mxu0 0.0
    %4827 = vmatpush1.msra.mxu0 0.0
    %4828 = vmatprep.subr.mxu0 0.0
    %4829 = vmatpush1.msra.mxu0 0.0
    %4830 = vmatprep.subr.mxu0 0.0
    %4831 = vmatpush1.msra.mxu0 0.0
    %v4832 = vand.u32 %v4462, 4294901760
    %v4833 = vsub.f32 %v4462, %v4832
    %v4834 = vand.u32 %v4833, 4294901760
    %4835 = vmatprep.subr.mxu0 %v4834
    %v4836 = vand.u32 %v4461, 4294901760
    %v4837 = vsub.f32 %v4461, %v4836
    %v4838 = vand.u32 %v4837, 4294901760
    %4839 = vmatpush1.msra.mxu0 %v4838
    %v4840 = vand.u32 %v4460, 4294901760
    %v4841 = vsub.f32 %v4460, %v4840
    %v4842 = vand.u32 %v4841, 4294901760
    %4843 = vmatprep.subr.mxu0 %v4842
    %v4844 = vand.u32 %v4459, 4294901760
    %v4845 = vsub.f32 %v4459, %v4844
    %v4846 = vand.u32 %v4845, 4294901760
    %4847 = vmatpush1.msra.mxu0 %v4846
    %4848 = vmatprep.subr.mxu0 0.0
    %4849 = vmatpush2.msra.mxu0 0.0
    %4850 = vmatprep.subr.mxu0 0.0
    %4851 = vmatpush2.msra.mxu0 0.0
    %4852 = vmatprep.subr.mxu0 0.0
    %4853 = vmatpush2.msra.mxu0 0.0
    %4854 = vmatprep.subr.mxu0 0.0
    %4855 = vmatpush2.msra.mxu0 0.0
    %4856 = vmatprep.subr.mxu0 0.0
    %4857 = vmatpush2.msra.mxu0 0.0
    %4858 = vmatprep.subr.mxu0 0.0
    %4859 = vmatpush2.msra.mxu0 0.0
    %4860 = vmatprep.subr.mxu0 0.0
    %4861 = vmatpush2.msra.mxu0 0.0
    %4862 = vmatprep.subr.mxu0 0.0
    %4863 = vmatpush2.msra.mxu0 0.0
    %4864 = vmatprep.subr.mxu0 0.0
    %4865 = vmatpush2.msra.mxu0 0.0
    %4866 = vmatprep.subr.mxu0 0.0
    %4867 = vmatpush2.msra.mxu0 0.0
    %4868 = vmatprep.subr.mxu0 0.0
    %4869 = vmatpush2.msra.mxu0 0.0
    %4870 = vmatprep.subr.mxu0 0.0
    %4871 = vmatpush2.msra.mxu0 0.0
    %4872 = vmatprep.subr.mxu0 0.0
    %4873 = vmatpush2.msra.mxu0 0.0
    %4874 = vmatprep.subr.mxu0 0.0
    %4875 = vmatpush2.msra.mxu0 0.0
    %4876 = vmatprep.subr.mxu0 0.0
    %4877 = vmatpush2.msra.mxu0 0.0
    %4878 = vmatprep.subr.mxu0 0.0
    %4879 = vmatpush2.msra.mxu0 0.0
    %4880 = vmatprep.mubr.f32.mxu0 0.0
    %v4881 = vand.u32 %v4471, 4294901760
    %4882 = vmatmul.mubr.f32.gmra.mxu0 %v4881
    %v4883 = vpop.f32.mrf.mxu0
    %v4884 = vadd.f32 %v4800, %v4883
    %v4885 = vpop.f32.mrf.mxu0
    %v4886 = vadd.f32 %v4802, %v4885
    %4887 = vdwg.mxu0
    %4888 = vmatprep.subr.mxu0 0.0
    %4889 = vmatpush1.msra.mxu0 0.0
    %4890 = vmatprep.subr.mxu0 0.0
    %4891 = vmatpush1.msra.mxu0 0.0
    %4892 = vmatprep.subr.mxu0 0.0
    %4893 = vmatpush1.msra.mxu0 0.0
    %4894 = vmatprep.subr.mxu0 0.0
    %4895 = vmatpush1.msra.mxu0 0.0
    %4896 = vmatprep.subr.mxu0 0.0
    %4897 = vmatpush1.msra.mxu0 0.0
    %4898 = vmatprep.subr.mxu0 0.0
    %4899 = vmatpush1.msra.mxu0 0.0
    %4900 = vmatprep.subr.mxu0 0.0
    %4901 = vmatpush1.msra.mxu0 0.0
    %4902 = vmatprep.subr.mxu0 0.0
    %4903 = vmatpush1.msra.mxu0 0.0
    %4904 = vmatprep.subr.mxu0 0.0
    %4905 = vmatpush1.msra.mxu0 0.0
    %4906 = vmatprep.subr.mxu0 0.0
    %4907 = vmatpush1.msra.mxu0 0.0
    %4908 = vmatprep.subr.mxu0 0.0
    %4909 = vmatpush1.msra.mxu0 0.0
    %4910 = vmatprep.subr.mxu0 0.0
    %4911 = vmatpush1.msra.mxu0 0.0
    %4912 = vmatprep.subr.mxu0 0.0
    %4913 = vmatpush1.msra.mxu0 0.0
    %4914 = vmatprep.subr.mxu0 0.0
    %4915 = vmatpush1.msra.mxu0 0.0
    %v4916 = vand.u32 %v4462, 4294901760
    %4917 = vmatprep.subr.mxu0 %v4916
    %v4918 = vand.u32 %v4461, 4294901760
    %4919 = vmatpush1.msra.mxu0 %v4918
    %v4920 = vand.u32 %v4460, 4294901760
    %4921 = vmatprep.subr.mxu0 %v4920
    %v4922 = vand.u32 %v4459, 4294901760
    %4923 = vmatpush1.msra.mxu0 %v4922
    %4924 = vmatprep.subr.mxu0 0.0
    %4925 = vmatpush2.msra.mxu0 0.0
    %4926 = vmatprep.subr.mxu0 0.0
    %4927 = vmatpush2.msra.mxu0 0.0
    %4928 = vmatprep.subr.mxu0 0.0
    %4929 = vmatpush2.msra.mxu0 0.0
    %4930 = vmatprep.subr.mxu0 0.0
    %4931 = vmatpush2.msra.mxu0 0.0
    %4932 = vmatprep.subr.mxu0 0.0
    %4933 = vmatpush2.msra.mxu0 0.0
    %4934 = vmatprep.subr.mxu0 0.0
    %4935 = vmatpush2.msra.mxu0 0.0
    %4936 = vmatprep.subr.mxu0 0.0
    %4937 = vmatpush2.msra.mxu0 0.0
    %4938 = vmatprep.subr.mxu0 0.0
    %4939 = vmatpush2.msra.mxu0 0.0
    %4940 = vmatprep.subr.mxu0 0.0
    %4941 = vmatpush2.msra.mxu0 0.0
    %4942 = vmatprep.subr.mxu0 0.0
    %4943 = vmatpush2.msra.mxu0 0.0
    %4944 = vmatprep.subr.mxu0 0.0
    %4945 = vmatpush2.msra.mxu0 0.0
    %4946 = vmatprep.subr.mxu0 0.0
    %4947 = vmatpush2.msra.mxu0 0.0
    %4948 = vmatprep.subr.mxu0 0.0
    %4949 = vmatpush2.msra.mxu0 0.0
    %4950 = vmatprep.subr.mxu0 0.0
    %4951 = vmatpush2.msra.mxu0 0.0
    %4952 = vmatprep.subr.mxu0 0.0
    %4953 = vmatpush2.msra.mxu0 0.0
    %4954 = vmatprep.subr.mxu0 0.0
    %4955 = vmatpush2.msra.mxu0 0.0
    %4956 = vmatprep.mubr.f32.mxu0 0.0
    %v4957 = vand.u32 %v4471, 4294901760
    %4958 = vmatmul.mubr.f32.gmra.mxu0 %v4957
    %v4959 = vpop.f32.mrf.mxu0
    %v4960 = vadd.f32 %v4884, %v4959
    %v4961 = vpop.f32.mrf.mxu0
    %v4962 = vadd.f32 %v4886, %v4961
    %4963 = vdwg.mxu0
    %v4964 = vadd.f32 %v3925, %v4960
    %v4965 = vadd.f32 %v3926, %v4962
    %4966 = vst [vmem:[#allocation9] sm:$0xff] %v4964
    %4967 = vst [vmem:[#allocation9 + $0x8] sm:$0xff] %v4965
    // Predicated region
    $region46: #{tpu_custom_call.1} parent=1 // pred_check
      _
    $region47: #{tpu_custom_call.1} parent=1 // pred_check_branch
      %4969 = sbr.rel (0) target = $region49
    $region48: #{tpu_custom_call.1} parent=1 // pred_region
      %s4971 = ssub.s32 256, 256
      %4972 = vsyncadd [#allocation5], %s4971
      %s4974 = sshll.u32 [#allocation9], 4
      %s4975 = int_to_ptr.vmem [resolvable:$true] %s4974
      %4977 = dma.vmem_to_hbm [thread:$0]  %s4975, 256, %s8, [#allocation5]
    $region49: #{tpu_custom_call.1} parent=1 // pred_fallthru
      _
    // Predicated region
    $region50: #{tpu_custom_call.1} parent=1 // pred_check
      _
    $region51: #{tpu_custom_call.1} parent=1 // pred_check_branch
      %4979 = sbr.rel (0) target = $region53
    $region52: #{tpu_custom_call.1} parent=1 // pred_region
      %4980 = dma.done [#allocation5], 256
    $region53: #{tpu_custom_call.1} parent=1 // pred_fallthru
      _
    %4981 = vsyncpa [#allocation4], 1
    %4982 = vsyncpa [#allocation7], 1
    %4983 = vsyncpa [#allocation5], 1

</llo_original>
